<compile_context>
chip_gen: v5e
topology: v5e:2x2
jax: 0.10.0
libtpu: 0.0.40
codegen_flags: <defaults>
</compile_context>

<pallas_src>
import functools

import jax
import jax.numpy as jnp
from jax import lax
from jax.experimental import pallas as pl
from jax.experimental.pallas import tpu as pltpu

_HIGHEST = jax.lax.Precision.HIGHEST


def _scatter_rows(n_out, n_in, parity):
    """M[i, h] = 1.0 iff i == 2*h + parity   (shape (n_out, n_in))."""
    i = lax.broadcasted_iota(jnp.int32, (n_out, n_in), 0)
    h = lax.broadcasted_iota(jnp.int32, (n_out, n_in), 1)
    return (i == 2 * h + parity).astype(jnp.float32)


def _scatter_cols(n_in, n_out, parity):
    """M[w, j] = 1.0 iff j == 2*w + parity   (shape (n_in, n_out))."""
    w = lax.broadcasted_iota(jnp.int32, (n_in, n_out), 0)
    j = lax.broadcasted_iota(jnp.int32, (n_in, n_out), 1)
    return (j == 2 * w + parity).astype(jnp.float32)


def _fwd_kernel(x_ref, o_ref):
    # x_ref: (B, C, H, W)  ->  o_ref: (B, C//4, 2H, 2W)
    nb, c_in, h, w = x_ref.shape
    c_out = c_in // 4
    x = x_ref[...]                                # whole input resident in VMEM
    # One-hot scatter matrices, built once and broadcast over batch (hoisted).
    R = [jnp.broadcast_to(_scatter_rows(2 * h, h, r), (nb, 2 * h, h))
         for r in range(2)]                       # R[r][b, 2h+r, h] = 1
    S = [jnp.broadcast_to(_scatter_cols(w, 2 * w, s), (nb, w, 2 * w))
         for s in range(2)]                       # S[s][b, w, 2w+s] = 1
    for c in range(c_out):
        acc = jnp.zeros((nb, 2 * h, 2 * w), jnp.float32)
        for r in range(2):
            for s in range(2):
                plane = x[:, 4 * c + 2 * r + s, :, :]          # (B, H, W)
                t = jnp.einsum('bhw,bwj->bhj', plane, S[s],
                               precision=_HIGHEST,
                               preferred_element_type=jnp.float32)
                acc = acc + jnp.einsum('bih,bhj->bij', R[r], t,
                                       precision=_HIGHEST,
                                       preferred_element_type=jnp.float32)
        o_ref[:, c, :, :] = acc.astype(o_ref.dtype)


def _rev_kernel(x_ref, o_ref):
    # x_ref: (B, C, H, W)  ->  o_ref: (B, 4C, H//2, W//2)
    nb, c_in, h, w = x_ref.shape
    ho, wo = h // 2, w // 2
    x = x_ref[...]
    A = [jnp.broadcast_to(_scatter_cols(ho, h, r), (nb, ho, h))
         for r in range(2)]                       # A[r][b, h, 2h+r] = 1
    Bm = [jnp.broadcast_to(_scatter_rows(w, wo, s), (nb, w, wo))
          for s in range(2)]                      # Bm[s][b, 2w+s, w] = 1
    for c in range(c_in):
        plane = x[:, c, :, :]                                   # (B, H, W)
        for r in range(2):
            t = jnp.einsum('bhi,bij->bhj', A[r], plane,
                           precision=_HIGHEST,
                           preferred_element_type=jnp.float32)  # (B, H/2, W)
            for s in range(2):
                o_ref[:, 4 * c + 2 * r + s, :, :] = jnp.einsum(
                    'bhj,bjw->bhw', t, Bm[s],
                    precision=_HIGHEST,
                    preferred_element_type=jnp.float32).astype(o_ref.dtype)


@functools.lru_cache(maxsize=None)
def _fwd_call(nb, c, h, w):
    return jax.jit(pl.pallas_call(
        _fwd_kernel,
        out_shape=jax.ShapeDtypeStruct((nb, c // 4, 2 * h, 2 * w), jnp.float32),
        grid=(1,),
        in_specs=[pl.BlockSpec((nb, c, h, w), lambda i: (0, 0, 0, 0))],
        out_specs=pl.BlockSpec((nb, c // 4, 2 * h, 2 * w),
                               lambda i: (0, 0, 0, 0)),
        compiler_params=pltpu.CompilerParams(
            dimension_semantics=("arbitrary",)),
    ))


@functools.lru_cache(maxsize=None)
def _rev_call(nb, c, h, w):
    return jax.jit(pl.pallas_call(
        _rev_kernel,
        out_shape=jax.ShapeDtypeStruct((nb, 4 * c, h // 2, w // 2), jnp.float32),
        grid=(1,),
        in_specs=[pl.BlockSpec((nb, c, h, w), lambda i: (0, 0, 0, 0))],
        out_specs=pl.BlockSpec((nb, 4 * c, h // 2, w // 2),
                               lambda i: (0, 0, 0, 0)),
        compiler_params=pltpu.CompilerParams(
            dimension_semantics=("arbitrary",)),
    ))


def unsqueeze_forward(xs, rev=False):
    """Mirror of Unsqueeze.forward: takes and returns a single-element list."""
    x = jnp.asarray(xs[0], jnp.float32)
    nb, c, h, w = x.shape
    if not rev:
        assert c % 4 == 0, "forward requires channels divisible by 4"
        return [_fwd_call(nb, c, h, w)(x)]
    assert h % 2 == 0 and w % 2 == 0, "reverse requires even spatial dims"
    return [_rev_call(nb, c, h, w)(x)]


if __name__ == "__main__":
    nb, c, h, w = 2, 4, 16, 16
    key = jax.random.PRNGKey(0)
    # bf16-rounded f32 values keep the one-hot-matmul permutation exactly
    # representable regardless of how many MXU passes the f32 dot uses.
    x = jax.random.normal(key, (nb, c, h, w), jnp.float32)
    x = x.astype(jnp.bfloat16).astype(jnp.float32)

    y = jax.block_until_ready(unsqueeze_forward([x], rev=False)[0])  # (2,1,32,32)
    z = jax.block_until_ready(unsqueeze_forward([x], rev=True)[0])   # (2,16,8,8)

    # Pure-XLA reference (same math as the PyTorch module).
    y_ref = (x.reshape(nb, c // 4, 2, 2, h, w)
               .transpose(0, 1, 4, 2, 5, 3)
               .reshape(nb, c // 4, 2 * h, 2 * w))
    z_ref = (x.reshape(nb, c, h // 2, 2, w // 2, 2)
               .transpose(0, 1, 3, 5, 2, 4)
               .reshape(nb, 4 * c, h // 2, w // 2))

    assert y.shape == (nb, c // 4, 2 * h, 2 * w)
    assert z.shape == (nb, 4 * c, h // 2, w // 2)
    assert bool(jnp.allclose(y, y_ref, atol=1e-6, rtol=1e-6))
    assert bool(jnp.allclose(z, z_ref, atol=1e-6, rtol=1e-6))

    # Round trip: rev(fwd(x)) must reproduce x.
    x_rt = jax.block_until_ready(
        unsqueeze_forward(unsqueeze_forward([x], rev=False), rev=True)[0])
    assert bool(jnp.allclose(x_rt, x, atol=1e-6, rtol=1e-6))

    print("KERNEL_OK")
</pallas_src>

<mosaic_0001>
module attributes {stable_mosaic.version = 11 : i64} {
  func.func @_fwd_kernel(%arg0: i32, %arg1: memref<2x4x16x16xf32, #tpu.memory_space<vmem>>, %arg2: memref<2x1x32x32xf32, #tpu.memory_space<vmem>>) attributes {dimension_semantics = [#tpu.dimension_semantics<arbitrary>], iteration_bounds = array<i64: 1>, scalar_prefetch = 0 : i64, scratch_operands = 0 : i64, tpu.core_type = #tpu.core_type<tc>, window_params = [{pipeline_mode = #tpu.pipeline_mode<synchronous>, transform_indices = @transform_0, window_bounds = array<i64: 2, 4, 16, 16>}, {pipeline_mode = #tpu.pipeline_mode<synchronous>, transform_indices = @transform_1, window_bounds = array<i64: 2, 1, 32, 32>}]} {
    %c0 = arith.constant 0 : index
    %c0_0 = arith.constant 0 : index
    %c0_1 = arith.constant 0 : index
    %c0_2 = arith.constant 0 : index
    %0 = vector.load %arg1[%c0, %c0_0, %c0_1, %c0_2] : memref<2x4x16x16xf32, #tpu.memory_space<vmem>>, vector<2x4x16x16xf32>
    %1 = tpu.iota {dimensions = array<i32: 0>} : vector<32x16xi32>
    %2 = tpu.iota {dimensions = array<i32: 1>} : vector<32x16xi32>
    %c2_i32 = arith.constant 2 : i32
    %3 = vector.broadcast %c2_i32 : i32 to vector<32x16xi32>
    %4 = arith.muli %3, %2 : vector<32x16xi32>
    %c0_i32 = arith.constant 0 : i32
    %5 = vector.broadcast %c0_i32 : i32 to vector<32x16xi32>
    %6 = arith.addi %4, %5 : vector<32x16xi32>
    %7 = arith.cmpi eq, %1, %6 : vector<32x16xi32>
    %8 = arith.extui %7 : vector<32x16xi1> to vector<32x16xi32>
    %9 = arith.sitofp %8 : vector<32x16xi32> to vector<32x16xf32>
    %10 = vector.shape_cast %9 : vector<32x16xf32> to vector<1x32x16xf32>
    %11 = vector.broadcast %10 : vector<1x32x16xf32> to vector<2x32x16xf32>
    %12 = tpu.iota {dimensions = array<i32: 0>} : vector<32x16xi32>
    %13 = tpu.iota {dimensions = array<i32: 1>} : vector<32x16xi32>
    %c2_i32_3 = arith.constant 2 : i32
    %14 = vector.broadcast %c2_i32_3 : i32 to vector<32x16xi32>
    %15 = arith.muli %14, %13 : vector<32x16xi32>
    %c1_i32 = arith.constant 1 : i32
    %16 = vector.broadcast %c1_i32 : i32 to vector<32x16xi32>
    %17 = arith.addi %15, %16 : vector<32x16xi32>
    %18 = arith.cmpi eq, %12, %17 : vector<32x16xi32>
    %19 = arith.extui %18 : vector<32x16xi1> to vector<32x16xi32>
    %20 = arith.sitofp %19 : vector<32x16xi32> to vector<32x16xf32>
    %21 = vector.shape_cast %20 : vector<32x16xf32> to vector<1x32x16xf32>
    %22 = vector.broadcast %21 : vector<1x32x16xf32> to vector<2x32x16xf32>
    %23 = tpu.iota {dimensions = array<i32: 0>} : vector<16x32xi32>
    %24 = tpu.iota {dimensions = array<i32: 1>} : vector<16x32xi32>
    %c2_i32_4 = arith.constant 2 : i32
    %25 = vector.broadcast %c2_i32_4 : i32 to vector<16x32xi32>
    %26 = arith.muli %25, %23 : vector<16x32xi32>
    %c0_i32_5 = arith.constant 0 : i32
    %27 = vector.broadcast %c0_i32_5 : i32 to vector<16x32xi32>
    %28 = arith.addi %26, %27 : vector<16x32xi32>
    %29 = arith.cmpi eq, %24, %28 : vector<16x32xi32>
    %30 = arith.extui %29 : vector<16x32xi1> to vector<16x32xi32>
    %31 = arith.sitofp %30 : vector<16x32xi32> to vector<16x32xf32>
    %32 = vector.shape_cast %31 : vector<16x32xf32> to vector<1x16x32xf32>
    %33 = vector.broadcast %32 : vector<1x16x32xf32> to vector<2x16x32xf32>
    %34 = tpu.iota {dimensions = array<i32: 0>} : vector<16x32xi32>
    %35 = tpu.iota {dimensions = array<i32: 1>} : vector<16x32xi32>
    %c2_i32_6 = arith.constant 2 : i32
    %36 = vector.broadcast %c2_i32_6 : i32 to vector<16x32xi32>
    %37 = arith.muli %36, %34 : vector<16x32xi32>
    %c1_i32_7 = arith.constant 1 : i32
    %38 = vector.broadcast %c1_i32_7 : i32 to vector<16x32xi32>
    %39 = arith.addi %37, %38 : vector<16x32xi32>
    %40 = arith.cmpi eq, %35, %39 : vector<16x32xi32>
    %41 = arith.extui %40 : vector<16x32xi1> to vector<16x32xi32>
    %42 = arith.sitofp %41 : vector<16x32xi32> to vector<16x32xf32>
    %43 = vector.shape_cast %42 : vector<16x32xf32> to vector<1x16x32xf32>
    %44 = vector.broadcast %43 : vector<1x16x32xf32> to vector<2x16x32xf32>
    %cst = arith.constant 0.000000e+00 : f32
    %45 = vector.broadcast %cst : f32 to vector<2x32x32xf32>
    %46 = vector.extract_strided_slice %0 {offsets = [0, 0, 0, 0], sizes = [2, 1, 16, 16], strides = [1, 1, 1, 1]} : vector<2x4x16x16xf32> to vector<2x1x16x16xf32>
    %47 = vector.shape_cast %46 : vector<2x1x16x16xf32> to vector<2x16x16xf32>
    "tpu.trace_start"() <{level = 10 : i32, message = "bhw,bwj->bhj"}> : () -> ()
    %cst_8 = arith.constant dense<0.000000e+00> : vector<2x16x32xf32>
    %48 = tpu.matmul %47, %33, %cst_8 {dimension_numbers = #tpu.dot_dimension_numbers<[2], [1], [1], [2], [0, 0, 0, 1, 1, 2], [0], [0]>, precision = #tpu.contract_precision<fp32>} : vector<2x16x16xf32>, vector<2x16x32xf32>, vector<2x16x32xf32> -> vector<2x16x32xf32>
    "tpu.trace_stop"() : () -> ()
    "tpu.trace_start"() <{level = 10 : i32, message = "bih,bhj->bij"}> : () -> ()
    %cst_9 = arith.constant dense<0.000000e+00> : vector<2x32x32xf32>
    %49 = tpu.matmul %11, %48, %cst_9 {dimension_numbers = #tpu.dot_dimension_numbers<[2], [1], [1], [2], [0, 0, 0, 1, 1, 2], [0], [0]>, precision = #tpu.contract_precision<fp32>} : vector<2x32x16xf32>, vector<2x16x32xf32>, vector<2x32x32xf32> -> vector<2x32x32xf32>
    "tpu.trace_stop"() : () -> ()
    %50 = arith.addf %45, %49 : vector<2x32x32xf32>
    %51 = vector.extract_strided_slice %0 {offsets = [0, 1, 0, 0], sizes = [2, 1, 16, 16], strides = [1, 1, 1, 1]} : vector<2x4x16x16xf32> to vector<2x1x16x16xf32>
    %52 = vector.shape_cast %51 : vector<2x1x16x16xf32> to vector<2x16x16xf32>
    "tpu.trace_start"() <{level = 10 : i32, message = "bhw,bwj->bhj"}> : () -> ()
    %cst_10 = arith.constant dense<0.000000e+00> : vector<2x16x32xf32>
    %53 = tpu.matmul %52, %44, %cst_10 {dimension_numbers = #tpu.dot_dimension_numbers<[2], [1], [1], [2], [0, 0, 0, 1, 1, 2], [0], [0]>, precision = #tpu.contract_precision<fp32>} : vector<2x16x16xf32>, vector<2x16x32xf32>, vector<2x16x32xf32> -> vector<2x16x32xf32>
    "tpu.trace_stop"() : () -> ()
    "tpu.trace_start"() <{level = 10 : i32, message = "bih,bhj->bij"}> : () -> ()
    %cst_11 = arith.constant dense<0.000000e+00> : vector<2x32x32xf32>
    %54 = tpu.matmul %11, %53, %cst_11 {dimension_numbers = #tpu.dot_dimension_numbers<[2], [1], [1], [2], [0, 0, 0, 1, 1, 2], [0], [0]>, precision = #tpu.contract_precision<fp32>} : vector<2x32x16xf32>, vector<2x16x32xf32>, vector<2x32x32xf32> -> vector<2x32x32xf32>
    "tpu.trace_stop"() : () -> ()
    %55 = arith.addf %50, %54 : vector<2x32x32xf32>
    %56 = vector.extract_strided_slice %0 {offsets = [0, 2, 0, 0], sizes = [2, 1, 16, 16], strides = [1, 1, 1, 1]} : vector<2x4x16x16xf32> to vector<2x1x16x16xf32>
    %57 = vector.shape_cast %56 : vector<2x1x16x16xf32> to vector<2x16x16xf32>
    "tpu.trace_start"() <{level = 10 : i32, message = "bhw,bwj->bhj"}> : () -> ()
    %cst_12 = arith.constant dense<0.000000e+00> : vector<2x16x32xf32>
    %58 = tpu.matmul %57, %33, %cst_12 {dimension_numbers = #tpu.dot_dimension_numbers<[2], [1], [1], [2], [0, 0, 0, 1, 1, 2], [0], [0]>, precision = #tpu.contract_precision<fp32>} : vector<2x16x16xf32>, vector<2x16x32xf32>, vector<2x16x32xf32> -> vector<2x16x32xf32>
    "tpu.trace_stop"() : () -> ()
    "tpu.trace_start"() <{level = 10 : i32, message = "bih,bhj->bij"}> : () -> ()
    %cst_13 = arith.constant dense<0.000000e+00> : vector<2x32x32xf32>
    %59 = tpu.matmul %22, %58, %cst_13 {dimension_numbers = #tpu.dot_dimension_numbers<[2], [1], [1], [2], [0, 0, 0, 1, 1, 2], [0], [0]>, precision = #tpu.contract_precision<fp32>} : vector<2x32x16xf32>, vector<2x16x32xf32>, vector<2x32x32xf32> -> vector<2x32x32xf32>
    "tpu.trace_stop"() : () -> ()
    %60 = arith.addf %55, %59 : vector<2x32x32xf32>
    %61 = vector.extract_strided_slice %0 {offsets = [0, 3, 0, 0], sizes = [2, 1, 16, 16], strides = [1, 1, 1, 1]} : vector<2x4x16x16xf32> to vector<2x1x16x16xf32>
    %62 = vector.shape_cast %61 : vector<2x1x16x16xf32> to vector<2x16x16xf32>
    "tpu.trace_start"() <{level = 10 : i32, message = "bhw,bwj->bhj"}> : () -> ()
    %cst_14 = arith.constant dense<0.000000e+00> : vector<2x16x32xf32>
    %63 = tpu.matmul %62, %44, %cst_14 {dimension_numbers = #tpu.dot_dimension_numbers<[2], [1], [1], [2], [0, 0, 0, 1, 1, 2], [0], [0]>, precision = #tpu.contract_precision<fp32>} : vector<2x16x16xf32>, vector<2x16x32xf32>, vector<2x16x32xf32> -> vector<2x16x32xf32>
    "tpu.trace_stop"() : () -> ()
    "tpu.trace_start"() <{level = 10 : i32, message = "bih,bhj->bij"}> : () -> ()
    %cst_15 = arith.constant dense<0.000000e+00> : vector<2x32x32xf32>
    %64 = tpu.matmul %22, %63, %cst_15 {dimension_numbers = #tpu.dot_dimension_numbers<[2], [1], [1], [2], [0, 0, 0, 1, 1, 2], [0], [0]>, precision = #tpu.contract_precision<fp32>} : vector<2x32x16xf32>, vector<2x16x32xf32>, vector<2x32x32xf32> -> vector<2x32x32xf32>
    "tpu.trace_stop"() : () -> ()
    %65 = arith.addf %60, %64 : vector<2x32x32xf32>
    %c0_16 = arith.constant 0 : index
    %c0_17 = arith.constant 0 : index
    %c0_18 = arith.constant 0 : index
    %c0_19 = arith.constant 0 : index
    %66 = vector.load %arg2[%c0_16, %c0_17, %c0_18, %c0_19] : memref<2x1x32x32xf32, #tpu.memory_space<vmem>>, vector<2x1x32x32xf32>
    %67 = vector.shape_cast %66 : vector<2x1x32x32xf32> to vector<2x32x32xf32>
    %68 = vector.shape_cast %65 : vector<2x32x32xf32> to vector<2x1x32x32xf32>
    tpu.vector_store %arg2[%c0_16, %c0_17, %c0_18, %c0_19], %68 {strides = array<i32>} : memref<2x1x32x32xf32, #tpu.memory_space<vmem>>, vector<2x1x32x32xf32>,
    return
  }
  func.func @transform_0(%arg0: i32) -> (i32, i32, i32, i32) {
    %c0_i32 = arith.constant 0 : i32
    %c0_i32_0 = arith.constant 0 : i32
    %c0_i32_1 = arith.constant 0 : i32
    %c0_i32_2 = arith.constant 0 : i32
    %c0_i32_3 = arith.constant 0 : i32
    return %c0_i32, %c0_i32_0, %c0_i32_1, %c0_i32_2 : i32, i32, i32, i32
  }
  func.func @transform_1(%arg0: i32) -> (i32, i32, i32, i32) {
    %c0_i32 = arith.constant 0 : i32
    %c0_i32_0 = arith.constant 0 : i32
    %c0_i32_1 = arith.constant 0 : i32
    %c0_i32_2 = arith.constant 0 : i32
    %c0_i32_3 = arith.constant 0 : i32
    return %c0_i32, %c0_i32_0, %c0_i32_1, %c0_i32_2 : i32, i32, i32, i32
  }
}

</mosaic_0001>

<llo_original>
// kernel: tpu_custom_call.1
$region0: #{tpu_custom_call.1}
  #allocation0 [shape = 'u32[]', space=smem, size = 0x4, offset = 0x4, fixed_abs, tag = 'smem constant byte address 0x4 - core index']
  #allocation1 [shape = 'u32[72,128]{1,0:T(1,128)}', space=vmem, size = 0x9000, scoped, tag = 'internal scratch']
  %s0 = inlined_call_operand.hbm [shape: f32[2,4,16,16], index: 0, kind: input, shape index: {}]
  %s1 = inlined_call_operand.hbm [shape: f32[2,1,32,32], index: 1, kind: output, shape index: {}]
  %s2 = sld [smem:[#allocation0]]
  $region18: #{tpu_custom_call.1} parent=0
    _
  %s4 = ssub.s32 1, %s2
  %s5 = scalar_select 0, %s4, %s2
  $region1: #{tpu_custom_call.1} parent=0
    #allocation2 [shape = 'u8[65536]{0}', space=vmem, size = 0x10000, scoped, tag = 'input window, operand 0, single buffered']
    #allocation3 [shape = 's32[1]{0}', space=sflag, size = 0x4, scoped, tag = 'scoped memory for tpu_custom_call.1']
    #allocation4 [shape = 's32[1]{0}', space=sflag, size = 0x4, scoped, tag = 'scoped memory for tpu_custom_call.1']
    #allocation5 [shape = 'u8[32768]{0}', space=vmem, size = 0x8000, scoped, tag = 'output window, operand 0, single buffered']
    %6 = vsyncpa [#allocation3], 0
    %7 = vsyncpa [#allocation4], 0
    // Predicated region
    $region2: #{tpu_custom_call.1} parent=1 // pred_check
      _
    $region3: #{tpu_custom_call.1} parent=1 // pred_check_branch
      %9 = sbr.rel (0) target = $region5
    $region4: #{tpu_custom_call.1} parent=1 // pred_region
      %11 = vsyncadd [#allocation3], 0
      %s12 = sshll.u32 %s0, 4
      %s13 = int_to_ptr.hbm [resolvable:$true] %s12
      %s14 = sshll.u32 [#allocation2], 4
      %s15 = int_to_ptr.vmem [resolvable:$true] %s14
      %20 = dma.hbm_to_vmem [thread:$0]  %s13, 2048, %s15, [#allocation3], 128, 128, 8
    $region5: #{tpu_custom_call.1} parent=1 // pred_fallthru
      _
    // Predicated region
    $region6: #{tpu_custom_call.1} parent=1 // pred_check
      _
    $region7: #{tpu_custom_call.1} parent=1 // pred_check_branch
      %22 = sbr.rel (0) target = $region9
    $region8: #{tpu_custom_call.1} parent=1 // pred_region
      %24 = dma.done [#allocation3], 2048
    $region9: #{tpu_custom_call.1} parent=1 // pred_fallthru
      _
    %v25 = vld [vmem:[#allocation2] sm:$0xff]
    %v26 = vld [vmem:[#allocation2 + $0x8] sm:$0xff]
    %v27 = vld [vmem:[#allocation2 + $0x10] sm:$0xff]
    %v28 = vld [vmem:[#allocation2 + $0x18] sm:$0xff]
    %v29 = vld [vmem:[#allocation2 + $0x20] sm:$0xff]
    %v30 = vld [vmem:[#allocation2 + $0x28] sm:$0xff]
    %v31 = vld [vmem:[#allocation2 + $0x30] sm:$0xff]
    %v32 = vld [vmem:[#allocation2 + $0x38] sm:$0xff]
    %v33 = vld [vmem:[#allocation2 + $0x40] sm:$0xff]
    %v34 = vld [vmem:[#allocation2 + $0x48] sm:$0xff]
    %v35 = vld [vmem:[#allocation2 + $0x50] sm:$0xff]
    %v36 = vld [vmem:[#allocation2 + $0x58] sm:$0xff]
    %v37 = vld [vmem:[#allocation2 + $0x60] sm:$0xff]
    %v38 = vld [vmem:[#allocation2 + $0x68] sm:$0xff]
    %v39 = vld [vmem:[#allocation2 + $0x70] sm:$0xff]
    %v40 = vld [vmem:[#allocation2 + $0x78] sm:$0xff]
    %v41 = vlaneseq
    %v42 = vshrl.u32 %v41, 7
    %v43 = vadd.s32 %v42, 8
    %v44 = vadd.s32 %v42, 16
    %v45 = vadd.s32 %v42, 24
    %v46 = vlaneseq
    %v47 = vand.u32 %v46, 127
    %v48 = vmul.u32 %v47, 2
    %vm49 = vcmp.eq.s32.totalorder %v42, %v48
    %vm50 = vcmp.eq.s32.totalorder %v43, %v48
    %vm51 = vcmp.eq.s32.totalorder %v44, %v48
    %vm52 = vcmp.eq.s32.totalorder %v45, %v48
    %v53 = vsel %vm49, 1, 0
    %v54 = vsel %vm50, 1, 0
    %v55 = vsel %vm51, 1, 0
    %v56 = vsel %vm52, 1, 0
    %v57 = vcvt.s32.f32 %v53
    %v58 = vcvt.s32.f32 %v54
    %v59 = vcvt.s32.f32 %v55
    %v60 = vcvt.s32.f32 %v56
    %v61 = vadd.s32 %v48, 1
    %vm62 = vcmp.eq.s32.totalorder %v42, %v61
    %vm63 = vcmp.eq.s32.totalorder %v43, %v61
    %vm64 = vcmp.eq.s32.totalorder %v44, %v61
    %vm65 = vcmp.eq.s32.totalorder %v45, %v61
    %v66 = vsel %vm62, 1, 0
    %v67 = vsel %vm63, 1, 0
    %v68 = vsel %vm64, 1, 0
    %v69 = vsel %vm65, 1, 0
    %v70 = vcvt.s32.f32 %v66
    %v71 = vcvt.s32.f32 %v67
    %v72 = vcvt.s32.f32 %v68
    %v73 = vcvt.s32.f32 %v69
    %v74 = vmul.u32 %v42, 2
    %v75 = vmul.u32 %v43, 2
    %vm76 = vcmp.eq.s32.totalorder %v47, %v74
    %vm77 = vcmp.eq.s32.totalorder %v47, %v75
    %v78 = vsel %vm76, 1, 0
    %v79 = vsel %vm77, 1, 0
    %v80 = vcvt.s32.f32 %v78
    %v81 = vcvt.s32.f32 %v79
    %v82 = vadd.s32 %v74, 1
    %v83 = vadd.s32 %v75, 1
    %vm84 = vcmp.eq.s32.totalorder %v47, %v82
    %vm85 = vcmp.eq.s32.totalorder %v47, %v83
    %v86 = vsel %vm84, 1, 0
    %v87 = vsel %vm85, 1, 0
    %v88 = vcvt.s32.f32 %v86
    %v89 = vcvt.s32.f32 %v87
    %vm90 = vcmask 130048
    %v92 = vsel %vm90, %v25, 0
    %v95 = vsel %vm90, %v26, 0
    %97 = vmatpush.msra.mxu0 0.0
    %98 = vmatpush.msra.mxu0 0.0
    %99 = vmatpush.msra.mxu0 0.0
    %100 = vmatpush.msra.mxu0 0.0
    %101 = vmatpush.msra.mxu0 0.0
    %102 = vmatpush.msra.mxu0 0.0
    %103 = vmatpush.msra.mxu0 0.0
    %104 = vmatpush.msra.mxu0 0.0
    %105 = vmatpush.msra.mxu0 0.0
    %106 = vmatpush.msra.mxu0 0.0
    %107 = vmatpush.msra.mxu0 0.0
    %108 = vmatpush.msra.mxu0 0.0
    %109 = vmatpush.msra.mxu0 0.0
    %110 = vmatpush.msra.mxu0 0.0
    %v111 = vand.u32 %v81, 4294901760
    %112 = vmatpush.msra.mxu0 %v111
    %v113 = vand.u32 %v80, 4294901760
    %114 = vmatpush.msra.mxu0 %v113
    %v115 = vand.u32 %v92, 4294901760
    %v116 = vsub.f32 %v92, %v115
    %v117 = vand.u32 %v116, 4294901760
    %v118 = vsub.f32 %v116, %v117
    %v119 = vand.u32 %v118, 4294901760
    %120 = vmatmul.f32.gmra.mxu0 %v119
    %v121 = vpop.f32.mrf.mxu0
    %v122 = vadd.f32 0.0, %v121
    %v123 = vand.u32 %v95, 4294901760
    %v124 = vsub.f32 %v95, %v123
    %v125 = vand.u32 %v124, 4294901760
    %v126 = vsub.f32 %v124, %v125
    %v127 = vand.u32 %v126, 4294901760
    %128 = vmatmul.f32.gmra.mxu0 %v127
    %v129 = vpop.f32.mrf.mxu0
    %v130 = vadd.f32 0.0, %v129
    %131 = vdwg.mxu0
    %132 = vmatpush.msra.mxu0 0.0
    %133 = vmatpush.msra.mxu0 0.0
    %134 = vmatpush.msra.mxu0 0.0
    %135 = vmatpush.msra.mxu0 0.0
    %136 = vmatpush.msra.mxu0 0.0
    %137 = vmatpush.msra.mxu0 0.0
    %138 = vmatpush.msra.mxu0 0.0
    %139 = vmatpush.msra.mxu0 0.0
    %140 = vmatpush.msra.mxu0 0.0
    %141 = vmatpush.msra.mxu0 0.0
    %142 = vmatpush.msra.mxu0 0.0
    %143 = vmatpush.msra.mxu0 0.0
    %144 = vmatpush.msra.mxu0 0.0
    %145 = vmatpush.msra.mxu0 0.0
    %v146 = vand.u32 %v81, 4294901760
    %v147 = vsub.f32 %v81, %v146
    %v148 = vand.u32 %v147, 4294901760
    %v149 = vsub.f32 %v147, %v148
    %v150 = vand.u32 %v149, 4294901760
    %151 = vmatpush.msra.mxu0 %v150
    %v152 = vand.u32 %v80, 4294901760
    %v153 = vsub.f32 %v80, %v152
    %v154 = vand.u32 %v153, 4294901760
    %v155 = vsub.f32 %v153, %v154
    %v156 = vand.u32 %v155, 4294901760
    %157 = vmatpush.msra.mxu0 %v156
    %v158 = vand.u32 %v92, 4294901760
    %159 = vmatmul.f32.gmra.mxu0 %v158
    %v160 = vpop.f32.mrf.mxu0
    %v161 = vadd.f32 %v122, %v160
    %v162 = vand.u32 %v95, 4294901760
    %163 = vmatmul.f32.gmra.mxu0 %v162
    %v164 = vpop.f32.mrf.mxu0
    %v165 = vadd.f32 %v130, %v164
    %166 = vdwg.mxu0
    %167 = vmatpush.msra.mxu0 0.0
    %168 = vmatpush.msra.mxu0 0.0
    %169 = vmatpush.msra.mxu0 0.0
    %170 = vmatpush.msra.mxu0 0.0
    %171 = vmatpush.msra.mxu0 0.0
    %172 = vmatpush.msra.mxu0 0.0
    %173 = vmatpush.msra.mxu0 0.0
    %174 = vmatpush.msra.mxu0 0.0
    %175 = vmatpush.msra.mxu0 0.0
    %176 = vmatpush.msra.mxu0 0.0
    %177 = vmatpush.msra.mxu0 0.0
    %178 = vmatpush.msra.mxu0 0.0
    %179 = vmatpush.msra.mxu0 0.0
    %180 = vmatpush.msra.mxu0 0.0
    %v181 = vand.u32 %v81, 4294901760
    %v182 = vsub.f32 %v81, %v181
    %183 = vmatpush.msra.mxu0 %v182
    %v184 = vand.u32 %v80, 4294901760
    %v185 = vsub.f32 %v80, %v184
    %186 = vmatpush.msra.mxu0 %v185
    %v187 = vand.u32 %v92, 4294901760
    %v188 = vsub.f32 %v92, %v187
    %189 = vmatmul.f32.gmra.mxu0 %v188
    %v190 = vpop.f32.mrf.mxu0
    %v191 = vadd.f32 %v161, %v190
    %v192 = vand.u32 %v95, 4294901760
    %v193 = vsub.f32 %v95, %v192
    %194 = vmatmul.f32.gmra.mxu0 %v193
    %v195 = vpop.f32.mrf.mxu0
    %v196 = vadd.f32 %v165, %v195
    %197 = vdwg.mxu0
    %198 = vmatpush.msra.mxu0 0.0
    %199 = vmatpush.msra.mxu0 0.0
    %200 = vmatpush.msra.mxu0 0.0
    %201 = vmatpush.msra.mxu0 0.0
    %202 = vmatpush.msra.mxu0 0.0
    %203 = vmatpush.msra.mxu0 0.0
    %204 = vmatpush.msra.mxu0 0.0
    %205 = vmatpush.msra.mxu0 0.0
    %206 = vmatpush.msra.mxu0 0.0
    %207 = vmatpush.msra.mxu0 0.0
    %208 = vmatpush.msra.mxu0 0.0
    %209 = vmatpush.msra.mxu0 0.0
    %210 = vmatpush.msra.mxu0 0.0
    %211 = vmatpush.msra.mxu0 0.0
    %v212 = vand.u32 %v81, 4294901760
    %213 = vmatpush.msra.mxu0 %v212
    %v214 = vand.u32 %v80, 4294901760
    %215 = vmatpush.msra.mxu0 %v214
    %v216 = vand.u32 %v92, 4294901760
    %v217 = vsub.f32 %v92, %v216
    %v218 = vand.u32 %v217, 4294901760
    %219 = vmatmul.f32.gmra.mxu0 %v218
    %v220 = vpop.f32.mrf.mxu0
    %v221 = vadd.f32 %v191, %v220
    %v222 = vand.u32 %v95, 4294901760
    %v223 = vsub.f32 %v95, %v222
    %v224 = vand.u32 %v223, 4294901760
    %225 = vmatmul.f32.gmra.mxu0 %v224
    %v226 = vpop.f32.mrf.mxu0
    %v227 = vadd.f32 %v196, %v226
    %228 = vdwg.mxu0
    %229 = vmatpush.msra.mxu0 0.0
    %230 = vmatpush.msra.mxu0 0.0
    %231 = vmatpush.msra.mxu0 0.0
    %232 = vmatpush.msra.mxu0 0.0
    %233 = vmatpush.msra.mxu0 0.0
    %234 = vmatpush.msra.mxu0 0.0
    %235 = vmatpush.msra.mxu0 0.0
    %236 = vmatpush.msra.mxu0 0.0
    %237 = vmatpush.msra.mxu0 0.0
    %238 = vmatpush.msra.mxu0 0.0
    %239 = vmatpush.msra.mxu0 0.0
    %240 = vmatpush.msra.mxu0 0.0
    %241 = vmatpush.msra.mxu0 0.0
    %242 = vmatpush.msra.mxu0 0.0
    %v243 = vand.u32 %v81, 4294901760
    %v244 = vsub.f32 %v81, %v243
    %v245 = vand.u32 %v244, 4294901760
    %246 = vmatpush.msra.mxu0 %v245
    %v247 = vand.u32 %v80, 4294901760
    %v248 = vsub.f32 %v80, %v247
    %v249 = vand.u32 %v248, 4294901760
    %250 = vmatpush.msra.mxu0 %v249
    %v251 = vand.u32 %v92, 4294901760
    %252 = vmatmul.f32.gmra.mxu0 %v251
    %v253 = vpop.f32.mrf.mxu0
    %v254 = vadd.f32 %v221, %v253
    %v255 = vand.u32 %v95, 4294901760
    %256 = vmatmul.f32.gmra.mxu0 %v255
    %v257 = vpop.f32.mrf.mxu0
    %v258 = vadd.f32 %v227, %v257
    %259 = vdwg.mxu0
    %260 = vmatpush.msra.mxu0 0.0
    %261 = vmatpush.msra.mxu0 0.0
    %262 = vmatpush.msra.mxu0 0.0
    %263 = vmatpush.msra.mxu0 0.0
    %264 = vmatpush.msra.mxu0 0.0
    %265 = vmatpush.msra.mxu0 0.0
    %266 = vmatpush.msra.mxu0 0.0
    %267 = vmatpush.msra.mxu0 0.0
    %268 = vmatpush.msra.mxu0 0.0
    %269 = vmatpush.msra.mxu0 0.0
    %270 = vmatpush.msra.mxu0 0.0
    %271 = vmatpush.msra.mxu0 0.0
    %272 = vmatpush.msra.mxu0 0.0
    %273 = vmatpush.msra.mxu0 0.0
    %v274 = vand.u32 %v81, 4294901760
    %275 = vmatpush.msra.mxu0 %v274
    %v276 = vand.u32 %v80, 4294901760
    %277 = vmatpush.msra.mxu0 %v276
    %v278 = vand.u32 %v92, 4294901760
    %279 = vmatmul.f32.gmra.mxu0 %v278
    %v280 = vpop.f32.mrf.mxu0
    %v281 = vadd.f32 %v254, %v280
    %v282 = vand.u32 %v95, 4294901760
    %283 = vmatmul.f32.gmra.mxu0 %v282
    %v284 = vpop.f32.mrf.mxu0
    %v285 = vadd.f32 %v258, %v284
    %286 = vdwg.mxu0
    %v288 = vsel %vm90, %v33, 0
    %v291 = vsel %vm90, %v34, 0
    %293 = vmatpush.msra.mxu0 0.0
    %294 = vmatpush.msra.mxu0 0.0
    %295 = vmatpush.msra.mxu0 0.0
    %296 = vmatpush.msra.mxu0 0.0
    %297 = vmatpush.msra.mxu0 0.0
    %298 = vmatpush.msra.mxu0 0.0
    %299 = vmatpush.msra.mxu0 0.0
    %300 = vmatpush.msra.mxu0 0.0
    %301 = vmatpush.msra.mxu0 0.0
    %302 = vmatpush.msra.mxu0 0.0
    %303 = vmatpush.msra.mxu0 0.0
    %304 = vmatpush.msra.mxu0 0.0
    %305 = vmatpush.msra.mxu0 0.0
    %306 = vmatpush.msra.mxu0 0.0
    %v307 = vand.u32 %v81, 4294901760
    %308 = vmatpush.msra.mxu0 %v307
    %v309 = vand.u32 %v80, 4294901760
    %310 = vmatpush.msra.mxu0 %v309
    %v311 = vand.u32 %v288, 4294901760
    %v312 = vsub.f32 %v288, %v311
    %v313 = vand.u32 %v312, 4294901760
    %v314 = vsub.f32 %v312, %v313
    %v315 = vand.u32 %v314, 4294901760
    %316 = vmatmul.f32.gmra.mxu0 %v315
    %v317 = vpop.f32.mrf.mxu0
    %v318 = vadd.f32 0.0, %v317
    %v319 = vand.u32 %v291, 4294901760
    %v320 = vsub.f32 %v291, %v319
    %v321 = vand.u32 %v320, 4294901760
    %v322 = vsub.f32 %v320, %v321
    %v323 = vand.u32 %v322, 4294901760
    %324 = vmatmul.f32.gmra.mxu0 %v323
    %v325 = vpop.f32.mrf.mxu0
    %v326 = vadd.f32 0.0, %v325
    %327 = vdwg.mxu0
    %328 = vmatpush.msra.mxu0 0.0
    %329 = vmatpush.msra.mxu0 0.0
    %330 = vmatpush.msra.mxu0 0.0
    %331 = vmatpush.msra.mxu0 0.0
    %332 = vmatpush.msra.mxu0 0.0
    %333 = vmatpush.msra.mxu0 0.0
    %334 = vmatpush.msra.mxu0 0.0
    %335 = vmatpush.msra.mxu0 0.0
    %336 = vmatpush.msra.mxu0 0.0
    %337 = vmatpush.msra.mxu0 0.0
    %338 = vmatpush.msra.mxu0 0.0
    %339 = vmatpush.msra.mxu0 0.0
    %340 = vmatpush.msra.mxu0 0.0
    %341 = vmatpush.msra.mxu0 0.0
    %v342 = vand.u32 %v81, 4294901760
    %v343 = vsub.f32 %v81, %v342
    %v344 = vand.u32 %v343, 4294901760
    %v345 = vsub.f32 %v343, %v344
    %v346 = vand.u32 %v345, 4294901760
    %347 = vmatpush.msra.mxu0 %v346
    %v348 = vand.u32 %v80, 4294901760
    %v349 = vsub.f32 %v80, %v348
    %v350 = vand.u32 %v349, 4294901760
    %v351 = vsub.f32 %v349, %v350
    %v352 = vand.u32 %v351, 4294901760
    %353 = vmatpush.msra.mxu0 %v352
    %v354 = vand.u32 %v288, 4294901760
    %355 = vmatmul.f32.gmra.mxu0 %v354
    %v356 = vpop.f32.mrf.mxu0
    %v357 = vadd.f32 %v318, %v356
    %v358 = vand.u32 %v291, 4294901760
    %359 = vmatmul.f32.gmra.mxu0 %v358
    %v360 = vpop.f32.mrf.mxu0
    %v361 = vadd.f32 %v326, %v360
    %362 = vdwg.mxu0
    %363 = vmatpush.msra.mxu0 0.0
    %364 = vmatpush.msra.mxu0 0.0
    %365 = vmatpush.msra.mxu0 0.0
    %366 = vmatpush.msra.mxu0 0.0
    %367 = vmatpush.msra.mxu0 0.0
    %368 = vmatpush.msra.mxu0 0.0
    %369 = vmatpush.msra.mxu0 0.0
    %370 = vmatpush.msra.mxu0 0.0
    %371 = vmatpush.msra.mxu0 0.0
    %372 = vmatpush.msra.mxu0 0.0
    %373 = vmatpush.msra.mxu0 0.0
    %374 = vmatpush.msra.mxu0 0.0
    %375 = vmatpush.msra.mxu0 0.0
    %376 = vmatpush.msra.mxu0 0.0
    %v377 = vand.u32 %v81, 4294901760
    %v378 = vsub.f32 %v81, %v377
    %379 = vmatpush.msra.mxu0 %v378
    %v380 = vand.u32 %v80, 4294901760
    %v381 = vsub.f32 %v80, %v380
    %382 = vmatpush.msra.mxu0 %v381
    %v383 = vand.u32 %v288, 4294901760
    %v384 = vsub.f32 %v288, %v383
    %385 = vmatmul.f32.gmra.mxu0 %v384
    %v386 = vpop.f32.mrf.mxu0
    %v387 = vadd.f32 %v357, %v386
    %v388 = vand.u32 %v291, 4294901760
    %v389 = vsub.f32 %v291, %v388
    %390 = vmatmul.f32.gmra.mxu0 %v389
    %v391 = vpop.f32.mrf.mxu0
    %v392 = vadd.f32 %v361, %v391
    %393 = vdwg.mxu0
    %394 = vmatpush.msra.mxu0 0.0
    %395 = vmatpush.msra.mxu0 0.0
    %396 = vmatpush.msra.mxu0 0.0
    %397 = vmatpush.msra.mxu0 0.0
    %398 = vmatpush.msra.mxu0 0.0
    %399 = vmatpush.msra.mxu0 0.0
    %400 = vmatpush.msra.mxu0 0.0
    %401 = vmatpush.msra.mxu0 0.0
    %402 = vmatpush.msra.mxu0 0.0
    %403 = vmatpush.msra.mxu0 0.0
    %404 = vmatpush.msra.mxu0 0.0
    %405 = vmatpush.msra.mxu0 0.0
    %406 = vmatpush.msra.mxu0 0.0
    %407 = vmatpush.msra.mxu0 0.0
    %v408 = vand.u32 %v81, 4294901760
    %409 = vmatpush.msra.mxu0 %v408
    %v410 = vand.u32 %v80, 4294901760
    %411 = vmatpush.msra.mxu0 %v410
    %v412 = vand.u32 %v288, 4294901760
    %v413 = vsub.f32 %v288, %v412
    %v414 = vand.u32 %v413, 4294901760
    %415 = vmatmul.f32.gmra.mxu0 %v414
    %v416 = vpop.f32.mrf.mxu0
    %v417 = vadd.f32 %v387, %v416
    %v418 = vand.u32 %v291, 4294901760
    %v419 = vsub.f32 %v291, %v418
    %v420 = vand.u32 %v419, 4294901760
    %421 = vmatmul.f32.gmra.mxu0 %v420
    %v422 = vpop.f32.mrf.mxu0
    %v423 = vadd.f32 %v392, %v422
    %424 = vdwg.mxu0
    %425 = vmatpush.msra.mxu0 0.0
    %426 = vmatpush.msra.mxu0 0.0
    %427 = vmatpush.msra.mxu0 0.0
    %428 = vmatpush.msra.mxu0 0.0
    %429 = vmatpush.msra.mxu0 0.0
    %430 = vmatpush.msra.mxu0 0.0
    %431 = vmatpush.msra.mxu0 0.0
    %432 = vmatpush.msra.mxu0 0.0
    %433 = vmatpush.msra.mxu0 0.0
    %434 = vmatpush.msra.mxu0 0.0
    %435 = vmatpush.msra.mxu0 0.0
    %436 = vmatpush.msra.mxu0 0.0
    %437 = vmatpush.msra.mxu0 0.0
    %438 = vmatpush.msra.mxu0 0.0
    %v439 = vand.u32 %v81, 4294901760
    %v440 = vsub.f32 %v81, %v439
    %v441 = vand.u32 %v440, 4294901760
    %442 = vmatpush.msra.mxu0 %v441
    %v443 = vand.u32 %v80, 4294901760
    %v444 = vsub.f32 %v80, %v443
    %v445 = vand.u32 %v444, 4294901760
    %446 = vmatpush.msra.mxu0 %v445
    %v447 = vand.u32 %v288, 4294901760
    %448 = vmatmul.f32.gmra.mxu0 %v447
    %v449 = vpop.f32.mrf.mxu0
    %v450 = vadd.f32 %v417, %v449
    %v451 = vand.u32 %v291, 4294901760
    %452 = vmatmul.f32.gmra.mxu0 %v451
    %v453 = vpop.f32.mrf.mxu0
    %v454 = vadd.f32 %v423, %v453
    %455 = vdwg.mxu0
    %456 = vmatpush.msra.mxu0 0.0
    %457 = vmatpush.msra.mxu0 0.0
    %458 = vmatpush.msra.mxu0 0.0
    %459 = vmatpush.msra.mxu0 0.0
    %460 = vmatpush.msra.mxu0 0.0
    %461 = vmatpush.msra.mxu0 0.0
    %462 = vmatpush.msra.mxu0 0.0
    %463 = vmatpush.msra.mxu0 0.0
    %464 = vmatpush.msra.mxu0 0.0
    %465 = vmatpush.msra.mxu0 0.0
    %466 = vmatpush.msra.mxu0 0.0
    %467 = vmatpush.msra.mxu0 0.0
    %468 = vmatpush.msra.mxu0 0.0
    %469 = vmatpush.msra.mxu0 0.0
    %v470 = vand.u32 %v81, 4294901760
    %471 = vmatpush.msra.mxu0 %v470
    %v472 = vand.u32 %v80, 4294901760
    %473 = vmatpush.msra.mxu0 %v472
    %v474 = vand.u32 %v288, 4294901760
    %475 = vmatmul.f32.gmra.mxu0 %v474
    %v476 = vpop.f32.mrf.mxu0
    %v477 = vadd.f32 %v450, %v476
    %v478 = vand.u32 %v291, 4294901760
    %479 = vmatmul.f32.gmra.mxu0 %v478
    %v480 = vpop.f32.mrf.mxu0
    %v481 = vadd.f32 %v454, %v480
    %482 = vdwg.mxu0
    %v484 = vsel %vm90, %v27, 0
    %v487 = vsel %vm90, %v28, 0
    %489 = vmatpush.msra.mxu0 0.0
    %490 = vmatpush.msra.mxu0 0.0
    %491 = vmatpush.msra.mxu0 0.0
    %492 = vmatpush.msra.mxu0 0.0
    %493 = vmatpush.msra.mxu0 0.0
    %494 = vmatpush.msra.mxu0 0.0
    %495 = vmatpush.msra.mxu0 0.0
    %496 = vmatpush.msra.mxu0 0.0
    %497 = vmatpush.msra.mxu0 0.0
    %498 = vmatpush.msra.mxu0 0.0
    %499 = vmatpush.msra.mxu0 0.0
    %500 = vmatpush.msra.mxu0 0.0
    %501 = vmatpush.msra.mxu0 0.0
    %502 = vmatpush.msra.mxu0 0.0
    %v503 = vand.u32 %v89, 4294901760
    %504 = vmatpush.msra.mxu0 %v503
    %v505 = vand.u32 %v88, 4294901760
    %506 = vmatpush.msra.mxu0 %v505
    %v507 = vand.u32 %v484, 4294901760
    %v508 = vsub.f32 %v484, %v507
    %v509 = vand.u32 %v508, 4294901760
    %v510 = vsub.f32 %v508, %v509
    %v511 = vand.u32 %v510, 4294901760
    %512 = vmatmul.f32.gmra.mxu0 %v511
    %v513 = vpop.f32.mrf.mxu0
    %v514 = vadd.f32 0.0, %v513
    %v515 = vand.u32 %v487, 4294901760
    %v516 = vsub.f32 %v487, %v515
    %v517 = vand.u32 %v516, 4294901760
    %v518 = vsub.f32 %v516, %v517
    %v519 = vand.u32 %v518, 4294901760
    %520 = vmatmul.f32.gmra.mxu0 %v519
    %v521 = vpop.f32.mrf.mxu0
    %v522 = vadd.f32 0.0, %v521
    %523 = vdwg.mxu0
    %524 = vmatpush.msra.mxu0 0.0
    %525 = vmatpush.msra.mxu0 0.0
    %526 = vmatpush.msra.mxu0 0.0
    %527 = vmatpush.msra.mxu0 0.0
    %528 = vmatpush.msra.mxu0 0.0
    %529 = vmatpush.msra.mxu0 0.0
    %530 = vmatpush.msra.mxu0 0.0
    %531 = vmatpush.msra.mxu0 0.0
    %532 = vmatpush.msra.mxu0 0.0
    %533 = vmatpush.msra.mxu0 0.0
    %534 = vmatpush.msra.mxu0 0.0
    %535 = vmatpush.msra.mxu0 0.0
    %536 = vmatpush.msra.mxu0 0.0
    %537 = vmatpush.msra.mxu0 0.0
    %v538 = vand.u32 %v89, 4294901760
    %v539 = vsub.f32 %v89, %v538
    %v540 = vand.u32 %v539, 4294901760
    %v541 = vsub.f32 %v539, %v540
    %v542 = vand.u32 %v541, 4294901760
    %543 = vmatpush.msra.mxu0 %v542
    %v544 = vand.u32 %v88, 4294901760
    %v545 = vsub.f32 %v88, %v544
    %v546 = vand.u32 %v545, 4294901760
    %v547 = vsub.f32 %v545, %v546
    %v548 = vand.u32 %v547, 4294901760
    %549 = vmatpush.msra.mxu0 %v548
    %v550 = vand.u32 %v484, 4294901760
    %551 = vmatmul.f32.gmra.mxu0 %v550
    %v552 = vpop.f32.mrf.mxu0
    %v553 = vadd.f32 %v514, %v552
    %v554 = vand.u32 %v487, 4294901760
    %555 = vmatmul.f32.gmra.mxu0 %v554
    %v556 = vpop.f32.mrf.mxu0
    %v557 = vadd.f32 %v522, %v556
    %558 = vdwg.mxu0
    %559 = vmatpush.msra.mxu0 0.0
    %560 = vmatpush.msra.mxu0 0.0
    %561 = vmatpush.msra.mxu0 0.0
    %562 = vmatpush.msra.mxu0 0.0
    %563 = vmatpush.msra.mxu0 0.0
    %564 = vmatpush.msra.mxu0 0.0
    %565 = vmatpush.msra.mxu0 0.0
    %566 = vmatpush.msra.mxu0 0.0
    %567 = vmatpush.msra.mxu0 0.0
    %568 = vmatpush.msra.mxu0 0.0
    %569 = vmatpush.msra.mxu0 0.0
    %570 = vmatpush.msra.mxu0 0.0
    %571 = vmatpush.msra.mxu0 0.0
    %572 = vmatpush.msra.mxu0 0.0
    %v573 = vand.u32 %v89, 4294901760
    %v574 = vsub.f32 %v89, %v573
    %575 = vmatpush.msra.mxu0 %v574
    %v576 = vand.u32 %v88, 4294901760
    %v577 = vsub.f32 %v88, %v576
    %578 = vmatpush.msra.mxu0 %v577
    %v579 = vand.u32 %v484, 4294901760
    %v580 = vsub.f32 %v484, %v579
    %581 = vmatmul.f32.gmra.mxu0 %v580
    %v582 = vpop.f32.mrf.mxu0
    %v583 = vadd.f32 %v553, %v582
    %v584 = vand.u32 %v487, 4294901760
    %v585 = vsub.f32 %v487, %v584
    %586 = vmatmul.f32.gmra.mxu0 %v585
    %v587 = vpop.f32.mrf.mxu0
    %v588 = vadd.f32 %v557, %v587
    %589 = vdwg.mxu0
    %590 = vmatpush.msra.mxu0 0.0
    %591 = vmatpush.msra.mxu0 0.0
    %592 = vmatpush.msra.mxu0 0.0
    %593 = vmatpush.msra.mxu0 0.0
    %594 = vmatpush.msra.mxu0 0.0
    %595 = vmatpush.msra.mxu0 0.0
    %596 = vmatpush.msra.mxu0 0.0
    %597 = vmatpush.msra.mxu0 0.0
    %598 = vmatpush.msra.mxu0 0.0
    %599 = vmatpush.msra.mxu0 0.0
    %600 = vmatpush.msra.mxu0 0.0
    %601 = vmatpush.msra.mxu0 0.0
    %602 = vmatpush.msra.mxu0 0.0
    %603 = vmatpush.msra.mxu0 0.0
    %v604 = vand.u32 %v89, 4294901760
    %605 = vmatpush.msra.mxu0 %v604
    %v606 = vand.u32 %v88, 4294901760
    %607 = vmatpush.msra.mxu0 %v606
    %v608 = vand.u32 %v484, 4294901760
    %v609 = vsub.f32 %v484, %v608
    %v610 = vand.u32 %v609, 4294901760
    %611 = vmatmul.f32.gmra.mxu0 %v610
    %v612 = vpop.f32.mrf.mxu0
    %v613 = vadd.f32 %v583, %v612
    %v614 = vand.u32 %v487, 4294901760
    %v615 = vsub.f32 %v487, %v614
    %v616 = vand.u32 %v615, 4294901760
    %617 = vmatmul.f32.gmra.mxu0 %v616
    %v618 = vpop.f32.mrf.mxu0
    %v619 = vadd.f32 %v588, %v618
    %620 = vdwg.mxu0
    %621 = vmatpush.msra.mxu0 0.0
    %622 = vmatpush.msra.mxu0 0.0
    %623 = vmatpush.msra.mxu0 0.0
    %624 = vmatpush.msra.mxu0 0.0
    %625 = vmatpush.msra.mxu0 0.0
    %626 = vmatpush.msra.mxu0 0.0
    %627 = vmatpush.msra.mxu0 0.0
    %628 = vmatpush.msra.mxu0 0.0
    %629 = vmatpush.msra.mxu0 0.0
    %630 = vmatpush.msra.mxu0 0.0
    %631 = vmatpush.msra.mxu0 0.0
    %632 = vmatpush.msra.mxu0 0.0
    %633 = vmatpush.msra.mxu0 0.0
    %634 = vmatpush.msra.mxu0 0.0
    %v635 = vand.u32 %v89, 4294901760
    %v636 = vsub.f32 %v89, %v635
    %v637 = vand.u32 %v636, 4294901760
    %638 = vmatpush.msra.mxu0 %v637
    %v639 = vand.u32 %v88, 4294901760
    %v640 = vsub.f32 %v88, %v639
    %v641 = vand.u32 %v640, 4294901760
    %642 = vmatpush.msra.mxu0 %v641
    %v643 = vand.u32 %v484, 4294901760
    %644 = vmatmul.f32.gmra.mxu0 %v643
    %v645 = vpop.f32.mrf.mxu0
    %v646 = vadd.f32 %v613, %v645
    %v647 = vand.u32 %v487, 4294901760
    %648 = vmatmul.f32.gmra.mxu0 %v647
    %v649 = vpop.f32.mrf.mxu0
    %v650 = vadd.f32 %v619, %v649
    %651 = vdwg.mxu0
    %652 = vmatpush.msra.mxu0 0.0
    %653 = vmatpush.msra.mxu0 0.0
    %654 = vmatpush.msra.mxu0 0.0
    %655 = vmatpush.msra.mxu0 0.0
    %656 = vmatpush.msra.mxu0 0.0
    %657 = vmatpush.msra.mxu0 0.0
    %658 = vmatpush.msra.mxu0 0.0
    %659 = vmatpush.msra.mxu0 0.0
    %660 = vmatpush.msra.mxu0 0.0
    %661 = vmatpush.msra.mxu0 0.0
    %662 = vmatpush.msra.mxu0 0.0
    %663 = vmatpush.msra.mxu0 0.0
    %664 = vmatpush.msra.mxu0 0.0
    %665 = vmatpush.msra.mxu0 0.0
    %v666 = vand.u32 %v89, 4294901760
    %667 = vmatpush.msra.mxu0 %v666
    %v668 = vand.u32 %v88, 4294901760
    %669 = vmatpush.msra.mxu0 %v668
    %v670 = vand.u32 %v484, 4294901760
    %671 = vmatmul.f32.gmra.mxu0 %v670
    %v672 = vpop.f32.mrf.mxu0
    %v673 = vadd.f32 %v646, %v672
    %v674 = vand.u32 %v487, 4294901760
    %675 = vmatmul.f32.gmra.mxu0 %v674
    %v676 = vpop.f32.mrf.mxu0
    %v677 = vadd.f32 %v650, %v676
    %678 = vdwg.mxu0
    %v680 = vsel %vm90, %v35, 0
    %v683 = vsel %vm90, %v36, 0
    %685 = vmatpush.msra.mxu0 0.0
    %686 = vmatpush.msra.mxu0 0.0
    %687 = vmatpush.msra.mxu0 0.0
    %688 = vmatpush.msra.mxu0 0.0
    %689 = vmatpush.msra.mxu0 0.0
    %690 = vmatpush.msra.mxu0 0.0
    %691 = vmatpush.msra.mxu0 0.0
    %692 = vmatpush.msra.mxu0 0.0
    %693 = vmatpush.msra.mxu0 0.0
    %694 = vmatpush.msra.mxu0 0.0
    %695 = vmatpush.msra.mxu0 0.0
    %696 = vmatpush.msra.mxu0 0.0
    %697 = vmatpush.msra.mxu0 0.0
    %698 = vmatpush.msra.mxu0 0.0
    %v699 = vand.u32 %v89, 4294901760
    %700 = vmatpush.msra.mxu0 %v699
    %v701 = vand.u32 %v88, 4294901760
    %702 = vmatpush.msra.mxu0 %v701
    %v703 = vand.u32 %v680, 4294901760
    %v704 = vsub.f32 %v680, %v703
    %v705 = vand.u32 %v704, 4294901760
    %v706 = vsub.f32 %v704, %v705
    %v707 = vand.u32 %v706, 4294901760
    %708 = vmatmul.f32.gmra.mxu0 %v707
    %v709 = vpop.f32.mrf.mxu0
    %v710 = vadd.f32 0.0, %v709
    %v711 = vand.u32 %v683, 4294901760
    %v712 = vsub.f32 %v683, %v711
    %v713 = vand.u32 %v712, 4294901760
    %v714 = vsub.f32 %v712, %v713
    %v715 = vand.u32 %v714, 4294901760
    %716 = vmatmul.f32.gmra.mxu0 %v715
    %v717 = vpop.f32.mrf.mxu0
    %v718 = vadd.f32 0.0, %v717
    %719 = vdwg.mxu0
    %720 = vmatpush.msra.mxu0 0.0
    %721 = vmatpush.msra.mxu0 0.0
    %722 = vmatpush.msra.mxu0 0.0
    %723 = vmatpush.msra.mxu0 0.0
    %724 = vmatpush.msra.mxu0 0.0
    %725 = vmatpush.msra.mxu0 0.0
    %726 = vmatpush.msra.mxu0 0.0
    %727 = vmatpush.msra.mxu0 0.0
    %728 = vmatpush.msra.mxu0 0.0
    %729 = vmatpush.msra.mxu0 0.0
    %730 = vmatpush.msra.mxu0 0.0
    %731 = vmatpush.msra.mxu0 0.0
    %732 = vmatpush.msra.mxu0 0.0
    %733 = vmatpush.msra.mxu0 0.0
    %v734 = vand.u32 %v89, 4294901760
    %v735 = vsub.f32 %v89, %v734
    %v736 = vand.u32 %v735, 4294901760
    %v737 = vsub.f32 %v735, %v736
    %v738 = vand.u32 %v737, 4294901760
    %739 = vmatpush.msra.mxu0 %v738
    %v740 = vand.u32 %v88, 4294901760
    %v741 = vsub.f32 %v88, %v740
    %v742 = vand.u32 %v741, 4294901760
    %v743 = vsub.f32 %v741, %v742
    %v744 = vand.u32 %v743, 4294901760
    %745 = vmatpush.msra.mxu0 %v744
    %v746 = vand.u32 %v680, 4294901760
    %747 = vmatmul.f32.gmra.mxu0 %v746
    %v748 = vpop.f32.mrf.mxu0
    %v749 = vadd.f32 %v710, %v748
    %v750 = vand.u32 %v683, 4294901760
    %751 = vmatmul.f32.gmra.mxu0 %v750
    %v752 = vpop.f32.mrf.mxu0
    %v753 = vadd.f32 %v718, %v752
    %754 = vdwg.mxu0
    %755 = vmatpush.msra.mxu0 0.0
    %756 = vmatpush.msra.mxu0 0.0
    %757 = vmatpush.msra.mxu0 0.0
    %758 = vmatpush.msra.mxu0 0.0
    %759 = vmatpush.msra.mxu0 0.0
    %760 = vmatpush.msra.mxu0 0.0
    %761 = vmatpush.msra.mxu0 0.0
    %762 = vmatpush.msra.mxu0 0.0
    %763 = vmatpush.msra.mxu0 0.0
    %764 = vmatpush.msra.mxu0 0.0
    %765 = vmatpush.msra.mxu0 0.0
    %766 = vmatpush.msra.mxu0 0.0
    %767 = vmatpush.msra.mxu0 0.0
    %768 = vmatpush.msra.mxu0 0.0
    %v769 = vand.u32 %v89, 4294901760
    %v770 = vsub.f32 %v89, %v769
    %771 = vmatpush.msra.mxu0 %v770
    %v772 = vand.u32 %v88, 4294901760
    %v773 = vsub.f32 %v88, %v772
    %774 = vmatpush.msra.mxu0 %v773
    %v775 = vand.u32 %v680, 4294901760
    %v776 = vsub.f32 %v680, %v775
    %777 = vmatmul.f32.gmra.mxu0 %v776
    %v778 = vpop.f32.mrf.mxu0
    %v779 = vadd.f32 %v749, %v778
    %v780 = vand.u32 %v683, 4294901760
    %v781 = vsub.f32 %v683, %v780
    %782 = vmatmul.f32.gmra.mxu0 %v781
    %v783 = vpop.f32.mrf.mxu0
    %v784 = vadd.f32 %v753, %v783
    %785 = vdwg.mxu0
    %786 = vmatpush.msra.mxu0 0.0
    %787 = vmatpush.msra.mxu0 0.0
    %788 = vmatpush.msra.mxu0 0.0
    %789 = vmatpush.msra.mxu0 0.0
    %790 = vmatpush.msra.mxu0 0.0
    %791 = vmatpush.msra.mxu0 0.0
    %792 = vmatpush.msra.mxu0 0.0
    %793 = vmatpush.msra.mxu0 0.0
    %794 = vmatpush.msra.mxu0 0.0
    %795 = vmatpush.msra.mxu0 0.0
    %796 = vmatpush.msra.mxu0 0.0
    %797 = vmatpush.msra.mxu0 0.0
    %798 = vmatpush.msra.mxu0 0.0
    %799 = vmatpush.msra.mxu0 0.0
    %v800 = vand.u32 %v89, 4294901760
    %801 = vmatpush.msra.mxu0 %v800
    %v802 = vand.u32 %v88, 4294901760
    %803 = vmatpush.msra.mxu0 %v802
    %v804 = vand.u32 %v680, 4294901760
    %v805 = vsub.f32 %v680, %v804
    %v806 = vand.u32 %v805, 4294901760
    %807 = vmatmul.f32.gmra.mxu0 %v806
    %v808 = vpop.f32.mrf.mxu0
    %v809 = vadd.f32 %v779, %v808
    %v810 = vand.u32 %v683, 4294901760
    %v811 = vsub.f32 %v683, %v810
    %v812 = vand.u32 %v811, 4294901760
    %813 = vmatmul.f32.gmra.mxu0 %v812
    %v814 = vpop.f32.mrf.mxu0
    %v815 = vadd.f32 %v784, %v814
    %816 = vdwg.mxu0
    %817 = vmatpush.msra.mxu0 0.0
    %818 = vmatpush.msra.mxu0 0.0
    %819 = vmatpush.msra.mxu0 0.0
    %820 = vmatpush.msra.mxu0 0.0
    %821 = vmatpush.msra.mxu0 0.0
    %822 = vmatpush.msra.mxu0 0.0
    %823 = vmatpush.msra.mxu0 0.0
    %824 = vmatpush.msra.mxu0 0.0
    %825 = vmatpush.msra.mxu0 0.0
    %826 = vmatpush.msra.mxu0 0.0
    %827 = vmatpush.msra.mxu0 0.0
    %828 = vmatpush.msra.mxu0 0.0
    %829 = vmatpush.msra.mxu0 0.0
    %830 = vmatpush.msra.mxu0 0.0
    %v831 = vand.u32 %v89, 4294901760
    %v832 = vsub.f32 %v89, %v831
    %v833 = vand.u32 %v832, 4294901760
    %834 = vmatpush.msra.mxu0 %v833
    %v835 = vand.u32 %v88, 4294901760
    %v836 = vsub.f32 %v88, %v835
    %v837 = vand.u32 %v836, 4294901760
    %838 = vmatpush.msra.mxu0 %v837
    %v839 = vand.u32 %v680, 4294901760
    %840 = vmatmul.f32.gmra.mxu0 %v839
    %v841 = vpop.f32.mrf.mxu0
    %v842 = vadd.f32 %v809, %v841
    %v843 = vand.u32 %v683, 4294901760
    %844 = vmatmul.f32.gmra.mxu0 %v843
    %v845 = vpop.f32.mrf.mxu0
    %v846 = vadd.f32 %v815, %v845
    %847 = vdwg.mxu0
    %848 = vmatpush.msra.mxu0 0.0
    %849 = vmatpush.msra.mxu0 0.0
    %850 = vmatpush.msra.mxu0 0.0
    %851 = vmatpush.msra.mxu0 0.0
    %852 = vmatpush.msra.mxu0 0.0
    %853 = vmatpush.msra.mxu0 0.0
    %854 = vmatpush.msra.mxu0 0.0
    %855 = vmatpush.msra.mxu0 0.0
    %856 = vmatpush.msra.mxu0 0.0
    %857 = vmatpush.msra.mxu0 0.0
    %858 = vmatpush.msra.mxu0 0.0
    %859 = vmatpush.msra.mxu0 0.0
    %860 = vmatpush.msra.mxu0 0.0
    %861 = vmatpush.msra.mxu0 0.0
    %v862 = vand.u32 %v89, 4294901760
    %863 = vmatpush.msra.mxu0 %v862
    %v864 = vand.u32 %v88, 4294901760
    %865 = vmatpush.msra.mxu0 %v864
    %v866 = vand.u32 %v680, 4294901760
    %867 = vmatmul.f32.gmra.mxu0 %v866
    %v868 = vpop.f32.mrf.mxu0
    %v869 = vadd.f32 %v842, %v868
    %v870 = vand.u32 %v683, 4294901760
    %871 = vmatmul.f32.gmra.mxu0 %v870
    %v872 = vpop.f32.mrf.mxu0
    %v873 = vadd.f32 %v846, %v872
    %874 = vdwg.mxu0
    %v876 = vsel %vm90, %v57, 0
    %v879 = vsel %vm90, %v58, 0
    %v882 = vsel %vm90, %v59, 0
    %v885 = vsel %vm90, %v60, 0
    %887 = vmatpush.msra.mxu0 0.0
    %888 = vmatpush.msra.mxu0 0.0
    %889 = vmatpush.msra.mxu0 0.0
    %890 = vmatpush.msra.mxu0 0.0
    %891 = vmatpush.msra.mxu0 0.0
    %892 = vmatpush.msra.mxu0 0.0
    %893 = vmatpush.msra.mxu0 0.0
    %894 = vmatpush.msra.mxu0 0.0
    %895 = vmatpush.msra.mxu0 0.0
    %896 = vmatpush.msra.mxu0 0.0
    %897 = vmatpush.msra.mxu0 0.0
    %898 = vmatpush.msra.mxu0 0.0
    %899 = vmatpush.msra.mxu0 0.0
    %900 = vmatpush.msra.mxu0 0.0
    %v901 = vand.u32 %v677, 4294901760
    %902 = vmatpush.msra.mxu0 %v901
    %v903 = vand.u32 %v673, 4294901760
    %904 = vmatpush.msra.mxu0 %v903
    %v905 = vand.u32 %v876, 4294901760
    %v906 = vsub.f32 %v876, %v905
    %v907 = vand.u32 %v906, 4294901760
    %v908 = vsub.f32 %v906, %v907
    %v909 = vand.u32 %v908, 4294901760
    %910 = vmatmul.f32.gmra.mxu0 %v909
    %v911 = vpop.f32.mrf.mxu0
    %v912 = vadd.f32 0.0, %v911
    %v913 = vand.u32 %v879, 4294901760
    %v914 = vsub.f32 %v879, %v913
    %v915 = vand.u32 %v914, 4294901760
    %v916 = vsub.f32 %v914, %v915
    %v917 = vand.u32 %v916, 4294901760
    %918 = vmatmul.f32.gmra.mxu0 %v917
    %v919 = vpop.f32.mrf.mxu0
    %v920 = vadd.f32 0.0, %v919
    %v921 = vand.u32 %v882, 4294901760
    %v922 = vsub.f32 %v882, %v921
    %v923 = vand.u32 %v922, 4294901760
    %v924 = vsub.f32 %v922, %v923
    %v925 = vand.u32 %v924, 4294901760
    %926 = vmatmul.f32.gmra.mxu0 %v925
    %v927 = vpop.f32.mrf.mxu0
    %v928 = vadd.f32 0.0, %v927
    %v929 = vand.u32 %v885, 4294901760
    %v930 = vsub.f32 %v885, %v929
    %v931 = vand.u32 %v930, 4294901760
    %v932 = vsub.f32 %v930, %v931
    %v933 = vand.u32 %v932, 4294901760
    %934 = vmatmul.f32.gmra.mxu0 %v933
    %v935 = vpop.f32.mrf.mxu0
    %v936 = vadd.f32 0.0, %v935
    %937 = vdwg.mxu0
    %938 = vmatpush.msra.mxu0 0.0
    %939 = vmatpush.msra.mxu0 0.0
    %940 = vmatpush.msra.mxu0 0.0
    %941 = vmatpush.msra.mxu0 0.0
    %942 = vmatpush.msra.mxu0 0.0
    %943 = vmatpush.msra.mxu0 0.0
    %944 = vmatpush.msra.mxu0 0.0
    %945 = vmatpush.msra.mxu0 0.0
    %946 = vmatpush.msra.mxu0 0.0
    %947 = vmatpush.msra.mxu0 0.0
    %948 = vmatpush.msra.mxu0 0.0
    %949 = vmatpush.msra.mxu0 0.0
    %950 = vmatpush.msra.mxu0 0.0
    %951 = vmatpush.msra.mxu0 0.0
    %v952 = vand.u32 %v677, 4294901760
    %v953 = vsub.f32 %v677, %v952
    %v954 = vand.u32 %v953, 4294901760
    %v955 = vsub.f32 %v953, %v954
    %v956 = vand.u32 %v955, 4294901760
    %957 = vmatpush.msra.mxu0 %v956
    %v958 = vand.u32 %v673, 4294901760
    %v959 = vsub.f32 %v673, %v958
    %v960 = vand.u32 %v959, 4294901760
    %v961 = vsub.f32 %v959, %v960
    %v962 = vand.u32 %v961, 4294901760
    %963 = vmatpush.msra.mxu0 %v962
    %v964 = vand.u32 %v876, 4294901760
    %965 = vmatmul.f32.gmra.mxu0 %v964
    %v966 = vpop.f32.mrf.mxu0
    %v967 = vadd.f32 %v912, %v966
    %v968 = vand.u32 %v879, 4294901760
    %969 = vmatmul.f32.gmra.mxu0 %v968
    %v970 = vpop.f32.mrf.mxu0
    %v971 = vadd.f32 %v920, %v970
    %v972 = vand.u32 %v882, 4294901760
    %973 = vmatmul.f32.gmra.mxu0 %v972
    %v974 = vpop.f32.mrf.mxu0
    %v975 = vadd.f32 %v928, %v974
    %v976 = vand.u32 %v885, 4294901760
    %977 = vmatmul.f32.gmra.mxu0 %v976
    %v978 = vpop.f32.mrf.mxu0
    %v979 = vadd.f32 %v936, %v978
    %980 = vdwg.mxu0
    %981 = vmatpush.msra.mxu0 0.0
    %982 = vmatpush.msra.mxu0 0.0
    %983 = vmatpush.msra.mxu0 0.0
    %984 = vmatpush.msra.mxu0 0.0
    %985 = vmatpush.msra.mxu0 0.0
    %986 = vmatpush.msra.mxu0 0.0
    %987 = vmatpush.msra.mxu0 0.0
    %988 = vmatpush.msra.mxu0 0.0
    %989 = vmatpush.msra.mxu0 0.0
    %990 = vmatpush.msra.mxu0 0.0
    %991 = vmatpush.msra.mxu0 0.0
    %992 = vmatpush.msra.mxu0 0.0
    %993 = vmatpush.msra.mxu0 0.0
    %994 = vmatpush.msra.mxu0 0.0
    %v995 = vand.u32 %v677, 4294901760
    %v996 = vsub.f32 %v677, %v995
    %997 = vmatpush.msra.mxu0 %v996
    %v998 = vand.u32 %v673, 4294901760
    %v999 = vsub.f32 %v673, %v998
    %1000 = vmatpush.msra.mxu0 %v999
    %v1001 = vand.u32 %v876, 4294901760
    %v1002 = vsub.f32 %v876, %v1001
    %1003 = vmatmul.f32.gmra.mxu0 %v1002
    %v1004 = vpop.f32.mrf.mxu0
    %v1005 = vadd.f32 %v967, %v1004
    %v1006 = vand.u32 %v879, 4294901760
    %v1007 = vsub.f32 %v879, %v1006
    %1008 = vmatmul.f32.gmra.mxu0 %v1007
    %v1009 = vpop.f32.mrf.mxu0
    %v1010 = vadd.f32 %v971, %v1009
    %v1011 = vand.u32 %v882, 4294901760
    %v1012 = vsub.f32 %v882, %v1011
    %1013 = vmatmul.f32.gmra.mxu0 %v1012
    %v1014 = vpop.f32.mrf.mxu0
    %v1015 = vadd.f32 %v975, %v1014
    %v1016 = vand.u32 %v885, 4294901760
    %v1017 = vsub.f32 %v885, %v1016
    %1018 = vmatmul.f32.gmra.mxu0 %v1017
    %v1019 = vpop.f32.mrf.mxu0
    %v1020 = vadd.f32 %v979, %v1019
    %1021 = vdwg.mxu0
    %1022 = vmatpush.msra.mxu0 0.0
    %1023 = vmatpush.msra.mxu0 0.0
    %1024 = vmatpush.msra.mxu0 0.0
    %1025 = vmatpush.msra.mxu0 0.0
    %1026 = vmatpush.msra.mxu0 0.0
    %1027 = vmatpush.msra.mxu0 0.0
    %1028 = vmatpush.msra.mxu0 0.0
    %1029 = vmatpush.msra.mxu0 0.0
    %1030 = vmatpush.msra.mxu0 0.0
    %1031 = vmatpush.msra.mxu0 0.0
    %1032 = vmatpush.msra.mxu0 0.0
    %1033 = vmatpush.msra.mxu0 0.0
    %1034 = vmatpush.msra.mxu0 0.0
    %1035 = vmatpush.msra.mxu0 0.0
    %v1036 = vand.u32 %v677, 4294901760
    %1037 = vmatpush.msra.mxu0 %v1036
    %v1038 = vand.u32 %v673, 4294901760
    %1039 = vmatpush.msra.mxu0 %v1038
    %v1040 = vand.u32 %v876, 4294901760
    %v1041 = vsub.f32 %v876, %v1040
    %v1042 = vand.u32 %v1041, 4294901760
    %1043 = vmatmul.f32.gmra.mxu0 %v1042
    %v1044 = vpop.f32.mrf.mxu0
    %v1045 = vadd.f32 %v1005, %v1044
    %v1046 = vand.u32 %v879, 4294901760
    %v1047 = vsub.f32 %v879, %v1046
    %v1048 = vand.u32 %v1047, 4294901760
    %1049 = vmatmul.f32.gmra.mxu0 %v1048
    %v1050 = vpop.f32.mrf.mxu0
    %v1051 = vadd.f32 %v1010, %v1050
    %v1052 = vand.u32 %v882, 4294901760
    %v1053 = vsub.f32 %v882, %v1052
    %v1054 = vand.u32 %v1053, 4294901760
    %1055 = vmatmul.f32.gmra.mxu0 %v1054
    %v1056 = vpop.f32.mrf.mxu0
    %v1057 = vadd.f32 %v1015, %v1056
    %v1058 = vand.u32 %v885, 4294901760
    %v1059 = vsub.f32 %v885, %v1058
    %v1060 = vand.u32 %v1059, 4294901760
    %1061 = vmatmul.f32.gmra.mxu0 %v1060
    %v1062 = vpop.f32.mrf.mxu0
    %v1063 = vadd.f32 %v1020, %v1062
    %1064 = vdwg.mxu0
    %1065 = vmatpush.msra.mxu0 0.0
    %1066 = vmatpush.msra.mxu0 0.0
    %1067 = vmatpush.msra.mxu0 0.0
    %1068 = vmatpush.msra.mxu0 0.0
    %1069 = vmatpush.msra.mxu0 0.0
    %1070 = vmatpush.msra.mxu0 0.0
    %1071 = vmatpush.msra.mxu0 0.0
    %1072 = vmatpush.msra.mxu0 0.0
    %1073 = vmatpush.msra.mxu0 0.0
    %1074 = vmatpush.msra.mxu0 0.0
    %1075 = vmatpush.msra.mxu0 0.0
    %1076 = vmatpush.msra.mxu0 0.0
    %1077 = vmatpush.msra.mxu0 0.0
    %1078 = vmatpush.msra.mxu0 0.0
    %v1079 = vand.u32 %v677, 4294901760
    %v1080 = vsub.f32 %v677, %v1079
    %v1081 = vand.u32 %v1080, 4294901760
    %1082 = vmatpush.msra.mxu0 %v1081
    %v1083 = vand.u32 %v673, 4294901760
    %v1084 = vsub.f32 %v673, %v1083
    %v1085 = vand.u32 %v1084, 4294901760
    %1086 = vmatpush.msra.mxu0 %v1085
    %v1087 = vand.u32 %v876, 4294901760
    %1088 = vmatmul.f32.gmra.mxu0 %v1087
    %v1089 = vpop.f32.mrf.mxu0
    %v1090 = vadd.f32 %v1045, %v1089
    %v1091 = vand.u32 %v879, 4294901760
    %1092 = vmatmul.f32.gmra.mxu0 %v1091
    %v1093 = vpop.f32.mrf.mxu0
    %v1094 = vadd.f32 %v1051, %v1093
    %v1095 = vand.u32 %v882, 4294901760
    %1096 = vmatmul.f32.gmra.mxu0 %v1095
    %v1097 = vpop.f32.mrf.mxu0
    %v1098 = vadd.f32 %v1057, %v1097
    %v1099 = vand.u32 %v885, 4294901760
    %1100 = vmatmul.f32.gmra.mxu0 %v1099
    %v1101 = vpop.f32.mrf.mxu0
    %v1102 = vadd.f32 %v1063, %v1101
    %1103 = vdwg.mxu0
    %1104 = vmatpush.msra.mxu0 0.0
    %1105 = vmatpush.msra.mxu0 0.0
    %1106 = vmatpush.msra.mxu0 0.0
    %1107 = vmatpush.msra.mxu0 0.0
    %1108 = vmatpush.msra.mxu0 0.0
    %1109 = vmatpush.msra.mxu0 0.0
    %1110 = vmatpush.msra.mxu0 0.0
    %1111 = vmatpush.msra.mxu0 0.0
    %1112 = vmatpush.msra.mxu0 0.0
    %1113 = vmatpush.msra.mxu0 0.0
    %1114 = vmatpush.msra.mxu0 0.0
    %1115 = vmatpush.msra.mxu0 0.0
    %1116 = vmatpush.msra.mxu0 0.0
    %1117 = vmatpush.msra.mxu0 0.0
    %v1118 = vand.u32 %v677, 4294901760
    %1119 = vmatpush.msra.mxu0 %v1118
    %v1120 = vand.u32 %v673, 4294901760
    %1121 = vmatpush.msra.mxu0 %v1120
    %v1122 = vand.u32 %v876, 4294901760
    %1123 = vmatmul.f32.gmra.mxu0 %v1122
    %v1124 = vpop.f32.mrf.mxu0
    %v1125 = vadd.f32 %v1090, %v1124
    %v1126 = vand.u32 %v879, 4294901760
    %1127 = vmatmul.f32.gmra.mxu0 %v1126
    %v1128 = vpop.f32.mrf.mxu0
    %v1129 = vadd.f32 %v1094, %v1128
    %v1130 = vand.u32 %v882, 4294901760
    %1131 = vmatmul.f32.gmra.mxu0 %v1130
    %v1132 = vpop.f32.mrf.mxu0
    %v1133 = vadd.f32 %v1098, %v1132
    %v1134 = vand.u32 %v885, 4294901760
    %1135 = vmatmul.f32.gmra.mxu0 %v1134
    %v1136 = vpop.f32.mrf.mxu0
    %v1137 = vadd.f32 %v1102, %v1136
    %1138 = vdwg.mxu0
    %1139 = vmatpush.msra.mxu0 0.0
    %1140 = vmatpush.msra.mxu0 0.0
    %1141 = vmatpush.msra.mxu0 0.0
    %1142 = vmatpush.msra.mxu0 0.0
    %1143 = vmatpush.msra.mxu0 0.0
    %1144 = vmatpush.msra.mxu0 0.0
    %1145 = vmatpush.msra.mxu0 0.0
    %1146 = vmatpush.msra.mxu0 0.0
    %1147 = vmatpush.msra.mxu0 0.0
    %1148 = vmatpush.msra.mxu0 0.0
    %1149 = vmatpush.msra.mxu0 0.0
    %1150 = vmatpush.msra.mxu0 0.0
    %1151 = vmatpush.msra.mxu0 0.0
    %1152 = vmatpush.msra.mxu0 0.0
    %v1153 = vand.u32 %v873, 4294901760
    %1154 = vmatpush.msra.mxu0 %v1153
    %v1155 = vand.u32 %v869, 4294901760
    %1156 = vmatpush.msra.mxu0 %v1155
    %v1157 = vand.u32 %v876, 4294901760
    %v1158 = vsub.f32 %v876, %v1157
    %v1159 = vand.u32 %v1158, 4294901760
    %v1160 = vsub.f32 %v1158, %v1159
    %v1161 = vand.u32 %v1160, 4294901760
    %1162 = vmatmul.f32.gmra.mxu0 %v1161
    %v1163 = vpop.f32.mrf.mxu0
    %v1164 = vadd.f32 0.0, %v1163
    %v1165 = vand.u32 %v879, 4294901760
    %v1166 = vsub.f32 %v879, %v1165
    %v1167 = vand.u32 %v1166, 4294901760
    %v1168 = vsub.f32 %v1166, %v1167
    %v1169 = vand.u32 %v1168, 4294901760
    %1170 = vmatmul.f32.gmra.mxu0 %v1169
    %v1171 = vpop.f32.mrf.mxu0
    %v1172 = vadd.f32 0.0, %v1171
    %v1173 = vand.u32 %v882, 4294901760
    %v1174 = vsub.f32 %v882, %v1173
    %v1175 = vand.u32 %v1174, 4294901760
    %v1176 = vsub.f32 %v1174, %v1175
    %v1177 = vand.u32 %v1176, 4294901760
    %1178 = vmatmul.f32.gmra.mxu0 %v1177
    %v1179 = vpop.f32.mrf.mxu0
    %v1180 = vadd.f32 0.0, %v1179
    %v1181 = vand.u32 %v885, 4294901760
    %v1182 = vsub.f32 %v885, %v1181
    %v1183 = vand.u32 %v1182, 4294901760
    %v1184 = vsub.f32 %v1182, %v1183
    %v1185 = vand.u32 %v1184, 4294901760
    %1186 = vmatmul.f32.gmra.mxu0 %v1185
    %v1187 = vpop.f32.mrf.mxu0
    %v1188 = vadd.f32 0.0, %v1187
    %1189 = vdwg.mxu0
    %1190 = vmatpush.msra.mxu0 0.0
    %1191 = vmatpush.msra.mxu0 0.0
    %1192 = vmatpush.msra.mxu0 0.0
    %1193 = vmatpush.msra.mxu0 0.0
    %1194 = vmatpush.msra.mxu0 0.0
    %1195 = vmatpush.msra.mxu0 0.0
    %1196 = vmatpush.msra.mxu0 0.0
    %1197 = vmatpush.msra.mxu0 0.0
    %1198 = vmatpush.msra.mxu0 0.0
    %1199 = vmatpush.msra.mxu0 0.0
    %1200 = vmatpush.msra.mxu0 0.0
    %1201 = vmatpush.msra.mxu0 0.0
    %1202 = vmatpush.msra.mxu0 0.0
    %1203 = vmatpush.msra.mxu0 0.0
    %v1204 = vand.u32 %v873, 4294901760
    %v1205 = vsub.f32 %v873, %v1204
    %v1206 = vand.u32 %v1205, 4294901760
    %v1207 = vsub.f32 %v1205, %v1206
    %v1208 = vand.u32 %v1207, 4294901760
    %1209 = vmatpush.msra.mxu0 %v1208
    %v1210 = vand.u32 %v869, 4294901760
    %v1211 = vsub.f32 %v869, %v1210
    %v1212 = vand.u32 %v1211, 4294901760
    %v1213 = vsub.f32 %v1211, %v1212
    %v1214 = vand.u32 %v1213, 4294901760
    %1215 = vmatpush.msra.mxu0 %v1214
    %v1216 = vand.u32 %v876, 4294901760
    %1217 = vmatmul.f32.gmra.mxu0 %v1216
    %v1218 = vpop.f32.mrf.mxu0
    %v1219 = vadd.f32 %v1164, %v1218
    %v1220 = vand.u32 %v879, 4294901760
    %1221 = vmatmul.f32.gmra.mxu0 %v1220
    %v1222 = vpop.f32.mrf.mxu0
    %v1223 = vadd.f32 %v1172, %v1222
    %v1224 = vand.u32 %v882, 4294901760
    %1225 = vmatmul.f32.gmra.mxu0 %v1224
    %v1226 = vpop.f32.mrf.mxu0
    %v1227 = vadd.f32 %v1180, %v1226
    %v1228 = vand.u32 %v885, 4294901760
    %1229 = vmatmul.f32.gmra.mxu0 %v1228
    %v1230 = vpop.f32.mrf.mxu0
    %v1231 = vadd.f32 %v1188, %v1230
    %1232 = vdwg.mxu0
    %1233 = vmatpush.msra.mxu0 0.0
    %1234 = vmatpush.msra.mxu0 0.0
    %1235 = vmatpush.msra.mxu0 0.0
    %1236 = vmatpush.msra.mxu0 0.0
    %1237 = vmatpush.msra.mxu0 0.0
    %1238 = vmatpush.msra.mxu0 0.0
    %1239 = vmatpush.msra.mxu0 0.0
    %1240 = vmatpush.msra.mxu0 0.0
    %1241 = vmatpush.msra.mxu0 0.0
    %1242 = vmatpush.msra.mxu0 0.0
    %1243 = vmatpush.msra.mxu0 0.0
    %1244 = vmatpush.msra.mxu0 0.0
    %1245 = vmatpush.msra.mxu0 0.0
    %1246 = vmatpush.msra.mxu0 0.0
    %v1247 = vand.u32 %v873, 4294901760
    %v1248 = vsub.f32 %v873, %v1247
    %1249 = vmatpush.msra.mxu0 %v1248
    %v1250 = vand.u32 %v869, 4294901760
    %v1251 = vsub.f32 %v869, %v1250
    %1252 = vmatpush.msra.mxu0 %v1251
    %v1253 = vand.u32 %v876, 4294901760
    %v1254 = vsub.f32 %v876, %v1253
    %1255 = vmatmul.f32.gmra.mxu0 %v1254
    %v1256 = vpop.f32.mrf.mxu0
    %v1257 = vadd.f32 %v1219, %v1256
    %v1258 = vand.u32 %v879, 4294901760
    %v1259 = vsub.f32 %v879, %v1258
    %1260 = vmatmul.f32.gmra.mxu0 %v1259
    %v1261 = vpop.f32.mrf.mxu0
    %v1262 = vadd.f32 %v1223, %v1261
    %v1263 = vand.u32 %v882, 4294901760
    %v1264 = vsub.f32 %v882, %v1263
    %1265 = vmatmul.f32.gmra.mxu0 %v1264
    %v1266 = vpop.f32.mrf.mxu0
    %v1267 = vadd.f32 %v1227, %v1266
    %v1268 = vand.u32 %v885, 4294901760
    %v1269 = vsub.f32 %v885, %v1268
    %1270 = vmatmul.f32.gmra.mxu0 %v1269
    %v1271 = vpop.f32.mrf.mxu0
    %v1272 = vadd.f32 %v1231, %v1271
    %1273 = vdwg.mxu0
    %1274 = vmatpush.msra.mxu0 0.0
    %1275 = vmatpush.msra.mxu0 0.0
    %1276 = vmatpush.msra.mxu0 0.0
    %1277 = vmatpush.msra.mxu0 0.0
    %1278 = vmatpush.msra.mxu0 0.0
    %1279 = vmatpush.msra.mxu0 0.0
    %1280 = vmatpush.msra.mxu0 0.0
    %1281 = vmatpush.msra.mxu0 0.0
    %1282 = vmatpush.msra.mxu0 0.0
    %1283 = vmatpush.msra.mxu0 0.0
    %1284 = vmatpush.msra.mxu0 0.0
    %1285 = vmatpush.msra.mxu0 0.0
    %1286 = vmatpush.msra.mxu0 0.0
    %1287 = vmatpush.msra.mxu0 0.0
    %v1288 = vand.u32 %v873, 4294901760
    %1289 = vmatpush.msra.mxu0 %v1288
    %v1290 = vand.u32 %v869, 4294901760
    %1291 = vmatpush.msra.mxu0 %v1290
    %v1292 = vand.u32 %v876, 4294901760
    %v1293 = vsub.f32 %v876, %v1292
    %v1294 = vand.u32 %v1293, 4294901760
    %1295 = vmatmul.f32.gmra.mxu0 %v1294
    %v1296 = vpop.f32.mrf.mxu0
    %v1297 = vadd.f32 %v1257, %v1296
    %v1298 = vand.u32 %v879, 4294901760
    %v1299 = vsub.f32 %v879, %v1298
    %v1300 = vand.u32 %v1299, 4294901760
    %1301 = vmatmul.f32.gmra.mxu0 %v1300
    %v1302 = vpop.f32.mrf.mxu0
    %v1303 = vadd.f32 %v1262, %v1302
    %v1304 = vand.u32 %v882, 4294901760
    %v1305 = vsub.f32 %v882, %v1304
    %v1306 = vand.u32 %v1305, 4294901760
    %1307 = vmatmul.f32.gmra.mxu0 %v1306
    %v1308 = vpop.f32.mrf.mxu0
    %v1309 = vadd.f32 %v1267, %v1308
    %v1310 = vand.u32 %v885, 4294901760
    %v1311 = vsub.f32 %v885, %v1310
    %v1312 = vand.u32 %v1311, 4294901760
    %1313 = vmatmul.f32.gmra.mxu0 %v1312
    %v1314 = vpop.f32.mrf.mxu0
    %v1315 = vadd.f32 %v1272, %v1314
    %1316 = vdwg.mxu0
    %1317 = vmatpush.msra.mxu0 0.0
    %1318 = vmatpush.msra.mxu0 0.0
    %1319 = vmatpush.msra.mxu0 0.0
    %1320 = vmatpush.msra.mxu0 0.0
    %1321 = vmatpush.msra.mxu0 0.0
    %1322 = vmatpush.msra.mxu0 0.0
    %1323 = vmatpush.msra.mxu0 0.0
    %1324 = vmatpush.msra.mxu0 0.0
    %1325 = vmatpush.msra.mxu0 0.0
    %1326 = vmatpush.msra.mxu0 0.0
    %1327 = vmatpush.msra.mxu0 0.0
    %1328 = vmatpush.msra.mxu0 0.0
    %1329 = vmatpush.msra.mxu0 0.0
    %1330 = vmatpush.msra.mxu0 0.0
    %v1331 = vand.u32 %v873, 4294901760
    %v1332 = vsub.f32 %v873, %v1331
    %v1333 = vand.u32 %v1332, 4294901760
    %1334 = vmatpush.msra.mxu0 %v1333
    %v1335 = vand.u32 %v869, 4294901760
    %v1336 = vsub.f32 %v869, %v1335
    %v1337 = vand.u32 %v1336, 4294901760
    %1338 = vmatpush.msra.mxu0 %v1337
    %v1339 = vand.u32 %v876, 4294901760
    %1340 = vmatmul.f32.gmra.mxu0 %v1339
    %v1341 = vpop.f32.mrf.mxu0
    %v1342 = vadd.f32 %v1297, %v1341
    %v1343 = vand.u32 %v879, 4294901760
    %1344 = vmatmul.f32.gmra.mxu0 %v1343
    %v1345 = vpop.f32.mrf.mxu0
    %v1346 = vadd.f32 %v1303, %v1345
    %v1347 = vand.u32 %v882, 4294901760
    %1348 = vmatmul.f32.gmra.mxu0 %v1347
    %v1349 = vpop.f32.mrf.mxu0
    %v1350 = vadd.f32 %v1309, %v1349
    %v1351 = vand.u32 %v885, 4294901760
    %1352 = vmatmul.f32.gmra.mxu0 %v1351
    %v1353 = vpop.f32.mrf.mxu0
    %v1354 = vadd.f32 %v1315, %v1353
    %1355 = vdwg.mxu0
    %1356 = vmatpush.msra.mxu0 0.0
    %1357 = vmatpush.msra.mxu0 0.0
    %1358 = vmatpush.msra.mxu0 0.0
    %1359 = vmatpush.msra.mxu0 0.0
    %1360 = vmatpush.msra.mxu0 0.0
    %1361 = vmatpush.msra.mxu0 0.0
    %1362 = vmatpush.msra.mxu0 0.0
    %1363 = vmatpush.msra.mxu0 0.0
    %1364 = vmatpush.msra.mxu0 0.0
    %1365 = vmatpush.msra.mxu0 0.0
    %1366 = vmatpush.msra.mxu0 0.0
    %1367 = vmatpush.msra.mxu0 0.0
    %1368 = vmatpush.msra.mxu0 0.0
    %1369 = vmatpush.msra.mxu0 0.0
    %v1370 = vand.u32 %v873, 4294901760
    %1371 = vmatpush.msra.mxu0 %v1370
    %v1372 = vand.u32 %v869, 4294901760
    %1373 = vmatpush.msra.mxu0 %v1372
    %v1374 = vand.u32 %v876, 4294901760
    %1375 = vmatmul.f32.gmra.mxu0 %v1374
    %v1376 = vpop.f32.mrf.mxu0
    %v1377 = vadd.f32 %v1342, %v1376
    %v1378 = vand.u32 %v879, 4294901760
    %1379 = vmatmul.f32.gmra.mxu0 %v1378
    %v1380 = vpop.f32.mrf.mxu0
    %v1381 = vadd.f32 %v1346, %v1380
    %v1382 = vand.u32 %v882, 4294901760
    %1383 = vmatmul.f32.gmra.mxu0 %v1382
    %v1384 = vpop.f32.mrf.mxu0
    %v1385 = vadd.f32 %v1350, %v1384
    %v1386 = vand.u32 %v885, 4294901760
    %1387 = vmatmul.f32.gmra.mxu0 %v1386
    %v1388 = vpop.f32.mrf.mxu0
    %v1389 = vadd.f32 %v1354, %v1388
    %1390 = vdwg.mxu0
    %1391 = vmatpush.msra.mxu0 0.0
    %1392 = vmatpush.msra.mxu0 0.0
    %1393 = vmatpush.msra.mxu0 0.0
    %1394 = vmatpush.msra.mxu0 0.0
    %1395 = vmatpush.msra.mxu0 0.0
    %1396 = vmatpush.msra.mxu0 0.0
    %1397 = vmatpush.msra.mxu0 0.0
    %1398 = vmatpush.msra.mxu0 0.0
    %1399 = vmatpush.msra.mxu0 0.0
    %1400 = vmatpush.msra.mxu0 0.0
    %1401 = vmatpush.msra.mxu0 0.0
    %1402 = vmatpush.msra.mxu0 0.0
    %1403 = vmatpush.msra.mxu0 0.0
    %1404 = vmatpush.msra.mxu0 0.0
    %v1405 = vand.u32 %v285, 4294901760
    %1406 = vmatpush.msra.mxu0 %v1405
    %v1407 = vand.u32 %v281, 4294901760
    %1408 = vmatpush.msra.mxu0 %v1407
    %v1409 = vand.u32 %v876, 4294901760
    %v1410 = vsub.f32 %v876, %v1409
    %v1411 = vand.u32 %v1410, 4294901760
    %v1412 = vsub.f32 %v1410, %v1411
    %v1413 = vand.u32 %v1412, 4294901760
    %1414 = vmatmul.f32.gmra.mxu0 %v1413
    %v1415 = vpop.f32.mrf.mxu0
    %v1416 = vadd.f32 %v1125, %v1415
    %v1417 = vand.u32 %v879, 4294901760
    %v1418 = vsub.f32 %v879, %v1417
    %v1419 = vand.u32 %v1418, 4294901760
    %v1420 = vsub.f32 %v1418, %v1419
    %v1421 = vand.u32 %v1420, 4294901760
    %1422 = vmatmul.f32.gmra.mxu0 %v1421
    %v1423 = vpop.f32.mrf.mxu0
    %v1424 = vadd.f32 %v1129, %v1423
    %v1425 = vand.u32 %v882, 4294901760
    %v1426 = vsub.f32 %v882, %v1425
    %v1427 = vand.u32 %v1426, 4294901760
    %v1428 = vsub.f32 %v1426, %v1427
    %v1429 = vand.u32 %v1428, 4294901760
    %1430 = vmatmul.f32.gmra.mxu0 %v1429
    %v1431 = vpop.f32.mrf.mxu0
    %v1432 = vadd.f32 %v1133, %v1431
    %v1433 = vand.u32 %v885, 4294901760
    %v1434 = vsub.f32 %v885, %v1433
    %v1435 = vand.u32 %v1434, 4294901760
    %v1436 = vsub.f32 %v1434, %v1435
    %v1437 = vand.u32 %v1436, 4294901760
    %1438 = vmatmul.f32.gmra.mxu0 %v1437
    %v1439 = vpop.f32.mrf.mxu0
    %v1440 = vadd.f32 %v1137, %v1439
    %1441 = vdwg.mxu0
    %1442 = vmatpush.msra.mxu0 0.0
    %1443 = vmatpush.msra.mxu0 0.0
    %1444 = vmatpush.msra.mxu0 0.0
    %1445 = vmatpush.msra.mxu0 0.0
    %1446 = vmatpush.msra.mxu0 0.0
    %1447 = vmatpush.msra.mxu0 0.0
    %1448 = vmatpush.msra.mxu0 0.0
    %1449 = vmatpush.msra.mxu0 0.0
    %1450 = vmatpush.msra.mxu0 0.0
    %1451 = vmatpush.msra.mxu0 0.0
    %1452 = vmatpush.msra.mxu0 0.0
    %1453 = vmatpush.msra.mxu0 0.0
    %1454 = vmatpush.msra.mxu0 0.0
    %1455 = vmatpush.msra.mxu0 0.0
    %v1456 = vand.u32 %v285, 4294901760
    %v1457 = vsub.f32 %v285, %v1456
    %v1458 = vand.u32 %v1457, 4294901760
    %v1459 = vsub.f32 %v1457, %v1458
    %v1460 = vand.u32 %v1459, 4294901760
    %1461 = vmatpush.msra.mxu0 %v1460
    %v1462 = vand.u32 %v281, 4294901760
    %v1463 = vsub.f32 %v281, %v1462
    %v1464 = vand.u32 %v1463, 4294901760
    %v1465 = vsub.f32 %v1463, %v1464
    %v1466 = vand.u32 %v1465, 4294901760
    %1467 = vmatpush.msra.mxu0 %v1466
    %v1468 = vand.u32 %v876, 4294901760
    %1469 = vmatmul.f32.gmra.mxu0 %v1468
    %v1470 = vpop.f32.mrf.mxu0
    %v1471 = vadd.f32 %v1416, %v1470
    %v1472 = vand.u32 %v879, 4294901760
    %1473 = vmatmul.f32.gmra.mxu0 %v1472
    %v1474 = vpop.f32.mrf.mxu0
    %v1475 = vadd.f32 %v1424, %v1474
    %v1476 = vand.u32 %v882, 4294901760
    %1477 = vmatmul.f32.gmra.mxu0 %v1476
    %v1478 = vpop.f32.mrf.mxu0
    %v1479 = vadd.f32 %v1432, %v1478
    %v1480 = vand.u32 %v885, 4294901760
    %1481 = vmatmul.f32.gmra.mxu0 %v1480
    %v1482 = vpop.f32.mrf.mxu0
    %v1483 = vadd.f32 %v1440, %v1482
    %1484 = vdwg.mxu0
    %1485 = vmatpush.msra.mxu0 0.0
    %1486 = vmatpush.msra.mxu0 0.0
    %1487 = vmatpush.msra.mxu0 0.0
    %1488 = vmatpush.msra.mxu0 0.0
    %1489 = vmatpush.msra.mxu0 0.0
    %1490 = vmatpush.msra.mxu0 0.0
    %1491 = vmatpush.msra.mxu0 0.0
    %1492 = vmatpush.msra.mxu0 0.0
    %1493 = vmatpush.msra.mxu0 0.0
    %1494 = vmatpush.msra.mxu0 0.0
    %1495 = vmatpush.msra.mxu0 0.0
    %1496 = vmatpush.msra.mxu0 0.0
    %1497 = vmatpush.msra.mxu0 0.0
    %1498 = vmatpush.msra.mxu0 0.0
    %v1499 = vand.u32 %v285, 4294901760
    %v1500 = vsub.f32 %v285, %v1499
    %1501 = vmatpush.msra.mxu0 %v1500
    %v1502 = vand.u32 %v281, 4294901760
    %v1503 = vsub.f32 %v281, %v1502
    %1504 = vmatpush.msra.mxu0 %v1503
    %v1505 = vand.u32 %v876, 4294901760
    %v1506 = vsub.f32 %v876, %v1505
    %1507 = vmatmul.f32.gmra.mxu0 %v1506
    %v1508 = vpop.f32.mrf.mxu0
    %v1509 = vadd.f32 %v1471, %v1508
    %v1510 = vand.u32 %v879, 4294901760
    %v1511 = vsub.f32 %v879, %v1510
    %1512 = vmatmul.f32.gmra.mxu0 %v1511
    %v1513 = vpop.f32.mrf.mxu0
    %v1514 = vadd.f32 %v1475, %v1513
    %v1515 = vand.u32 %v882, 4294901760
    %v1516 = vsub.f32 %v882, %v1515
    %1517 = vmatmul.f32.gmra.mxu0 %v1516
    %v1518 = vpop.f32.mrf.mxu0
    %v1519 = vadd.f32 %v1479, %v1518
    %v1520 = vand.u32 %v885, 4294901760
    %v1521 = vsub.f32 %v885, %v1520
    %1522 = vmatmul.f32.gmra.mxu0 %v1521
    %v1523 = vpop.f32.mrf.mxu0
    %v1524 = vadd.f32 %v1483, %v1523
    %1525 = vdwg.mxu0
    %1526 = vmatpush.msra.mxu0 0.0
    %1527 = vmatpush.msra.mxu0 0.0
    %1528 = vmatpush.msra.mxu0 0.0
    %1529 = vmatpush.msra.mxu0 0.0
    %1530 = vmatpush.msra.mxu0 0.0
    %1531 = vmatpush.msra.mxu0 0.0
    %1532 = vmatpush.msra.mxu0 0.0
    %1533 = vmatpush.msra.mxu0 0.0
    %1534 = vmatpush.msra.mxu0 0.0
    %1535 = vmatpush.msra.mxu0 0.0
    %1536 = vmatpush.msra.mxu0 0.0
    %1537 = vmatpush.msra.mxu0 0.0
    %1538 = vmatpush.msra.mxu0 0.0
    %1539 = vmatpush.msra.mxu0 0.0
    %v1540 = vand.u32 %v285, 4294901760
    %1541 = vmatpush.msra.mxu0 %v1540
    %v1542 = vand.u32 %v281, 4294901760
    %1543 = vmatpush.msra.mxu0 %v1542
    %v1544 = vand.u32 %v876, 4294901760
    %v1545 = vsub.f32 %v876, %v1544
    %v1546 = vand.u32 %v1545, 4294901760
    %1547 = vmatmul.f32.gmra.mxu0 %v1546
    %v1548 = vpop.f32.mrf.mxu0
    %v1549 = vadd.f32 %v1509, %v1548
    %v1550 = vand.u32 %v879, 4294901760
    %v1551 = vsub.f32 %v879, %v1550
    %v1552 = vand.u32 %v1551, 4294901760
    %1553 = vmatmul.f32.gmra.mxu0 %v1552
    %v1554 = vpop.f32.mrf.mxu0
    %v1555 = vadd.f32 %v1514, %v1554
    %v1556 = vand.u32 %v882, 4294901760
    %v1557 = vsub.f32 %v882, %v1556
    %v1558 = vand.u32 %v1557, 4294901760
    %1559 = vmatmul.f32.gmra.mxu0 %v1558
    %v1560 = vpop.f32.mrf.mxu0
    %v1561 = vadd.f32 %v1519, %v1560
    %v1562 = vand.u32 %v885, 4294901760
    %v1563 = vsub.f32 %v885, %v1562
    %v1564 = vand.u32 %v1563, 4294901760
    %1565 = vmatmul.f32.gmra.mxu0 %v1564
    %v1566 = vpop.f32.mrf.mxu0
    %v1567 = vadd.f32 %v1524, %v1566
    %1568 = vdwg.mxu0
    %1569 = vmatpush.msra.mxu0 0.0
    %1570 = vmatpush.msra.mxu0 0.0
    %1571 = vmatpush.msra.mxu0 0.0
    %1572 = vmatpush.msra.mxu0 0.0
    %1573 = vmatpush.msra.mxu0 0.0
    %1574 = vmatpush.msra.mxu0 0.0
    %1575 = vmatpush.msra.mxu0 0.0
    %1576 = vmatpush.msra.mxu0 0.0
    %1577 = vmatpush.msra.mxu0 0.0
    %1578 = vmatpush.msra.mxu0 0.0
    %1579 = vmatpush.msra.mxu0 0.0
    %1580 = vmatpush.msra.mxu0 0.0
    %1581 = vmatpush.msra.mxu0 0.0
    %1582 = vmatpush.msra.mxu0 0.0
    %v1583 = vand.u32 %v285, 4294901760
    %v1584 = vsub.f32 %v285, %v1583
    %v1585 = vand.u32 %v1584, 4294901760
    %1586 = vmatpush.msra.mxu0 %v1585
    %v1587 = vand.u32 %v281, 4294901760
    %v1588 = vsub.f32 %v281, %v1587
    %v1589 = vand.u32 %v1588, 4294901760
    %1590 = vmatpush.msra.mxu0 %v1589
    %v1591 = vand.u32 %v876, 4294901760
    %1592 = vmatmul.f32.gmra.mxu0 %v1591
    %v1593 = vpop.f32.mrf.mxu0
    %v1594 = vadd.f32 %v1549, %v1593
    %v1595 = vand.u32 %v879, 4294901760
    %1596 = vmatmul.f32.gmra.mxu0 %v1595
    %v1597 = vpop.f32.mrf.mxu0
    %v1598 = vadd.f32 %v1555, %v1597
    %v1599 = vand.u32 %v882, 4294901760
    %1600 = vmatmul.f32.gmra.mxu0 %v1599
    %v1601 = vpop.f32.mrf.mxu0
    %v1602 = vadd.f32 %v1561, %v1601
    %v1603 = vand.u32 %v885, 4294901760
    %1604 = vmatmul.f32.gmra.mxu0 %v1603
    %v1605 = vpop.f32.mrf.mxu0
    %v1606 = vadd.f32 %v1567, %v1605
    %1607 = vdwg.mxu0
    %1608 = vmatpush.msra.mxu0 0.0
    %1609 = vmatpush.msra.mxu0 0.0
    %1610 = vmatpush.msra.mxu0 0.0
    %1611 = vmatpush.msra.mxu0 0.0
    %1612 = vmatpush.msra.mxu0 0.0
    %1613 = vmatpush.msra.mxu0 0.0
    %1614 = vmatpush.msra.mxu0 0.0
    %1615 = vmatpush.msra.mxu0 0.0
    %1616 = vmatpush.msra.mxu0 0.0
    %1617 = vmatpush.msra.mxu0 0.0
    %1618 = vmatpush.msra.mxu0 0.0
    %1619 = vmatpush.msra.mxu0 0.0
    %1620 = vmatpush.msra.mxu0 0.0
    %1621 = vmatpush.msra.mxu0 0.0
    %v1622 = vand.u32 %v285, 4294901760
    %1623 = vmatpush.msra.mxu0 %v1622
    %v1624 = vand.u32 %v281, 4294901760
    %1625 = vmatpush.msra.mxu0 %v1624
    %v1626 = vand.u32 %v876, 4294901760
    %1627 = vmatmul.f32.gmra.mxu0 %v1626
    %v1628 = vpop.f32.mrf.mxu0
    %v1629 = vadd.f32 %v1594, %v1628
    %v1630 = vand.u32 %v879, 4294901760
    %1631 = vmatmul.f32.gmra.mxu0 %v1630
    %v1632 = vpop.f32.mrf.mxu0
    %v1633 = vadd.f32 %v1598, %v1632
    %v1634 = vand.u32 %v882, 4294901760
    %1635 = vmatmul.f32.gmra.mxu0 %v1634
    %v1636 = vpop.f32.mrf.mxu0
    %v1637 = vadd.f32 %v1602, %v1636
    %v1638 = vand.u32 %v885, 4294901760
    %1639 = vmatmul.f32.gmra.mxu0 %v1638
    %v1640 = vpop.f32.mrf.mxu0
    %v1641 = vadd.f32 %v1606, %v1640
    %1642 = vdwg.mxu0
    %1643 = vmatpush.msra.mxu0 0.0
    %1644 = vmatpush.msra.mxu0 0.0
    %1645 = vmatpush.msra.mxu0 0.0
    %1646 = vmatpush.msra.mxu0 0.0
    %1647 = vmatpush.msra.mxu0 0.0
    %1648 = vmatpush.msra.mxu0 0.0
    %1649 = vmatpush.msra.mxu0 0.0
    %1650 = vmatpush.msra.mxu0 0.0
    %1651 = vmatpush.msra.mxu0 0.0
    %1652 = vmatpush.msra.mxu0 0.0
    %1653 = vmatpush.msra.mxu0 0.0
    %1654 = vmatpush.msra.mxu0 0.0
    %1655 = vmatpush.msra.mxu0 0.0
    %1656 = vmatpush.msra.mxu0 0.0
    %v1657 = vand.u32 %v481, 4294901760
    %1658 = vmatpush.msra.mxu0 %v1657
    %v1659 = vand.u32 %v477, 4294901760
    %1660 = vmatpush.msra.mxu0 %v1659
    %v1661 = vand.u32 %v876, 4294901760
    %v1662 = vsub.f32 %v876, %v1661
    %v1663 = vand.u32 %v1662, 4294901760
    %v1664 = vsub.f32 %v1662, %v1663
    %v1665 = vand.u32 %v1664, 4294901760
    %1666 = vmatmul.f32.gmra.mxu0 %v1665
    %v1667 = vpop.f32.mrf.mxu0
    %v1668 = vadd.f32 %v1377, %v1667
    %v1669 = vand.u32 %v879, 4294901760
    %v1670 = vsub.f32 %v879, %v1669
    %v1671 = vand.u32 %v1670, 4294901760
    %v1672 = vsub.f32 %v1670, %v1671
    %v1673 = vand.u32 %v1672, 4294901760
    %1674 = vmatmul.f32.gmra.mxu0 %v1673
    %v1675 = vpop.f32.mrf.mxu0
    %v1676 = vadd.f32 %v1381, %v1675
    %v1677 = vand.u32 %v882, 4294901760
    %v1678 = vsub.f32 %v882, %v1677
    %v1679 = vand.u32 %v1678, 4294901760
    %v1680 = vsub.f32 %v1678, %v1679
    %v1681 = vand.u32 %v1680, 4294901760
    %1682 = vmatmul.f32.gmra.mxu0 %v1681
    %v1683 = vpop.f32.mrf.mxu0
    %v1684 = vadd.f32 %v1385, %v1683
    %v1685 = vand.u32 %v885, 4294901760
    %v1686 = vsub.f32 %v885, %v1685
    %v1687 = vand.u32 %v1686, 4294901760
    %v1688 = vsub.f32 %v1686, %v1687
    %v1689 = vand.u32 %v1688, 4294901760
    %1690 = vmatmul.f32.gmra.mxu0 %v1689
    %v1691 = vpop.f32.mrf.mxu0
    %v1692 = vadd.f32 %v1389, %v1691
    %1693 = vdwg.mxu0
    %1694 = vmatpush.msra.mxu0 0.0
    %1695 = vmatpush.msra.mxu0 0.0
    %1696 = vmatpush.msra.mxu0 0.0
    %1697 = vmatpush.msra.mxu0 0.0
    %1698 = vmatpush.msra.mxu0 0.0
    %1699 = vmatpush.msra.mxu0 0.0
    %1700 = vmatpush.msra.mxu0 0.0
    %1701 = vmatpush.msra.mxu0 0.0
    %1702 = vmatpush.msra.mxu0 0.0
    %1703 = vmatpush.msra.mxu0 0.0
    %1704 = vmatpush.msra.mxu0 0.0
    %1705 = vmatpush.msra.mxu0 0.0
    %1706 = vmatpush.msra.mxu0 0.0
    %1707 = vmatpush.msra.mxu0 0.0
    %v1708 = vand.u32 %v481, 4294901760
    %v1709 = vsub.f32 %v481, %v1708
    %v1710 = vand.u32 %v1709, 4294901760
    %v1711 = vsub.f32 %v1709, %v1710
    %v1712 = vand.u32 %v1711, 4294901760
    %1713 = vmatpush.msra.mxu0 %v1712
    %v1714 = vand.u32 %v477, 4294901760
    %v1715 = vsub.f32 %v477, %v1714
    %v1716 = vand.u32 %v1715, 4294901760
    %v1717 = vsub.f32 %v1715, %v1716
    %v1718 = vand.u32 %v1717, 4294901760
    %1719 = vmatpush.msra.mxu0 %v1718
    %v1720 = vand.u32 %v876, 4294901760
    %1721 = vmatmul.f32.gmra.mxu0 %v1720
    %v1722 = vpop.f32.mrf.mxu0
    %v1723 = vadd.f32 %v1668, %v1722
    %v1724 = vand.u32 %v879, 4294901760
    %1725 = vmatmul.f32.gmra.mxu0 %v1724
    %v1726 = vpop.f32.mrf.mxu0
    %v1727 = vadd.f32 %v1676, %v1726
    %v1728 = vand.u32 %v882, 4294901760
    %1729 = vmatmul.f32.gmra.mxu0 %v1728
    %v1730 = vpop.f32.mrf.mxu0
    %v1731 = vadd.f32 %v1684, %v1730
    %v1732 = vand.u32 %v885, 4294901760
    %1733 = vmatmul.f32.gmra.mxu0 %v1732
    %v1734 = vpop.f32.mrf.mxu0
    %v1735 = vadd.f32 %v1692, %v1734
    %1736 = vdwg.mxu0
    %1737 = vmatpush.msra.mxu0 0.0
    %1738 = vmatpush.msra.mxu0 0.0
    %1739 = vmatpush.msra.mxu0 0.0
    %1740 = vmatpush.msra.mxu0 0.0
    %1741 = vmatpush.msra.mxu0 0.0
    %1742 = vmatpush.msra.mxu0 0.0
    %1743 = vmatpush.msra.mxu0 0.0
    %1744 = vmatpush.msra.mxu0 0.0
    %1745 = vmatpush.msra.mxu0 0.0
    %1746 = vmatpush.msra.mxu0 0.0
    %1747 = vmatpush.msra.mxu0 0.0
    %1748 = vmatpush.msra.mxu0 0.0
    %1749 = vmatpush.msra.mxu0 0.0
    %1750 = vmatpush.msra.mxu0 0.0
    %v1751 = vand.u32 %v481, 4294901760
    %v1752 = vsub.f32 %v481, %v1751
    %1753 = vmatpush.msra.mxu0 %v1752
    %v1754 = vand.u32 %v477, 4294901760
    %v1755 = vsub.f32 %v477, %v1754
    %1756 = vmatpush.msra.mxu0 %v1755
    %v1757 = vand.u32 %v876, 4294901760
    %v1758 = vsub.f32 %v876, %v1757
    %1759 = vmatmul.f32.gmra.mxu0 %v1758
    %v1760 = vpop.f32.mrf.mxu0
    %v1761 = vadd.f32 %v1723, %v1760
    %v1762 = vand.u32 %v879, 4294901760
    %v1763 = vsub.f32 %v879, %v1762
    %1764 = vmatmul.f32.gmra.mxu0 %v1763
    %v1765 = vpop.f32.mrf.mxu0
    %v1766 = vadd.f32 %v1727, %v1765
    %v1767 = vand.u32 %v882, 4294901760
    %v1768 = vsub.f32 %v882, %v1767
    %1769 = vmatmul.f32.gmra.mxu0 %v1768
    %v1770 = vpop.f32.mrf.mxu0
    %v1771 = vadd.f32 %v1731, %v1770
    %v1772 = vand.u32 %v885, 4294901760
    %v1773 = vsub.f32 %v885, %v1772
    %1774 = vmatmul.f32.gmra.mxu0 %v1773
    %v1775 = vpop.f32.mrf.mxu0
    %v1776 = vadd.f32 %v1735, %v1775
    %1777 = vdwg.mxu0
    %1778 = vmatpush.msra.mxu0 0.0
    %1779 = vmatpush.msra.mxu0 0.0
    %1780 = vmatpush.msra.mxu0 0.0
    %1781 = vmatpush.msra.mxu0 0.0
    %1782 = vmatpush.msra.mxu0 0.0
    %1783 = vmatpush.msra.mxu0 0.0
    %1784 = vmatpush.msra.mxu0 0.0
    %1785 = vmatpush.msra.mxu0 0.0
    %1786 = vmatpush.msra.mxu0 0.0
    %1787 = vmatpush.msra.mxu0 0.0
    %1788 = vmatpush.msra.mxu0 0.0
    %1789 = vmatpush.msra.mxu0 0.0
    %1790 = vmatpush.msra.mxu0 0.0
    %1791 = vmatpush.msra.mxu0 0.0
    %v1792 = vand.u32 %v481, 4294901760
    %1793 = vmatpush.msra.mxu0 %v1792
    %v1794 = vand.u32 %v477, 4294901760
    %1795 = vmatpush.msra.mxu0 %v1794
    %v1796 = vand.u32 %v876, 4294901760
    %v1797 = vsub.f32 %v876, %v1796
    %v1798 = vand.u32 %v1797, 4294901760
    %1799 = vmatmul.f32.gmra.mxu0 %v1798
    %v1800 = vpop.f32.mrf.mxu0
    %v1801 = vadd.f32 %v1761, %v1800
    %v1802 = vand.u32 %v879, 4294901760
    %v1803 = vsub.f32 %v879, %v1802
    %v1804 = vand.u32 %v1803, 4294901760
    %1805 = vmatmul.f32.gmra.mxu0 %v1804
    %v1806 = vpop.f32.mrf.mxu0
    %v1807 = vadd.f32 %v1766, %v1806
    %v1808 = vand.u32 %v882, 4294901760
    %v1809 = vsub.f32 %v882, %v1808
    %v1810 = vand.u32 %v1809, 4294901760
    %1811 = vmatmul.f32.gmra.mxu0 %v1810
    %v1812 = vpop.f32.mrf.mxu0
    %v1813 = vadd.f32 %v1771, %v1812
    %v1814 = vand.u32 %v885, 4294901760
    %v1815 = vsub.f32 %v885, %v1814
    %v1816 = vand.u32 %v1815, 4294901760
    %1817 = vmatmul.f32.gmra.mxu0 %v1816
    %v1818 = vpop.f32.mrf.mxu0
    %v1819 = vadd.f32 %v1776, %v1818
    %1820 = vdwg.mxu0
    %1821 = vmatpush.msra.mxu0 0.0
    %1822 = vmatpush.msra.mxu0 0.0
    %1823 = vmatpush.msra.mxu0 0.0
    %1824 = vmatpush.msra.mxu0 0.0
    %1825 = vmatpush.msra.mxu0 0.0
    %1826 = vmatpush.msra.mxu0 0.0
    %1827 = vmatpush.msra.mxu0 0.0
    %1828 = vmatpush.msra.mxu0 0.0
    %1829 = vmatpush.msra.mxu0 0.0
    %1830 = vmatpush.msra.mxu0 0.0
    %1831 = vmatpush.msra.mxu0 0.0
    %1832 = vmatpush.msra.mxu0 0.0
    %1833 = vmatpush.msra.mxu0 0.0
    %1834 = vmatpush.msra.mxu0 0.0
    %v1835 = vand.u32 %v481, 4294901760
    %v1836 = vsub.f32 %v481, %v1835
    %v1837 = vand.u32 %v1836, 4294901760
    %1838 = vmatpush.msra.mxu0 %v1837
    %v1839 = vand.u32 %v477, 4294901760
    %v1840 = vsub.f32 %v477, %v1839
    %v1841 = vand.u32 %v1840, 4294901760
    %1842 = vmatpush.msra.mxu0 %v1841
    %v1843 = vand.u32 %v876, 4294901760
    %1844 = vmatmul.f32.gmra.mxu0 %v1843
    %v1845 = vpop.f32.mrf.mxu0
    %v1846 = vadd.f32 %v1801, %v1845
    %v1847 = vand.u32 %v879, 4294901760
    %1848 = vmatmul.f32.gmra.mxu0 %v1847
    %v1849 = vpop.f32.mrf.mxu0
    %v1850 = vadd.f32 %v1807, %v1849
    %v1851 = vand.u32 %v882, 4294901760
    %1852 = vmatmul.f32.gmra.mxu0 %v1851
    %v1853 = vpop.f32.mrf.mxu0
    %v1854 = vadd.f32 %v1813, %v1853
    %v1855 = vand.u32 %v885, 4294901760
    %1856 = vmatmul.f32.gmra.mxu0 %v1855
    %v1857 = vpop.f32.mrf.mxu0
    %v1858 = vadd.f32 %v1819, %v1857
    %1859 = vdwg.mxu0
    %1860 = vmatpush.msra.mxu0 0.0
    %1861 = vmatpush.msra.mxu0 0.0
    %1862 = vmatpush.msra.mxu0 0.0
    %1863 = vmatpush.msra.mxu0 0.0
    %1864 = vmatpush.msra.mxu0 0.0
    %1865 = vmatpush.msra.mxu0 0.0
    %1866 = vmatpush.msra.mxu0 0.0
    %1867 = vmatpush.msra.mxu0 0.0
    %1868 = vmatpush.msra.mxu0 0.0
    %1869 = vmatpush.msra.mxu0 0.0
    %1870 = vmatpush.msra.mxu0 0.0
    %1871 = vmatpush.msra.mxu0 0.0
    %1872 = vmatpush.msra.mxu0 0.0
    %1873 = vmatpush.msra.mxu0 0.0
    %v1874 = vand.u32 %v481, 4294901760
    %1875 = vmatpush.msra.mxu0 %v1874
    %v1876 = vand.u32 %v477, 4294901760
    %1877 = vmatpush.msra.mxu0 %v1876
    %v1878 = vand.u32 %v876, 4294901760
    %1879 = vmatmul.f32.gmra.mxu0 %v1878
    %v1880 = vpop.f32.mrf.mxu0
    %v1881 = vadd.f32 %v1846, %v1880
    %v1882 = vand.u32 %v879, 4294901760
    %1883 = vmatmul.f32.gmra.mxu0 %v1882
    %v1884 = vpop.f32.mrf.mxu0
    %v1885 = vadd.f32 %v1850, %v1884
    %v1886 = vand.u32 %v882, 4294901760
    %1887 = vmatmul.f32.gmra.mxu0 %v1886
    %v1888 = vpop.f32.mrf.mxu0
    %v1889 = vadd.f32 %v1854, %v1888
    %v1890 = vand.u32 %v885, 4294901760
    %1891 = vmatmul.f32.gmra.mxu0 %v1890
    %v1892 = vpop.f32.mrf.mxu0
    %v1893 = vadd.f32 %v1858, %v1892
    %1894 = vdwg.mxu0
    %v1896 = vsel %vm90, %v29, 0
    %v1899 = vsel %vm90, %v30, 0
    %1901 = vmatpush.msra.mxu0 0.0
    %1902 = vmatpush.msra.mxu0 0.0
    %1903 = vmatpush.msra.mxu0 0.0
    %1904 = vmatpush.msra.mxu0 0.0
    %1905 = vmatpush.msra.mxu0 0.0
    %1906 = vmatpush.msra.mxu0 0.0
    %1907 = vmatpush.msra.mxu0 0.0
    %1908 = vmatpush.msra.mxu0 0.0
    %1909 = vmatpush.msra.mxu0 0.0
    %1910 = vmatpush.msra.mxu0 0.0
    %1911 = vmatpush.msra.mxu0 0.0
    %1912 = vmatpush.msra.mxu0 0.0
    %1913 = vmatpush.msra.mxu0 0.0
    %1914 = vmatpush.msra.mxu0 0.0
    %v1915 = vand.u32 %v81, 4294901760
    %1916 = vmatpush.msra.mxu0 %v1915
    %v1917 = vand.u32 %v80, 4294901760
    %1918 = vmatpush.msra.mxu0 %v1917
    %v1919 = vand.u32 %v1896, 4294901760
    %v1920 = vsub.f32 %v1896, %v1919
    %v1921 = vand.u32 %v1920, 4294901760
    %v1922 = vsub.f32 %v1920, %v1921
    %v1923 = vand.u32 %v1922, 4294901760
    %1924 = vmatmul.f32.gmra.mxu0 %v1923
    %v1925 = vpop.f32.mrf.mxu0
    %v1926 = vadd.f32 0.0, %v1925
    %v1927 = vand.u32 %v1899, 4294901760
    %v1928 = vsub.f32 %v1899, %v1927
    %v1929 = vand.u32 %v1928, 4294901760
    %v1930 = vsub.f32 %v1928, %v1929
    %v1931 = vand.u32 %v1930, 4294901760
    %1932 = vmatmul.f32.gmra.mxu0 %v1931
    %v1933 = vpop.f32.mrf.mxu0
    %v1934 = vadd.f32 0.0, %v1933
    %1935 = vdwg.mxu0
    %1936 = vmatpush.msra.mxu0 0.0
    %1937 = vmatpush.msra.mxu0 0.0
    %1938 = vmatpush.msra.mxu0 0.0
    %1939 = vmatpush.msra.mxu0 0.0
    %1940 = vmatpush.msra.mxu0 0.0
    %1941 = vmatpush.msra.mxu0 0.0
    %1942 = vmatpush.msra.mxu0 0.0
    %1943 = vmatpush.msra.mxu0 0.0
    %1944 = vmatpush.msra.mxu0 0.0
    %1945 = vmatpush.msra.mxu0 0.0
    %1946 = vmatpush.msra.mxu0 0.0
    %1947 = vmatpush.msra.mxu0 0.0
    %1948 = vmatpush.msra.mxu0 0.0
    %1949 = vmatpush.msra.mxu0 0.0
    %v1950 = vand.u32 %v81, 4294901760
    %v1951 = vsub.f32 %v81, %v1950
    %v1952 = vand.u32 %v1951, 4294901760
    %v1953 = vsub.f32 %v1951, %v1952
    %v1954 = vand.u32 %v1953, 4294901760
    %1955 = vmatpush.msra.mxu0 %v1954
    %v1956 = vand.u32 %v80, 4294901760
    %v1957 = vsub.f32 %v80, %v1956
    %v1958 = vand.u32 %v1957, 4294901760
    %v1959 = vsub.f32 %v1957, %v1958
    %v1960 = vand.u32 %v1959, 4294901760
    %1961 = vmatpush.msra.mxu0 %v1960
    %v1962 = vand.u32 %v1896, 4294901760
    %1963 = vmatmul.f32.gmra.mxu0 %v1962
    %v1964 = vpop.f32.mrf.mxu0
    %v1965 = vadd.f32 %v1926, %v1964
    %v1966 = vand.u32 %v1899, 4294901760
    %1967 = vmatmul.f32.gmra.mxu0 %v1966
    %v1968 = vpop.f32.mrf.mxu0
    %v1969 = vadd.f32 %v1934, %v1968
    %1970 = vdwg.mxu0
    %1971 = vmatpush.msra.mxu0 0.0
    %1972 = vmatpush.msra.mxu0 0.0
    %1973 = vmatpush.msra.mxu0 0.0
    %1974 = vmatpush.msra.mxu0 0.0
    %1975 = vmatpush.msra.mxu0 0.0
    %1976 = vmatpush.msra.mxu0 0.0
    %1977 = vmatpush.msra.mxu0 0.0
    %1978 = vmatpush.msra.mxu0 0.0
    %1979 = vmatpush.msra.mxu0 0.0
    %1980 = vmatpush.msra.mxu0 0.0
    %1981 = vmatpush.msra.mxu0 0.0
    %1982 = vmatpush.msra.mxu0 0.0
    %1983 = vmatpush.msra.mxu0 0.0
    %1984 = vmatpush.msra.mxu0 0.0
    %v1985 = vand.u32 %v81, 4294901760
    %v1986 = vsub.f32 %v81, %v1985
    %1987 = vmatpush.msra.mxu0 %v1986
    %v1988 = vand.u32 %v80, 4294901760
    %v1989 = vsub.f32 %v80, %v1988
    %1990 = vmatpush.msra.mxu0 %v1989
    %v1991 = vand.u32 %v1896, 4294901760
    %v1992 = vsub.f32 %v1896, %v1991
    %1993 = vmatmul.f32.gmra.mxu0 %v1992
    %v1994 = vpop.f32.mrf.mxu0
    %v1995 = vadd.f32 %v1965, %v1994
    %v1996 = vand.u32 %v1899, 4294901760
    %v1997 = vsub.f32 %v1899, %v1996
    %1998 = vmatmul.f32.gmra.mxu0 %v1997
    %v1999 = vpop.f32.mrf.mxu0
    %v2000 = vadd.f32 %v1969, %v1999
    %2001 = vdwg.mxu0
    %2002 = vmatpush.msra.mxu0 0.0
    %2003 = vmatpush.msra.mxu0 0.0
    %2004 = vmatpush.msra.mxu0 0.0
    %2005 = vmatpush.msra.mxu0 0.0
    %2006 = vmatpush.msra.mxu0 0.0
    %2007 = vmatpush.msra.mxu0 0.0
    %2008 = vmatpush.msra.mxu0 0.0
    %2009 = vmatpush.msra.mxu0 0.0
    %2010 = vmatpush.msra.mxu0 0.0
    %2011 = vmatpush.msra.mxu0 0.0
    %2012 = vmatpush.msra.mxu0 0.0
    %2013 = vmatpush.msra.mxu0 0.0
    %2014 = vmatpush.msra.mxu0 0.0
    %2015 = vmatpush.msra.mxu0 0.0
    %v2016 = vand.u32 %v81, 4294901760
    %2017 = vmatpush.msra.mxu0 %v2016
    %v2018 = vand.u32 %v80, 4294901760
    %2019 = vmatpush.msra.mxu0 %v2018
    %v2020 = vand.u32 %v1896, 4294901760
    %v2021 = vsub.f32 %v1896, %v2020
    %v2022 = vand.u32 %v2021, 4294901760
    %2023 = vmatmul.f32.gmra.mxu0 %v2022
    %v2024 = vpop.f32.mrf.mxu0
    %v2025 = vadd.f32 %v1995, %v2024
    %v2026 = vand.u32 %v1899, 4294901760
    %v2027 = vsub.f32 %v1899, %v2026
    %v2028 = vand.u32 %v2027, 4294901760
    %2029 = vmatmul.f32.gmra.mxu0 %v2028
    %v2030 = vpop.f32.mrf.mxu0
    %v2031 = vadd.f32 %v2000, %v2030
    %2032 = vdwg.mxu0
    %2033 = vmatpush.msra.mxu0 0.0
    %2034 = vmatpush.msra.mxu0 0.0
    %2035 = vmatpush.msra.mxu0 0.0
    %2036 = vmatpush.msra.mxu0 0.0
    %2037 = vmatpush.msra.mxu0 0.0
    %2038 = vmatpush.msra.mxu0 0.0
    %2039 = vmatpush.msra.mxu0 0.0
    %2040 = vmatpush.msra.mxu0 0.0
    %2041 = vmatpush.msra.mxu0 0.0
    %2042 = vmatpush.msra.mxu0 0.0
    %2043 = vmatpush.msra.mxu0 0.0
    %2044 = vmatpush.msra.mxu0 0.0
    %2045 = vmatpush.msra.mxu0 0.0
    %2046 = vmatpush.msra.mxu0 0.0
    %v2047 = vand.u32 %v81, 4294901760
    %v2048 = vsub.f32 %v81, %v2047
    %v2049 = vand.u32 %v2048, 4294901760
    %2050 = vmatpush.msra.mxu0 %v2049
    %v2051 = vand.u32 %v80, 4294901760
    %v2052 = vsub.f32 %v80, %v2051
    %v2053 = vand.u32 %v2052, 4294901760
    %2054 = vmatpush.msra.mxu0 %v2053
    %v2055 = vand.u32 %v1896, 4294901760
    %2056 = vmatmul.f32.gmra.mxu0 %v2055
    %v2057 = vpop.f32.mrf.mxu0
    %v2058 = vadd.f32 %v2025, %v2057
    %v2059 = vand.u32 %v1899, 4294901760
    %2060 = vmatmul.f32.gmra.mxu0 %v2059
    %v2061 = vpop.f32.mrf.mxu0
    %v2062 = vadd.f32 %v2031, %v2061
    %2063 = vdwg.mxu0
    %2064 = vmatpush.msra.mxu0 0.0
    %2065 = vmatpush.msra.mxu0 0.0
    %2066 = vmatpush.msra.mxu0 0.0
    %2067 = vmatpush.msra.mxu0 0.0
    %2068 = vmatpush.msra.mxu0 0.0
    %2069 = vmatpush.msra.mxu0 0.0
    %2070 = vmatpush.msra.mxu0 0.0
    %2071 = vmatpush.msra.mxu0 0.0
    %2072 = vmatpush.msra.mxu0 0.0
    %2073 = vmatpush.msra.mxu0 0.0
    %2074 = vmatpush.msra.mxu0 0.0
    %2075 = vmatpush.msra.mxu0 0.0
    %2076 = vmatpush.msra.mxu0 0.0
    %2077 = vmatpush.msra.mxu0 0.0
    %v2078 = vand.u32 %v81, 4294901760
    %2079 = vmatpush.msra.mxu0 %v2078
    %v2080 = vand.u32 %v80, 4294901760
    %2081 = vmatpush.msra.mxu0 %v2080
    %v2082 = vand.u32 %v1896, 4294901760
    %2083 = vmatmul.f32.gmra.mxu0 %v2082
    %v2084 = vpop.f32.mrf.mxu0
    %v2085 = vadd.f32 %v2058, %v2084
    %v2086 = vand.u32 %v1899, 4294901760
    %2087 = vmatmul.f32.gmra.mxu0 %v2086
    %v2088 = vpop.f32.mrf.mxu0
    %v2089 = vadd.f32 %v2062, %v2088
    %2090 = vdwg.mxu0
    %v2092 = vsel %vm90, %v37, 0
    %v2095 = vsel %vm90, %v38, 0
    %2097 = vmatpush.msra.mxu0 0.0
    %2098 = vmatpush.msra.mxu0 0.0
    %2099 = vmatpush.msra.mxu0 0.0
    %2100 = vmatpush.msra.mxu0 0.0
    %2101 = vmatpush.msra.mxu0 0.0
    %2102 = vmatpush.msra.mxu0 0.0
    %2103 = vmatpush.msra.mxu0 0.0
    %2104 = vmatpush.msra.mxu0 0.0
    %2105 = vmatpush.msra.mxu0 0.0
    %2106 = vmatpush.msra.mxu0 0.0
    %2107 = vmatpush.msra.mxu0 0.0
    %2108 = vmatpush.msra.mxu0 0.0
    %2109 = vmatpush.msra.mxu0 0.0
    %2110 = vmatpush.msra.mxu0 0.0
    %v2111 = vand.u32 %v81, 4294901760
    %2112 = vmatpush.msra.mxu0 %v2111
    %v2113 = vand.u32 %v80, 4294901760
    %2114 = vmatpush.msra.mxu0 %v2113
    %v2115 = vand.u32 %v2092, 4294901760
    %v2116 = vsub.f32 %v2092, %v2115
    %v2117 = vand.u32 %v2116, 4294901760
    %v2118 = vsub.f32 %v2116, %v2117
    %v2119 = vand.u32 %v2118, 4294901760
    %2120 = vmatmul.f32.gmra.mxu0 %v2119
    %v2121 = vpop.f32.mrf.mxu0
    %v2122 = vadd.f32 0.0, %v2121
    %v2123 = vand.u32 %v2095, 4294901760
    %v2124 = vsub.f32 %v2095, %v2123
    %v2125 = vand.u32 %v2124, 4294901760
    %v2126 = vsub.f32 %v2124, %v2125
    %v2127 = vand.u32 %v2126, 4294901760
    %2128 = vmatmul.f32.gmra.mxu0 %v2127
    %v2129 = vpop.f32.mrf.mxu0
    %v2130 = vadd.f32 0.0, %v2129
    %2131 = vdwg.mxu0
    %2132 = vmatpush.msra.mxu0 0.0
    %2133 = vmatpush.msra.mxu0 0.0
    %2134 = vmatpush.msra.mxu0 0.0
    %2135 = vmatpush.msra.mxu0 0.0
    %2136 = vmatpush.msra.mxu0 0.0
    %2137 = vmatpush.msra.mxu0 0.0
    %2138 = vmatpush.msra.mxu0 0.0
    %2139 = vmatpush.msra.mxu0 0.0
    %2140 = vmatpush.msra.mxu0 0.0
    %2141 = vmatpush.msra.mxu0 0.0
    %2142 = vmatpush.msra.mxu0 0.0
    %2143 = vmatpush.msra.mxu0 0.0
    %2144 = vmatpush.msra.mxu0 0.0
    %2145 = vmatpush.msra.mxu0 0.0
    %v2146 = vand.u32 %v81, 4294901760
    %v2147 = vsub.f32 %v81, %v2146
    %v2148 = vand.u32 %v2147, 4294901760
    %v2149 = vsub.f32 %v2147, %v2148
    %v2150 = vand.u32 %v2149, 4294901760
    %2151 = vmatpush.msra.mxu0 %v2150
    %v2152 = vand.u32 %v80, 4294901760
    %v2153 = vsub.f32 %v80, %v2152
    %v2154 = vand.u32 %v2153, 4294901760
    %v2155 = vsub.f32 %v2153, %v2154
    %v2156 = vand.u32 %v2155, 4294901760
    %2157 = vmatpush.msra.mxu0 %v2156
    %v2158 = vand.u32 %v2092, 4294901760
    %2159 = vmatmul.f32.gmra.mxu0 %v2158
    %v2160 = vpop.f32.mrf.mxu0
    %v2161 = vadd.f32 %v2122, %v2160
    %v2162 = vand.u32 %v2095, 4294901760
    %2163 = vmatmul.f32.gmra.mxu0 %v2162
    %v2164 = vpop.f32.mrf.mxu0
    %v2165 = vadd.f32 %v2130, %v2164
    %2166 = vdwg.mxu0
    %2167 = vmatpush.msra.mxu0 0.0
    %2168 = vmatpush.msra.mxu0 0.0
    %2169 = vmatpush.msra.mxu0 0.0
    %2170 = vmatpush.msra.mxu0 0.0
    %2171 = vmatpush.msra.mxu0 0.0
    %2172 = vmatpush.msra.mxu0 0.0
    %2173 = vmatpush.msra.mxu0 0.0
    %2174 = vmatpush.msra.mxu0 0.0
    %2175 = vmatpush.msra.mxu0 0.0
    %2176 = vmatpush.msra.mxu0 0.0
    %2177 = vmatpush.msra.mxu0 0.0
    %2178 = vmatpush.msra.mxu0 0.0
    %2179 = vmatpush.msra.mxu0 0.0
    %2180 = vmatpush.msra.mxu0 0.0
    %v2181 = vand.u32 %v81, 4294901760
    %v2182 = vsub.f32 %v81, %v2181
    %2183 = vmatpush.msra.mxu0 %v2182
    %v2184 = vand.u32 %v80, 4294901760
    %v2185 = vsub.f32 %v80, %v2184
    %2186 = vmatpush.msra.mxu0 %v2185
    %v2187 = vand.u32 %v2092, 4294901760
    %v2188 = vsub.f32 %v2092, %v2187
    %2189 = vmatmul.f32.gmra.mxu0 %v2188
    %v2190 = vpop.f32.mrf.mxu0
    %v2191 = vadd.f32 %v2161, %v2190
    %v2192 = vand.u32 %v2095, 4294901760
    %v2193 = vsub.f32 %v2095, %v2192
    %2194 = vmatmul.f32.gmra.mxu0 %v2193
    %v2195 = vpop.f32.mrf.mxu0
    %v2196 = vadd.f32 %v2165, %v2195
    %2197 = vdwg.mxu0
    %2198 = vmatpush.msra.mxu0 0.0
    %2199 = vmatpush.msra.mxu0 0.0
    %2200 = vmatpush.msra.mxu0 0.0
    %2201 = vmatpush.msra.mxu0 0.0
    %2202 = vmatpush.msra.mxu0 0.0
    %2203 = vmatpush.msra.mxu0 0.0
    %2204 = vmatpush.msra.mxu0 0.0
    %2205 = vmatpush.msra.mxu0 0.0
    %2206 = vmatpush.msra.mxu0 0.0
    %2207 = vmatpush.msra.mxu0 0.0
    %2208 = vmatpush.msra.mxu0 0.0
    %2209 = vmatpush.msra.mxu0 0.0
    %2210 = vmatpush.msra.mxu0 0.0
    %2211 = vmatpush.msra.mxu0 0.0
    %v2212 = vand.u32 %v81, 4294901760
    %2213 = vmatpush.msra.mxu0 %v2212
    %v2214 = vand.u32 %v80, 4294901760
    %2215 = vmatpush.msra.mxu0 %v2214
    %v2216 = vand.u32 %v2092, 4294901760
    %v2217 = vsub.f32 %v2092, %v2216
    %v2218 = vand.u32 %v2217, 4294901760
    %2219 = vmatmul.f32.gmra.mxu0 %v2218
    %v2220 = vpop.f32.mrf.mxu0
    %v2221 = vadd.f32 %v2191, %v2220
    %v2222 = vand.u32 %v2095, 4294901760
    %v2223 = vsub.f32 %v2095, %v2222
    %v2224 = vand.u32 %v2223, 4294901760
    %2225 = vmatmul.f32.gmra.mxu0 %v2224
    %v2226 = vpop.f32.mrf.mxu0
    %v2227 = vadd.f32 %v2196, %v2226
    %2228 = vdwg.mxu0
    %2229 = vmatpush.msra.mxu0 0.0
    %2230 = vmatpush.msra.mxu0 0.0
    %2231 = vmatpush.msra.mxu0 0.0
    %2232 = vmatpush.msra.mxu0 0.0
    %2233 = vmatpush.msra.mxu0 0.0
    %2234 = vmatpush.msra.mxu0 0.0
    %2235 = vmatpush.msra.mxu0 0.0
    %2236 = vmatpush.msra.mxu0 0.0
    %2237 = vmatpush.msra.mxu0 0.0
    %2238 = vmatpush.msra.mxu0 0.0
    %2239 = vmatpush.msra.mxu0 0.0
    %2240 = vmatpush.msra.mxu0 0.0
    %2241 = vmatpush.msra.mxu0 0.0
    %2242 = vmatpush.msra.mxu0 0.0
    %v2243 = vand.u32 %v81, 4294901760
    %v2244 = vsub.f32 %v81, %v2243
    %v2245 = vand.u32 %v2244, 4294901760
    %2246 = vmatpush.msra.mxu0 %v2245
    %v2247 = vand.u32 %v80, 4294901760
    %v2248 = vsub.f32 %v80, %v2247
    %v2249 = vand.u32 %v2248, 4294901760
    %2250 = vmatpush.msra.mxu0 %v2249
    %v2251 = vand.u32 %v2092, 4294901760
    %2252 = vmatmul.f32.gmra.mxu0 %v2251
    %v2253 = vpop.f32.mrf.mxu0
    %v2254 = vadd.f32 %v2221, %v2253
    %v2255 = vand.u32 %v2095, 4294901760
    %2256 = vmatmul.f32.gmra.mxu0 %v2255
    %v2257 = vpop.f32.mrf.mxu0
    %v2258 = vadd.f32 %v2227, %v2257
    %2259 = vdwg.mxu0
    %2260 = vmatpush.msra.mxu0 0.0
    %2261 = vmatpush.msra.mxu0 0.0
    %2262 = vmatpush.msra.mxu0 0.0
    %2263 = vmatpush.msra.mxu0 0.0
    %2264 = vmatpush.msra.mxu0 0.0
    %2265 = vmatpush.msra.mxu0 0.0
    %2266 = vmatpush.msra.mxu0 0.0
    %2267 = vmatpush.msra.mxu0 0.0
    %2268 = vmatpush.msra.mxu0 0.0
    %2269 = vmatpush.msra.mxu0 0.0
    %2270 = vmatpush.msra.mxu0 0.0
    %2271 = vmatpush.msra.mxu0 0.0
    %2272 = vmatpush.msra.mxu0 0.0
    %2273 = vmatpush.msra.mxu0 0.0
    %v2274 = vand.u32 %v81, 4294901760
    %2275 = vmatpush.msra.mxu0 %v2274
    %v2276 = vand.u32 %v80, 4294901760
    %2277 = vmatpush.msra.mxu0 %v2276
    %v2278 = vand.u32 %v2092, 4294901760
    %2279 = vmatmul.f32.gmra.mxu0 %v2278
    %v2280 = vpop.f32.mrf.mxu0
    %v2281 = vadd.f32 %v2254, %v2280
    %v2282 = vand.u32 %v2095, 4294901760
    %2283 = vmatmul.f32.gmra.mxu0 %v2282
    %v2284 = vpop.f32.mrf.mxu0
    %v2285 = vadd.f32 %v2258, %v2284
    %2286 = vdwg.mxu0
    %v2288 = vsel %vm90, %v70, 0
    %v2291 = vsel %vm90, %v71, 0
    %v2294 = vsel %vm90, %v72, 0
    %v2297 = vsel %vm90, %v73, 0
    %2299 = vmatpush.msra.mxu0 0.0
    %2300 = vmatpush.msra.mxu0 0.0
    %2301 = vmatpush.msra.mxu0 0.0
    %2302 = vmatpush.msra.mxu0 0.0
    %2303 = vmatpush.msra.mxu0 0.0
    %2304 = vmatpush.msra.mxu0 0.0
    %2305 = vmatpush.msra.mxu0 0.0
    %2306 = vmatpush.msra.mxu0 0.0
    %2307 = vmatpush.msra.mxu0 0.0
    %2308 = vmatpush.msra.mxu0 0.0
    %2309 = vmatpush.msra.mxu0 0.0
    %2310 = vmatpush.msra.mxu0 0.0
    %2311 = vmatpush.msra.mxu0 0.0
    %2312 = vmatpush.msra.mxu0 0.0
    %v2313 = vand.u32 %v2089, 4294901760
    %2314 = vmatpush.msra.mxu0 %v2313
    %v2315 = vand.u32 %v2085, 4294901760
    %2316 = vmatpush.msra.mxu0 %v2315
    %v2317 = vand.u32 %v2288, 4294901760
    %v2318 = vsub.f32 %v2288, %v2317
    %v2319 = vand.u32 %v2318, 4294901760
    %v2320 = vsub.f32 %v2318, %v2319
    %v2321 = vand.u32 %v2320, 4294901760
    %2322 = vmatmul.f32.gmra.mxu0 %v2321
    %v2323 = vpop.f32.mrf.mxu0
    %v2324 = vadd.f32 0.0, %v2323
    %v2325 = vand.u32 %v2291, 4294901760
    %v2326 = vsub.f32 %v2291, %v2325
    %v2327 = vand.u32 %v2326, 4294901760
    %v2328 = vsub.f32 %v2326, %v2327
    %v2329 = vand.u32 %v2328, 4294901760
    %2330 = vmatmul.f32.gmra.mxu0 %v2329
    %v2331 = vpop.f32.mrf.mxu0
    %v2332 = vadd.f32 0.0, %v2331
    %v2333 = vand.u32 %v2294, 4294901760
    %v2334 = vsub.f32 %v2294, %v2333
    %v2335 = vand.u32 %v2334, 4294901760
    %v2336 = vsub.f32 %v2334, %v2335
    %v2337 = vand.u32 %v2336, 4294901760
    %2338 = vmatmul.f32.gmra.mxu0 %v2337
    %v2339 = vpop.f32.mrf.mxu0
    %v2340 = vadd.f32 0.0, %v2339
    %v2341 = vand.u32 %v2297, 4294901760
    %v2342 = vsub.f32 %v2297, %v2341
    %v2343 = vand.u32 %v2342, 4294901760
    %v2344 = vsub.f32 %v2342, %v2343
    %v2345 = vand.u32 %v2344, 4294901760
    %2346 = vmatmul.f32.gmra.mxu0 %v2345
    %v2347 = vpop.f32.mrf.mxu0
    %v2348 = vadd.f32 0.0, %v2347
    %2349 = vdwg.mxu0
    %2350 = vmatpush.msra.mxu0 0.0
    %2351 = vmatpush.msra.mxu0 0.0
    %2352 = vmatpush.msra.mxu0 0.0
    %2353 = vmatpush.msra.mxu0 0.0
    %2354 = vmatpush.msra.mxu0 0.0
    %2355 = vmatpush.msra.mxu0 0.0
    %2356 = vmatpush.msra.mxu0 0.0
    %2357 = vmatpush.msra.mxu0 0.0
    %2358 = vmatpush.msra.mxu0 0.0
    %2359 = vmatpush.msra.mxu0 0.0
    %2360 = vmatpush.msra.mxu0 0.0
    %2361 = vmatpush.msra.mxu0 0.0
    %2362 = vmatpush.msra.mxu0 0.0
    %2363 = vmatpush.msra.mxu0 0.0
    %v2364 = vand.u32 %v2089, 4294901760
    %v2365 = vsub.f32 %v2089, %v2364
    %v2366 = vand.u32 %v2365, 4294901760
    %v2367 = vsub.f32 %v2365, %v2366
    %v2368 = vand.u32 %v2367, 4294901760
    %2369 = vmatpush.msra.mxu0 %v2368
    %v2370 = vand.u32 %v2085, 4294901760
    %v2371 = vsub.f32 %v2085, %v2370
    %v2372 = vand.u32 %v2371, 4294901760
    %v2373 = vsub.f32 %v2371, %v2372
    %v2374 = vand.u32 %v2373, 4294901760
    %2375 = vmatpush.msra.mxu0 %v2374
    %v2376 = vand.u32 %v2288, 4294901760
    %2377 = vmatmul.f32.gmra.mxu0 %v2376
    %v2378 = vpop.f32.mrf.mxu0
    %v2379 = vadd.f32 %v2324, %v2378
    %v2380 = vand.u32 %v2291, 4294901760
    %2381 = vmatmul.f32.gmra.mxu0 %v2380
    %v2382 = vpop.f32.mrf.mxu0
    %v2383 = vadd.f32 %v2332, %v2382
    %v2384 = vand.u32 %v2294, 4294901760
    %2385 = vmatmul.f32.gmra.mxu0 %v2384
    %v2386 = vpop.f32.mrf.mxu0
    %v2387 = vadd.f32 %v2340, %v2386
    %v2388 = vand.u32 %v2297, 4294901760
    %2389 = vmatmul.f32.gmra.mxu0 %v2388
    %v2390 = vpop.f32.mrf.mxu0
    %v2391 = vadd.f32 %v2348, %v2390
    %2392 = vdwg.mxu0
    %2393 = vmatpush.msra.mxu0 0.0
    %2394 = vmatpush.msra.mxu0 0.0
    %2395 = vmatpush.msra.mxu0 0.0
    %2396 = vmatpush.msra.mxu0 0.0
    %2397 = vmatpush.msra.mxu0 0.0
    %2398 = vmatpush.msra.mxu0 0.0
    %2399 = vmatpush.msra.mxu0 0.0
    %2400 = vmatpush.msra.mxu0 0.0
    %2401 = vmatpush.msra.mxu0 0.0
    %2402 = vmatpush.msra.mxu0 0.0
    %2403 = vmatpush.msra.mxu0 0.0
    %2404 = vmatpush.msra.mxu0 0.0
    %2405 = vmatpush.msra.mxu0 0.0
    %2406 = vmatpush.msra.mxu0 0.0
    %v2407 = vand.u32 %v2089, 4294901760
    %v2408 = vsub.f32 %v2089, %v2407
    %2409 = vmatpush.msra.mxu0 %v2408
    %v2410 = vand.u32 %v2085, 4294901760
    %v2411 = vsub.f32 %v2085, %v2410
    %2412 = vmatpush.msra.mxu0 %v2411
    %v2413 = vand.u32 %v2288, 4294901760
    %v2414 = vsub.f32 %v2288, %v2413
    %2415 = vmatmul.f32.gmra.mxu0 %v2414
    %v2416 = vpop.f32.mrf.mxu0
    %v2417 = vadd.f32 %v2379, %v2416
    %v2418 = vand.u32 %v2291, 4294901760
    %v2419 = vsub.f32 %v2291, %v2418
    %2420 = vmatmul.f32.gmra.mxu0 %v2419
    %v2421 = vpop.f32.mrf.mxu0
    %v2422 = vadd.f32 %v2383, %v2421
    %v2423 = vand.u32 %v2294, 4294901760
    %v2424 = vsub.f32 %v2294, %v2423
    %2425 = vmatmul.f32.gmra.mxu0 %v2424
    %v2426 = vpop.f32.mrf.mxu0
    %v2427 = vadd.f32 %v2387, %v2426
    %v2428 = vand.u32 %v2297, 4294901760
    %v2429 = vsub.f32 %v2297, %v2428
    %2430 = vmatmul.f32.gmra.mxu0 %v2429
    %v2431 = vpop.f32.mrf.mxu0
    %v2432 = vadd.f32 %v2391, %v2431
    %2433 = vdwg.mxu0
    %2434 = vmatpush.msra.mxu0 0.0
    %2435 = vmatpush.msra.mxu0 0.0
    %2436 = vmatpush.msra.mxu0 0.0
    %2437 = vmatpush.msra.mxu0 0.0
    %2438 = vmatpush.msra.mxu0 0.0
    %2439 = vmatpush.msra.mxu0 0.0
    %2440 = vmatpush.msra.mxu0 0.0
    %2441 = vmatpush.msra.mxu0 0.0
    %2442 = vmatpush.msra.mxu0 0.0
    %2443 = vmatpush.msra.mxu0 0.0
    %2444 = vmatpush.msra.mxu0 0.0
    %2445 = vmatpush.msra.mxu0 0.0
    %2446 = vmatpush.msra.mxu0 0.0
    %2447 = vmatpush.msra.mxu0 0.0
    %v2448 = vand.u32 %v2089, 4294901760
    %2449 = vmatpush.msra.mxu0 %v2448
    %v2450 = vand.u32 %v2085, 4294901760
    %2451 = vmatpush.msra.mxu0 %v2450
    %v2452 = vand.u32 %v2288, 4294901760
    %v2453 = vsub.f32 %v2288, %v2452
    %v2454 = vand.u32 %v2453, 4294901760
    %2455 = vmatmul.f32.gmra.mxu0 %v2454
    %v2456 = vpop.f32.mrf.mxu0
    %v2457 = vadd.f32 %v2417, %v2456
    %v2458 = vand.u32 %v2291, 4294901760
    %v2459 = vsub.f32 %v2291, %v2458
    %v2460 = vand.u32 %v2459, 4294901760
    %2461 = vmatmul.f32.gmra.mxu0 %v2460
    %v2462 = vpop.f32.mrf.mxu0
    %v2463 = vadd.f32 %v2422, %v2462
    %v2464 = vand.u32 %v2294, 4294901760
    %v2465 = vsub.f32 %v2294, %v2464
    %v2466 = vand.u32 %v2465, 4294901760
    %2467 = vmatmul.f32.gmra.mxu0 %v2466
    %v2468 = vpop.f32.mrf.mxu0
    %v2469 = vadd.f32 %v2427, %v2468
    %v2470 = vand.u32 %v2297, 4294901760
    %v2471 = vsub.f32 %v2297, %v2470
    %v2472 = vand.u32 %v2471, 4294901760
    %2473 = vmatmul.f32.gmra.mxu0 %v2472
    %v2474 = vpop.f32.mrf.mxu0
    %v2475 = vadd.f32 %v2432, %v2474
    %2476 = vdwg.mxu0
    %2477 = vmatpush.msra.mxu0 0.0
    %2478 = vmatpush.msra.mxu0 0.0
    %2479 = vmatpush.msra.mxu0 0.0
    %2480 = vmatpush.msra.mxu0 0.0
    %2481 = vmatpush.msra.mxu0 0.0
    %2482 = vmatpush.msra.mxu0 0.0
    %2483 = vmatpush.msra.mxu0 0.0
    %2484 = vmatpush.msra.mxu0 0.0
    %2485 = vmatpush.msra.mxu0 0.0
    %2486 = vmatpush.msra.mxu0 0.0
    %2487 = vmatpush.msra.mxu0 0.0
    %2488 = vmatpush.msra.mxu0 0.0
    %2489 = vmatpush.msra.mxu0 0.0
    %2490 = vmatpush.msra.mxu0 0.0
    %v2491 = vand.u32 %v2089, 4294901760
    %v2492 = vsub.f32 %v2089, %v2491
    %v2493 = vand.u32 %v2492, 4294901760
    %2494 = vmatpush.msra.mxu0 %v2493
    %v2495 = vand.u32 %v2085, 4294901760
    %v2496 = vsub.f32 %v2085, %v2495
    %v2497 = vand.u32 %v2496, 4294901760
    %2498 = vmatpush.msra.mxu0 %v2497
    %v2499 = vand.u32 %v2288, 4294901760
    %2500 = vmatmul.f32.gmra.mxu0 %v2499
    %v2501 = vpop.f32.mrf.mxu0
    %v2502 = vadd.f32 %v2457, %v2501
    %v2503 = vand.u32 %v2291, 4294901760
    %2504 = vmatmul.f32.gmra.mxu0 %v2503
    %v2505 = vpop.f32.mrf.mxu0
    %v2506 = vadd.f32 %v2463, %v2505
    %v2507 = vand.u32 %v2294, 4294901760
    %2508 = vmatmul.f32.gmra.mxu0 %v2507
    %v2509 = vpop.f32.mrf.mxu0
    %v2510 = vadd.f32 %v2469, %v2509
    %v2511 = vand.u32 %v2297, 4294901760
    %2512 = vmatmul.f32.gmra.mxu0 %v2511
    %v2513 = vpop.f32.mrf.mxu0
    %v2514 = vadd.f32 %v2475, %v2513
    %2515 = vdwg.mxu0
    %2516 = vmatpush.msra.mxu0 0.0
    %2517 = vmatpush.msra.mxu0 0.0
    %2518 = vmatpush.msra.mxu0 0.0
    %2519 = vmatpush.msra.mxu0 0.0
    %2520 = vmatpush.msra.mxu0 0.0
    %2521 = vmatpush.msra.mxu0 0.0
    %2522 = vmatpush.msra.mxu0 0.0
    %2523 = vmatpush.msra.mxu0 0.0
    %2524 = vmatpush.msra.mxu0 0.0
    %2525 = vmatpush.msra.mxu0 0.0
    %2526 = vmatpush.msra.mxu0 0.0
    %2527 = vmatpush.msra.mxu0 0.0
    %2528 = vmatpush.msra.mxu0 0.0
    %2529 = vmatpush.msra.mxu0 0.0
    %v2530 = vand.u32 %v2089, 4294901760
    %2531 = vmatpush.msra.mxu0 %v2530
    %v2532 = vand.u32 %v2085, 4294901760
    %2533 = vmatpush.msra.mxu0 %v2532
    %v2534 = vand.u32 %v2288, 4294901760
    %2535 = vmatmul.f32.gmra.mxu0 %v2534
    %v2536 = vpop.f32.mrf.mxu0
    %v2537 = vadd.f32 %v2502, %v2536
    %v2538 = vand.u32 %v2291, 4294901760
    %2539 = vmatmul.f32.gmra.mxu0 %v2538
    %v2540 = vpop.f32.mrf.mxu0
    %v2541 = vadd.f32 %v2506, %v2540
    %v2542 = vand.u32 %v2294, 4294901760
    %2543 = vmatmul.f32.gmra.mxu0 %v2542
    %v2544 = vpop.f32.mrf.mxu0
    %v2545 = vadd.f32 %v2510, %v2544
    %v2546 = vand.u32 %v2297, 4294901760
    %2547 = vmatmul.f32.gmra.mxu0 %v2546
    %v2548 = vpop.f32.mrf.mxu0
    %v2549 = vadd.f32 %v2514, %v2548
    %2550 = vdwg.mxu0
    %2551 = vmatpush.msra.mxu0 0.0
    %2552 = vmatpush.msra.mxu0 0.0
    %2553 = vmatpush.msra.mxu0 0.0
    %2554 = vmatpush.msra.mxu0 0.0
    %2555 = vmatpush.msra.mxu0 0.0
    %2556 = vmatpush.msra.mxu0 0.0
    %2557 = vmatpush.msra.mxu0 0.0
    %2558 = vmatpush.msra.mxu0 0.0
    %2559 = vmatpush.msra.mxu0 0.0
    %2560 = vmatpush.msra.mxu0 0.0
    %2561 = vmatpush.msra.mxu0 0.0
    %2562 = vmatpush.msra.mxu0 0.0
    %2563 = vmatpush.msra.mxu0 0.0
    %2564 = vmatpush.msra.mxu0 0.0
    %v2565 = vand.u32 %v2285, 4294901760
    %2566 = vmatpush.msra.mxu0 %v2565
    %v2567 = vand.u32 %v2281, 4294901760
    %2568 = vmatpush.msra.mxu0 %v2567
    %v2569 = vand.u32 %v2288, 4294901760
    %v2570 = vsub.f32 %v2288, %v2569
    %v2571 = vand.u32 %v2570, 4294901760
    %v2572 = vsub.f32 %v2570, %v2571
    %v2573 = vand.u32 %v2572, 4294901760
    %2574 = vmatmul.f32.gmra.mxu0 %v2573
    %v2575 = vpop.f32.mrf.mxu0
    %v2576 = vadd.f32 0.0, %v2575
    %v2577 = vand.u32 %v2291, 4294901760
    %v2578 = vsub.f32 %v2291, %v2577
    %v2579 = vand.u32 %v2578, 4294901760
    %v2580 = vsub.f32 %v2578, %v2579
    %v2581 = vand.u32 %v2580, 4294901760
    %2582 = vmatmul.f32.gmra.mxu0 %v2581
    %v2583 = vpop.f32.mrf.mxu0
    %v2584 = vadd.f32 0.0, %v2583
    %v2585 = vand.u32 %v2294, 4294901760
    %v2586 = vsub.f32 %v2294, %v2585
    %v2587 = vand.u32 %v2586, 4294901760
    %v2588 = vsub.f32 %v2586, %v2587
    %v2589 = vand.u32 %v2588, 4294901760
    %2590 = vmatmul.f32.gmra.mxu0 %v2589
    %v2591 = vpop.f32.mrf.mxu0
    %v2592 = vadd.f32 0.0, %v2591
    %v2593 = vand.u32 %v2297, 4294901760
    %v2594 = vsub.f32 %v2297, %v2593
    %v2595 = vand.u32 %v2594, 4294901760
    %v2596 = vsub.f32 %v2594, %v2595
    %v2597 = vand.u32 %v2596, 4294901760
    %2598 = vmatmul.f32.gmra.mxu0 %v2597
    %v2599 = vpop.f32.mrf.mxu0
    %v2600 = vadd.f32 0.0, %v2599
    %2601 = vdwg.mxu0
    %2602 = vmatpush.msra.mxu0 0.0
    %2603 = vmatpush.msra.mxu0 0.0
    %2604 = vmatpush.msra.mxu0 0.0
    %2605 = vmatpush.msra.mxu0 0.0
    %2606 = vmatpush.msra.mxu0 0.0
    %2607 = vmatpush.msra.mxu0 0.0
    %2608 = vmatpush.msra.mxu0 0.0
    %2609 = vmatpush.msra.mxu0 0.0
    %2610 = vmatpush.msra.mxu0 0.0
    %2611 = vmatpush.msra.mxu0 0.0
    %2612 = vmatpush.msra.mxu0 0.0
    %2613 = vmatpush.msra.mxu0 0.0
    %2614 = vmatpush.msra.mxu0 0.0
    %2615 = vmatpush.msra.mxu0 0.0
    %v2616 = vand.u32 %v2285, 4294901760
    %v2617 = vsub.f32 %v2285, %v2616
    %v2618 = vand.u32 %v2617, 4294901760
    %v2619 = vsub.f32 %v2617, %v2618
    %v2620 = vand.u32 %v2619, 4294901760
    %2621 = vmatpush.msra.mxu0 %v2620
    %v2622 = vand.u32 %v2281, 4294901760
    %v2623 = vsub.f32 %v2281, %v2622
    %v2624 = vand.u32 %v2623, 4294901760
    %v2625 = vsub.f32 %v2623, %v2624
    %v2626 = vand.u32 %v2625, 4294901760
    %2627 = vmatpush.msra.mxu0 %v2626
    %v2628 = vand.u32 %v2288, 4294901760
    %2629 = vmatmul.f32.gmra.mxu0 %v2628
    %v2630 = vpop.f32.mrf.mxu0
    %v2631 = vadd.f32 %v2576, %v2630
    %v2632 = vand.u32 %v2291, 4294901760
    %2633 = vmatmul.f32.gmra.mxu0 %v2632
    %v2634 = vpop.f32.mrf.mxu0
    %v2635 = vadd.f32 %v2584, %v2634
    %v2636 = vand.u32 %v2294, 4294901760
    %2637 = vmatmul.f32.gmra.mxu0 %v2636
    %v2638 = vpop.f32.mrf.mxu0
    %v2639 = vadd.f32 %v2592, %v2638
    %v2640 = vand.u32 %v2297, 4294901760
    %2641 = vmatmul.f32.gmra.mxu0 %v2640
    %v2642 = vpop.f32.mrf.mxu0
    %v2643 = vadd.f32 %v2600, %v2642
    %2644 = vdwg.mxu0
    %2645 = vmatpush.msra.mxu0 0.0
    %2646 = vmatpush.msra.mxu0 0.0
    %2647 = vmatpush.msra.mxu0 0.0
    %2648 = vmatpush.msra.mxu0 0.0
    %2649 = vmatpush.msra.mxu0 0.0
    %2650 = vmatpush.msra.mxu0 0.0
    %2651 = vmatpush.msra.mxu0 0.0
    %2652 = vmatpush.msra.mxu0 0.0
    %2653 = vmatpush.msra.mxu0 0.0
    %2654 = vmatpush.msra.mxu0 0.0
    %2655 = vmatpush.msra.mxu0 0.0
    %2656 = vmatpush.msra.mxu0 0.0
    %2657 = vmatpush.msra.mxu0 0.0
    %2658 = vmatpush.msra.mxu0 0.0
    %v2659 = vand.u32 %v2285, 4294901760
    %v2660 = vsub.f32 %v2285, %v2659
    %2661 = vmatpush.msra.mxu0 %v2660
    %v2662 = vand.u32 %v2281, 4294901760
    %v2663 = vsub.f32 %v2281, %v2662
    %2664 = vmatpush.msra.mxu0 %v2663
    %v2665 = vand.u32 %v2288, 4294901760
    %v2666 = vsub.f32 %v2288, %v2665
    %2667 = vmatmul.f32.gmra.mxu0 %v2666
    %v2668 = vpop.f32.mrf.mxu0
    %v2669 = vadd.f32 %v2631, %v2668
    %v2670 = vand.u32 %v2291, 4294901760
    %v2671 = vsub.f32 %v2291, %v2670
    %2672 = vmatmul.f32.gmra.mxu0 %v2671
    %v2673 = vpop.f32.mrf.mxu0
    %v2674 = vadd.f32 %v2635, %v2673
    %v2675 = vand.u32 %v2294, 4294901760
    %v2676 = vsub.f32 %v2294, %v2675
    %2677 = vmatmul.f32.gmra.mxu0 %v2676
    %v2678 = vpop.f32.mrf.mxu0
    %v2679 = vadd.f32 %v2639, %v2678
    %v2680 = vand.u32 %v2297, 4294901760
    %v2681 = vsub.f32 %v2297, %v2680
    %2682 = vmatmul.f32.gmra.mxu0 %v2681
    %v2683 = vpop.f32.mrf.mxu0
    %v2684 = vadd.f32 %v2643, %v2683
    %2685 = vdwg.mxu0
    %2686 = vmatpush.msra.mxu0 0.0
    %2687 = vmatpush.msra.mxu0 0.0
    %2688 = vmatpush.msra.mxu0 0.0
    %2689 = vmatpush.msra.mxu0 0.0
    %2690 = vmatpush.msra.mxu0 0.0
    %2691 = vmatpush.msra.mxu0 0.0
    %2692 = vmatpush.msra.mxu0 0.0
    %2693 = vmatpush.msra.mxu0 0.0
    %2694 = vmatpush.msra.mxu0 0.0
    %2695 = vmatpush.msra.mxu0 0.0
    %2696 = vmatpush.msra.mxu0 0.0
    %2697 = vmatpush.msra.mxu0 0.0
    %2698 = vmatpush.msra.mxu0 0.0
    %2699 = vmatpush.msra.mxu0 0.0
    %v2700 = vand.u32 %v2285, 4294901760
    %2701 = vmatpush.msra.mxu0 %v2700
    %v2702 = vand.u32 %v2281, 4294901760
    %2703 = vmatpush.msra.mxu0 %v2702
    %v2704 = vand.u32 %v2288, 4294901760
    %v2705 = vsub.f32 %v2288, %v2704
    %v2706 = vand.u32 %v2705, 4294901760
    %2707 = vmatmul.f32.gmra.mxu0 %v2706
    %v2708 = vpop.f32.mrf.mxu0
    %v2709 = vadd.f32 %v2669, %v2708
    %v2710 = vand.u32 %v2291, 4294901760
    %v2711 = vsub.f32 %v2291, %v2710
    %v2712 = vand.u32 %v2711, 4294901760
    %2713 = vmatmul.f32.gmra.mxu0 %v2712
    %v2714 = vpop.f32.mrf.mxu0
    %v2715 = vadd.f32 %v2674, %v2714
    %v2716 = vand.u32 %v2294, 4294901760
    %v2717 = vsub.f32 %v2294, %v2716
    %v2718 = vand.u32 %v2717, 4294901760
    %2719 = vmatmul.f32.gmra.mxu0 %v2718
    %v2720 = vpop.f32.mrf.mxu0
    %v2721 = vadd.f32 %v2679, %v2720
    %v2722 = vand.u32 %v2297, 4294901760
    %v2723 = vsub.f32 %v2297, %v2722
    %v2724 = vand.u32 %v2723, 4294901760
    %2725 = vmatmul.f32.gmra.mxu0 %v2724
    %v2726 = vpop.f32.mrf.mxu0
    %v2727 = vadd.f32 %v2684, %v2726
    %2728 = vdwg.mxu0
    %2729 = vmatpush.msra.mxu0 0.0
    %2730 = vmatpush.msra.mxu0 0.0
    %2731 = vmatpush.msra.mxu0 0.0
    %2732 = vmatpush.msra.mxu0 0.0
    %2733 = vmatpush.msra.mxu0 0.0
    %2734 = vmatpush.msra.mxu0 0.0
    %2735 = vmatpush.msra.mxu0 0.0
    %2736 = vmatpush.msra.mxu0 0.0
    %2737 = vmatpush.msra.mxu0 0.0
    %2738 = vmatpush.msra.mxu0 0.0
    %2739 = vmatpush.msra.mxu0 0.0
    %2740 = vmatpush.msra.mxu0 0.0
    %2741 = vmatpush.msra.mxu0 0.0
    %2742 = vmatpush.msra.mxu0 0.0
    %v2743 = vand.u32 %v2285, 4294901760
    %v2744 = vsub.f32 %v2285, %v2743
    %v2745 = vand.u32 %v2744, 4294901760
    %2746 = vmatpush.msra.mxu0 %v2745
    %v2747 = vand.u32 %v2281, 4294901760
    %v2748 = vsub.f32 %v2281, %v2747
    %v2749 = vand.u32 %v2748, 4294901760
    %2750 = vmatpush.msra.mxu0 %v2749
    %v2751 = vand.u32 %v2288, 4294901760
    %2752 = vmatmul.f32.gmra.mxu0 %v2751
    %v2753 = vpop.f32.mrf.mxu0
    %v2754 = vadd.f32 %v2709, %v2753
    %v2755 = vand.u32 %v2291, 4294901760
    %2756 = vmatmul.f32.gmra.mxu0 %v2755
    %v2757 = vpop.f32.mrf.mxu0
    %v2758 = vadd.f32 %v2715, %v2757
    %v2759 = vand.u32 %v2294, 4294901760
    %2760 = vmatmul.f32.gmra.mxu0 %v2759
    %v2761 = vpop.f32.mrf.mxu0
    %v2762 = vadd.f32 %v2721, %v2761
    %v2763 = vand.u32 %v2297, 4294901760
    %2764 = vmatmul.f32.gmra.mxu0 %v2763
    %v2765 = vpop.f32.mrf.mxu0
    %v2766 = vadd.f32 %v2727, %v2765
    %2767 = vdwg.mxu0
    %2768 = vmatpush.msra.mxu0 0.0
    %2769 = vmatpush.msra.mxu0 0.0
    %2770 = vmatpush.msra.mxu0 0.0
    %2771 = vmatpush.msra.mxu0 0.0
    %2772 = vmatpush.msra.mxu0 0.0
    %2773 = vmatpush.msra.mxu0 0.0
    %2774 = vmatpush.msra.mxu0 0.0
    %2775 = vmatpush.msra.mxu0 0.0
    %2776 = vmatpush.msra.mxu0 0.0
    %2777 = vmatpush.msra.mxu0 0.0
    %2778 = vmatpush.msra.mxu0 0.0
    %2779 = vmatpush.msra.mxu0 0.0
    %2780 = vmatpush.msra.mxu0 0.0
    %2781 = vmatpush.msra.mxu0 0.0
    %v2782 = vand.u32 %v2285, 4294901760
    %2783 = vmatpush.msra.mxu0 %v2782
    %v2784 = vand.u32 %v2281, 4294901760
    %2785 = vmatpush.msra.mxu0 %v2784
    %v2786 = vand.u32 %v2288, 4294901760
    %2787 = vmatmul.f32.gmra.mxu0 %v2786
    %v2788 = vpop.f32.mrf.mxu0
    %v2789 = vadd.f32 %v2754, %v2788
    %v2790 = vand.u32 %v2291, 4294901760
    %2791 = vmatmul.f32.gmra.mxu0 %v2790
    %v2792 = vpop.f32.mrf.mxu0
    %v2793 = vadd.f32 %v2758, %v2792
    %v2794 = vand.u32 %v2294, 4294901760
    %2795 = vmatmul.f32.gmra.mxu0 %v2794
    %v2796 = vpop.f32.mrf.mxu0
    %v2797 = vadd.f32 %v2762, %v2796
    %v2798 = vand.u32 %v2297, 4294901760
    %2799 = vmatmul.f32.gmra.mxu0 %v2798
    %v2800 = vpop.f32.mrf.mxu0
    %v2801 = vadd.f32 %v2766, %v2800
    %2802 = vdwg.mxu0
    %v2803 = vadd.f32 %v1629, %v2537
    %v2804 = vadd.f32 %v1633, %v2541
    %v2805 = vadd.f32 %v1637, %v2545
    %v2806 = vadd.f32 %v1641, %v2549
    %v2807 = vadd.f32 %v1881, %v2789
    %v2808 = vadd.f32 %v1885, %v2793
    %v2809 = vadd.f32 %v1889, %v2797
    %v2810 = vadd.f32 %v1893, %v2801
    %v2812 = vsel %vm90, %v31, 0
    %v2815 = vsel %vm90, %v32, 0
    %2817 = vmatpush.msra.mxu0 0.0
    %2818 = vmatpush.msra.mxu0 0.0
    %2819 = vmatpush.msra.mxu0 0.0
    %2820 = vmatpush.msra.mxu0 0.0
    %2821 = vmatpush.msra.mxu0 0.0
    %2822 = vmatpush.msra.mxu0 0.0
    %2823 = vmatpush.msra.mxu0 0.0
    %2824 = vmatpush.msra.mxu0 0.0
    %2825 = vmatpush.msra.mxu0 0.0
    %2826 = vmatpush.msra.mxu0 0.0
    %2827 = vmatpush.msra.mxu0 0.0
    %2828 = vmatpush.msra.mxu0 0.0
    %2829 = vmatpush.msra.mxu0 0.0
    %2830 = vmatpush.msra.mxu0 0.0
    %v2831 = vand.u32 %v89, 4294901760
    %2832 = vmatpush.msra.mxu0 %v2831
    %v2833 = vand.u32 %v88, 4294901760
    %2834 = vmatpush.msra.mxu0 %v2833
    %v2835 = vand.u32 %v2812, 4294901760
    %v2836 = vsub.f32 %v2812, %v2835
    %v2837 = vand.u32 %v2836, 4294901760
    %v2838 = vsub.f32 %v2836, %v2837
    %v2839 = vand.u32 %v2838, 4294901760
    %2840 = vmatmul.f32.gmra.mxu0 %v2839
    %v2841 = vpop.f32.mrf.mxu0
    %v2842 = vadd.f32 0.0, %v2841
    %v2843 = vand.u32 %v2815, 4294901760
    %v2844 = vsub.f32 %v2815, %v2843
    %v2845 = vand.u32 %v2844, 4294901760
    %v2846 = vsub.f32 %v2844, %v2845
    %v2847 = vand.u32 %v2846, 4294901760
    %2848 = vmatmul.f32.gmra.mxu0 %v2847
    %v2849 = vpop.f32.mrf.mxu0
    %v2850 = vadd.f32 0.0, %v2849
    %2851 = vdwg.mxu0
    %2852 = vmatpush.msra.mxu0 0.0
    %2853 = vmatpush.msra.mxu0 0.0
    %2854 = vmatpush.msra.mxu0 0.0
    %2855 = vmatpush.msra.mxu0 0.0
    %2856 = vmatpush.msra.mxu0 0.0
    %2857 = vmatpush.msra.mxu0 0.0
    %2858 = vmatpush.msra.mxu0 0.0
    %2859 = vmatpush.msra.mxu0 0.0
    %2860 = vmatpush.msra.mxu0 0.0
    %2861 = vmatpush.msra.mxu0 0.0
    %2862 = vmatpush.msra.mxu0 0.0
    %2863 = vmatpush.msra.mxu0 0.0
    %2864 = vmatpush.msra.mxu0 0.0
    %2865 = vmatpush.msra.mxu0 0.0
    %v2866 = vand.u32 %v89, 4294901760
    %v2867 = vsub.f32 %v89, %v2866
    %v2868 = vand.u32 %v2867, 4294901760
    %v2869 = vsub.f32 %v2867, %v2868
    %v2870 = vand.u32 %v2869, 4294901760
    %2871 = vmatpush.msra.mxu0 %v2870
    %v2872 = vand.u32 %v88, 4294901760
    %v2873 = vsub.f32 %v88, %v2872
    %v2874 = vand.u32 %v2873, 4294901760
    %v2875 = vsub.f32 %v2873, %v2874
    %v2876 = vand.u32 %v2875, 4294901760
    %2877 = vmatpush.msra.mxu0 %v2876
    %v2878 = vand.u32 %v2812, 4294901760
    %2879 = vmatmul.f32.gmra.mxu0 %v2878
    %v2880 = vpop.f32.mrf.mxu0
    %v2881 = vadd.f32 %v2842, %v2880
    %v2882 = vand.u32 %v2815, 4294901760
    %2883 = vmatmul.f32.gmra.mxu0 %v2882
    %v2884 = vpop.f32.mrf.mxu0
    %v2885 = vadd.f32 %v2850, %v2884
    %2886 = vdwg.mxu0
    %2887 = vmatpush.msra.mxu0 0.0
    %2888 = vmatpush.msra.mxu0 0.0
    %2889 = vmatpush.msra.mxu0 0.0
    %2890 = vmatpush.msra.mxu0 0.0
    %2891 = vmatpush.msra.mxu0 0.0
    %2892 = vmatpush.msra.mxu0 0.0
    %2893 = vmatpush.msra.mxu0 0.0
    %2894 = vmatpush.msra.mxu0 0.0
    %2895 = vmatpush.msra.mxu0 0.0
    %2896 = vmatpush.msra.mxu0 0.0
    %2897 = vmatpush.msra.mxu0 0.0
    %2898 = vmatpush.msra.mxu0 0.0
    %2899 = vmatpush.msra.mxu0 0.0
    %2900 = vmatpush.msra.mxu0 0.0
    %v2901 = vand.u32 %v89, 4294901760
    %v2902 = vsub.f32 %v89, %v2901
    %2903 = vmatpush.msra.mxu0 %v2902
    %v2904 = vand.u32 %v88, 4294901760
    %v2905 = vsub.f32 %v88, %v2904
    %2906 = vmatpush.msra.mxu0 %v2905
    %v2907 = vand.u32 %v2812, 4294901760
    %v2908 = vsub.f32 %v2812, %v2907
    %2909 = vmatmul.f32.gmra.mxu0 %v2908
    %v2910 = vpop.f32.mrf.mxu0
    %v2911 = vadd.f32 %v2881, %v2910
    %v2912 = vand.u32 %v2815, 4294901760
    %v2913 = vsub.f32 %v2815, %v2912
    %2914 = vmatmul.f32.gmra.mxu0 %v2913
    %v2915 = vpop.f32.mrf.mxu0
    %v2916 = vadd.f32 %v2885, %v2915
    %2917 = vdwg.mxu0
    %2918 = vmatpush.msra.mxu0 0.0
    %2919 = vmatpush.msra.mxu0 0.0
    %2920 = vmatpush.msra.mxu0 0.0
    %2921 = vmatpush.msra.mxu0 0.0
    %2922 = vmatpush.msra.mxu0 0.0
    %2923 = vmatpush.msra.mxu0 0.0
    %2924 = vmatpush.msra.mxu0 0.0
    %2925 = vmatpush.msra.mxu0 0.0
    %2926 = vmatpush.msra.mxu0 0.0
    %2927 = vmatpush.msra.mxu0 0.0
    %2928 = vmatpush.msra.mxu0 0.0
    %2929 = vmatpush.msra.mxu0 0.0
    %2930 = vmatpush.msra.mxu0 0.0
    %2931 = vmatpush.msra.mxu0 0.0
    %v2932 = vand.u32 %v89, 4294901760
    %2933 = vmatpush.msra.mxu0 %v2932
    %v2934 = vand.u32 %v88, 4294901760
    %2935 = vmatpush.msra.mxu0 %v2934
    %v2936 = vand.u32 %v2812, 4294901760
    %v2937 = vsub.f32 %v2812, %v2936
    %v2938 = vand.u32 %v2937, 4294901760
    %2939 = vmatmul.f32.gmra.mxu0 %v2938
    %v2940 = vpop.f32.mrf.mxu0
    %v2941 = vadd.f32 %v2911, %v2940
    %v2942 = vand.u32 %v2815, 4294901760
    %v2943 = vsub.f32 %v2815, %v2942
    %v2944 = vand.u32 %v2943, 4294901760
    %2945 = vmatmul.f32.gmra.mxu0 %v2944
    %v2946 = vpop.f32.mrf.mxu0
    %v2947 = vadd.f32 %v2916, %v2946
    %2948 = vdwg.mxu0
    %2949 = vmatpush.msra.mxu0 0.0
    %2950 = vmatpush.msra.mxu0 0.0
    %2951 = vmatpush.msra.mxu0 0.0
    %2952 = vmatpush.msra.mxu0 0.0
    %2953 = vmatpush.msra.mxu0 0.0
    %2954 = vmatpush.msra.mxu0 0.0
    %2955 = vmatpush.msra.mxu0 0.0
    %2956 = vmatpush.msra.mxu0 0.0
    %2957 = vmatpush.msra.mxu0 0.0
    %2958 = vmatpush.msra.mxu0 0.0
    %2959 = vmatpush.msra.mxu0 0.0
    %2960 = vmatpush.msra.mxu0 0.0
    %2961 = vmatpush.msra.mxu0 0.0
    %2962 = vmatpush.msra.mxu0 0.0
    %v2963 = vand.u32 %v89, 4294901760
    %v2964 = vsub.f32 %v89, %v2963
    %v2965 = vand.u32 %v2964, 4294901760
    %2966 = vmatpush.msra.mxu0 %v2965
    %v2967 = vand.u32 %v88, 4294901760
    %v2968 = vsub.f32 %v88, %v2967
    %v2969 = vand.u32 %v2968, 4294901760
    %2970 = vmatpush.msra.mxu0 %v2969
    %v2971 = vand.u32 %v2812, 4294901760
    %2972 = vmatmul.f32.gmra.mxu0 %v2971
    %v2973 = vpop.f32.mrf.mxu0
    %v2974 = vadd.f32 %v2941, %v2973
    %v2975 = vand.u32 %v2815, 4294901760
    %2976 = vmatmul.f32.gmra.mxu0 %v2975
    %v2977 = vpop.f32.mrf.mxu0
    %v2978 = vadd.f32 %v2947, %v2977
    %2979 = vdwg.mxu0
    %2980 = vmatpush.msra.mxu0 0.0
    %2981 = vmatpush.msra.mxu0 0.0
    %2982 = vmatpush.msra.mxu0 0.0
    %2983 = vmatpush.msra.mxu0 0.0
    %2984 = vmatpush.msra.mxu0 0.0
    %2985 = vmatpush.msra.mxu0 0.0
    %2986 = vmatpush.msra.mxu0 0.0
    %2987 = vmatpush.msra.mxu0 0.0
    %2988 = vmatpush.msra.mxu0 0.0
    %2989 = vmatpush.msra.mxu0 0.0
    %2990 = vmatpush.msra.mxu0 0.0
    %2991 = vmatpush.msra.mxu0 0.0
    %2992 = vmatpush.msra.mxu0 0.0
    %2993 = vmatpush.msra.mxu0 0.0
    %v2994 = vand.u32 %v89, 4294901760
    %2995 = vmatpush.msra.mxu0 %v2994
    %v2996 = vand.u32 %v88, 4294901760
    %2997 = vmatpush.msra.mxu0 %v2996
    %v2998 = vand.u32 %v2812, 4294901760
    %2999 = vmatmul.f32.gmra.mxu0 %v2998
    %v3000 = vpop.f32.mrf.mxu0
    %v3001 = vadd.f32 %v2974, %v3000
    %v3002 = vand.u32 %v2815, 4294901760
    %3003 = vmatmul.f32.gmra.mxu0 %v3002
    %v3004 = vpop.f32.mrf.mxu0
    %v3005 = vadd.f32 %v2978, %v3004
    %3006 = vdwg.mxu0
    %v3008 = vsel %vm90, %v39, 0
    %v3011 = vsel %vm90, %v40, 0
    %3013 = vmatpush.msra.mxu0 0.0
    %3014 = vmatpush.msra.mxu0 0.0
    %3015 = vmatpush.msra.mxu0 0.0
    %3016 = vmatpush.msra.mxu0 0.0
    %3017 = vmatpush.msra.mxu0 0.0
    %3018 = vmatpush.msra.mxu0 0.0
    %3019 = vmatpush.msra.mxu0 0.0
    %3020 = vmatpush.msra.mxu0 0.0
    %3021 = vmatpush.msra.mxu0 0.0
    %3022 = vmatpush.msra.mxu0 0.0
    %3023 = vmatpush.msra.mxu0 0.0
    %3024 = vmatpush.msra.mxu0 0.0
    %3025 = vmatpush.msra.mxu0 0.0
    %3026 = vmatpush.msra.mxu0 0.0
    %v3027 = vand.u32 %v89, 4294901760
    %3028 = vmatpush.msra.mxu0 %v3027
    %v3029 = vand.u32 %v88, 4294901760
    %3030 = vmatpush.msra.mxu0 %v3029
    %v3031 = vand.u32 %v3008, 4294901760
    %v3032 = vsub.f32 %v3008, %v3031
    %v3033 = vand.u32 %v3032, 4294901760
    %v3034 = vsub.f32 %v3032, %v3033
    %v3035 = vand.u32 %v3034, 4294901760
    %3036 = vmatmul.f32.gmra.mxu0 %v3035
    %v3037 = vpop.f32.mrf.mxu0
    %v3038 = vadd.f32 0.0, %v3037
    %v3039 = vand.u32 %v3011, 4294901760
    %v3040 = vsub.f32 %v3011, %v3039
    %v3041 = vand.u32 %v3040, 4294901760
    %v3042 = vsub.f32 %v3040, %v3041
    %v3043 = vand.u32 %v3042, 4294901760
    %3044 = vmatmul.f32.gmra.mxu0 %v3043
    %v3045 = vpop.f32.mrf.mxu0
    %v3046 = vadd.f32 0.0, %v3045
    %3047 = vdwg.mxu0
    %3048 = vmatpush.msra.mxu0 0.0
    %3049 = vmatpush.msra.mxu0 0.0
    %3050 = vmatpush.msra.mxu0 0.0
    %3051 = vmatpush.msra.mxu0 0.0
    %3052 = vmatpush.msra.mxu0 0.0
    %3053 = vmatpush.msra.mxu0 0.0
    %3054 = vmatpush.msra.mxu0 0.0
    %3055 = vmatpush.msra.mxu0 0.0
    %3056 = vmatpush.msra.mxu0 0.0
    %3057 = vmatpush.msra.mxu0 0.0
    %3058 = vmatpush.msra.mxu0 0.0
    %3059 = vmatpush.msra.mxu0 0.0
    %3060 = vmatpush.msra.mxu0 0.0
    %3061 = vmatpush.msra.mxu0 0.0
    %v3062 = vand.u32 %v89, 4294901760
    %v3063 = vsub.f32 %v89, %v3062
    %v3064 = vand.u32 %v3063, 4294901760
    %v3065 = vsub.f32 %v3063, %v3064
    %v3066 = vand.u32 %v3065, 4294901760
    %3067 = vmatpush.msra.mxu0 %v3066
    %v3068 = vand.u32 %v88, 4294901760
    %v3069 = vsub.f32 %v88, %v3068
    %v3070 = vand.u32 %v3069, 4294901760
    %v3071 = vsub.f32 %v3069, %v3070
    %v3072 = vand.u32 %v3071, 4294901760
    %3073 = vmatpush.msra.mxu0 %v3072
    %v3074 = vand.u32 %v3008, 4294901760
    %3075 = vmatmul.f32.gmra.mxu0 %v3074
    %v3076 = vpop.f32.mrf.mxu0
    %v3077 = vadd.f32 %v3038, %v3076
    %v3078 = vand.u32 %v3011, 4294901760
    %3079 = vmatmul.f32.gmra.mxu0 %v3078
    %v3080 = vpop.f32.mrf.mxu0
    %v3081 = vadd.f32 %v3046, %v3080
    %3082 = vdwg.mxu0
    %3083 = vmatpush.msra.mxu0 0.0
    %3084 = vmatpush.msra.mxu0 0.0
    %3085 = vmatpush.msra.mxu0 0.0
    %3086 = vmatpush.msra.mxu0 0.0
    %3087 = vmatpush.msra.mxu0 0.0
    %3088 = vmatpush.msra.mxu0 0.0
    %3089 = vmatpush.msra.mxu0 0.0
    %3090 = vmatpush.msra.mxu0 0.0
    %3091 = vmatpush.msra.mxu0 0.0
    %3092 = vmatpush.msra.mxu0 0.0
    %3093 = vmatpush.msra.mxu0 0.0
    %3094 = vmatpush.msra.mxu0 0.0
    %3095 = vmatpush.msra.mxu0 0.0
    %3096 = vmatpush.msra.mxu0 0.0
    %v3097 = vand.u32 %v89, 4294901760
    %v3098 = vsub.f32 %v89, %v3097
    %3099 = vmatpush.msra.mxu0 %v3098
    %v3100 = vand.u32 %v88, 4294901760
    %v3101 = vsub.f32 %v88, %v3100
    %3102 = vmatpush.msra.mxu0 %v3101
    %v3103 = vand.u32 %v3008, 4294901760
    %v3104 = vsub.f32 %v3008, %v3103
    %3105 = vmatmul.f32.gmra.mxu0 %v3104
    %v3106 = vpop.f32.mrf.mxu0
    %v3107 = vadd.f32 %v3077, %v3106
    %v3108 = vand.u32 %v3011, 4294901760
    %v3109 = vsub.f32 %v3011, %v3108
    %3110 = vmatmul.f32.gmra.mxu0 %v3109
    %v3111 = vpop.f32.mrf.mxu0
    %v3112 = vadd.f32 %v3081, %v3111
    %3113 = vdwg.mxu0
    %3114 = vmatpush.msra.mxu0 0.0
    %3115 = vmatpush.msra.mxu0 0.0
    %3116 = vmatpush.msra.mxu0 0.0
    %3117 = vmatpush.msra.mxu0 0.0
    %3118 = vmatpush.msra.mxu0 0.0
    %3119 = vmatpush.msra.mxu0 0.0
    %3120 = vmatpush.msra.mxu0 0.0
    %3121 = vmatpush.msra.mxu0 0.0
    %3122 = vmatpush.msra.mxu0 0.0
    %3123 = vmatpush.msra.mxu0 0.0
    %3124 = vmatpush.msra.mxu0 0.0
    %3125 = vmatpush.msra.mxu0 0.0
    %3126 = vmatpush.msra.mxu0 0.0
    %3127 = vmatpush.msra.mxu0 0.0
    %v3128 = vand.u32 %v89, 4294901760
    %3129 = vmatpush.msra.mxu0 %v3128
    %v3130 = vand.u32 %v88, 4294901760
    %3131 = vmatpush.msra.mxu0 %v3130
    %v3132 = vand.u32 %v3008, 4294901760
    %v3133 = vsub.f32 %v3008, %v3132
    %v3134 = vand.u32 %v3133, 4294901760
    %3135 = vmatmul.f32.gmra.mxu0 %v3134
    %v3136 = vpop.f32.mrf.mxu0
    %v3137 = vadd.f32 %v3107, %v3136
    %v3138 = vand.u32 %v3011, 4294901760
    %v3139 = vsub.f32 %v3011, %v3138
    %v3140 = vand.u32 %v3139, 4294901760
    %3141 = vmatmul.f32.gmra.mxu0 %v3140
    %v3142 = vpop.f32.mrf.mxu0
    %v3143 = vadd.f32 %v3112, %v3142
    %3144 = vdwg.mxu0
    %3145 = vmatpush.msra.mxu0 0.0
    %3146 = vmatpush.msra.mxu0 0.0
    %3147 = vmatpush.msra.mxu0 0.0
    %3148 = vmatpush.msra.mxu0 0.0
    %3149 = vmatpush.msra.mxu0 0.0
    %3150 = vmatpush.msra.mxu0 0.0
    %3151 = vmatpush.msra.mxu0 0.0
    %3152 = vmatpush.msra.mxu0 0.0
    %3153 = vmatpush.msra.mxu0 0.0
    %3154 = vmatpush.msra.mxu0 0.0
    %3155 = vmatpush.msra.mxu0 0.0
    %3156 = vmatpush.msra.mxu0 0.0
    %3157 = vmatpush.msra.mxu0 0.0
    %3158 = vmatpush.msra.mxu0 0.0
    %v3159 = vand.u32 %v89, 4294901760
    %v3160 = vsub.f32 %v89, %v3159
    %v3161 = vand.u32 %v3160, 4294901760
    %3162 = vmatpush.msra.mxu0 %v3161
    %v3163 = vand.u32 %v88, 4294901760
    %v3164 = vsub.f32 %v88, %v3163
    %v3165 = vand.u32 %v3164, 4294901760
    %3166 = vmatpush.msra.mxu0 %v3165
    %v3167 = vand.u32 %v3008, 4294901760
    %3168 = vmatmul.f32.gmra.mxu0 %v3167
    %v3169 = vpop.f32.mrf.mxu0
    %v3170 = vadd.f32 %v3137, %v3169
    %v3171 = vand.u32 %v3011, 4294901760
    %3172 = vmatmul.f32.gmra.mxu0 %v3171
    %v3173 = vpop.f32.mrf.mxu0
    %v3174 = vadd.f32 %v3143, %v3173
    %3175 = vdwg.mxu0
    %3176 = vmatpush.msra.mxu0 0.0
    %3177 = vmatpush.msra.mxu0 0.0
    %3178 = vmatpush.msra.mxu0 0.0
    %3179 = vmatpush.msra.mxu0 0.0
    %3180 = vmatpush.msra.mxu0 0.0
    %3181 = vmatpush.msra.mxu0 0.0
    %3182 = vmatpush.msra.mxu0 0.0
    %3183 = vmatpush.msra.mxu0 0.0
    %3184 = vmatpush.msra.mxu0 0.0
    %3185 = vmatpush.msra.mxu0 0.0
    %3186 = vmatpush.msra.mxu0 0.0
    %3187 = vmatpush.msra.mxu0 0.0
    %3188 = vmatpush.msra.mxu0 0.0
    %3189 = vmatpush.msra.mxu0 0.0
    %v3190 = vand.u32 %v89, 4294901760
    %3191 = vmatpush.msra.mxu0 %v3190
    %v3192 = vand.u32 %v88, 4294901760
    %3193 = vmatpush.msra.mxu0 %v3192
    %v3194 = vand.u32 %v3008, 4294901760
    %3195 = vmatmul.f32.gmra.mxu0 %v3194
    %v3196 = vpop.f32.mrf.mxu0
    %v3197 = vadd.f32 %v3170, %v3196
    %v3198 = vand.u32 %v3011, 4294901760
    %3199 = vmatmul.f32.gmra.mxu0 %v3198
    %v3200 = vpop.f32.mrf.mxu0
    %v3201 = vadd.f32 %v3174, %v3200
    %3202 = vdwg.mxu0
    %3203 = vmatpush.msra.mxu0 0.0
    %3204 = vmatpush.msra.mxu0 0.0
    %3205 = vmatpush.msra.mxu0 0.0
    %3206 = vmatpush.msra.mxu0 0.0
    %3207 = vmatpush.msra.mxu0 0.0
    %3208 = vmatpush.msra.mxu0 0.0
    %3209 = vmatpush.msra.mxu0 0.0
    %3210 = vmatpush.msra.mxu0 0.0
    %3211 = vmatpush.msra.mxu0 0.0
    %3212 = vmatpush.msra.mxu0 0.0
    %3213 = vmatpush.msra.mxu0 0.0
    %3214 = vmatpush.msra.mxu0 0.0
    %3215 = vmatpush.msra.mxu0 0.0
    %3216 = vmatpush.msra.mxu0 0.0
    %v3217 = vand.u32 %v3005, 4294901760
    %3218 = vmatpush.msra.mxu0 %v3217
    %v3219 = vand.u32 %v3001, 4294901760
    %3220 = vmatpush.msra.mxu0 %v3219
    %v3221 = vand.u32 %v2288, 4294901760
    %v3222 = vsub.f32 %v2288, %v3221
    %v3223 = vand.u32 %v3222, 4294901760
    %v3224 = vsub.f32 %v3222, %v3223
    %v3225 = vand.u32 %v3224, 4294901760
    %3226 = vmatmul.f32.gmra.mxu0 %v3225
    %v3227 = vpop.f32.mrf.mxu0
    %v3228 = vadd.f32 0.0, %v3227
    %v3229 = vand.u32 %v2291, 4294901760
    %v3230 = vsub.f32 %v2291, %v3229
    %v3231 = vand.u32 %v3230, 4294901760
    %v3232 = vsub.f32 %v3230, %v3231
    %v3233 = vand.u32 %v3232, 4294901760
    %3234 = vmatmul.f32.gmra.mxu0 %v3233
    %v3235 = vpop.f32.mrf.mxu0
    %v3236 = vadd.f32 0.0, %v3235
    %v3237 = vand.u32 %v2294, 4294901760
    %v3238 = vsub.f32 %v2294, %v3237
    %v3239 = vand.u32 %v3238, 4294901760
    %v3240 = vsub.f32 %v3238, %v3239
    %v3241 = vand.u32 %v3240, 4294901760
    %3242 = vmatmul.f32.gmra.mxu0 %v3241
    %v3243 = vpop.f32.mrf.mxu0
    %v3244 = vadd.f32 0.0, %v3243
    %v3245 = vand.u32 %v2297, 4294901760
    %v3246 = vsub.f32 %v2297, %v3245
    %v3247 = vand.u32 %v3246, 4294901760
    %v3248 = vsub.f32 %v3246, %v3247
    %v3249 = vand.u32 %v3248, 4294901760
    %3250 = vmatmul.f32.gmra.mxu0 %v3249
    %v3251 = vpop.f32.mrf.mxu0
    %v3252 = vadd.f32 0.0, %v3251
    %3253 = vdwg.mxu0
    %3254 = vmatpush.msra.mxu0 0.0
    %3255 = vmatpush.msra.mxu0 0.0
    %3256 = vmatpush.msra.mxu0 0.0
    %3257 = vmatpush.msra.mxu0 0.0
    %3258 = vmatpush.msra.mxu0 0.0
    %3259 = vmatpush.msra.mxu0 0.0
    %3260 = vmatpush.msra.mxu0 0.0
    %3261 = vmatpush.msra.mxu0 0.0
    %3262 = vmatpush.msra.mxu0 0.0
    %3263 = vmatpush.msra.mxu0 0.0
    %3264 = vmatpush.msra.mxu0 0.0
    %3265 = vmatpush.msra.mxu0 0.0
    %3266 = vmatpush.msra.mxu0 0.0
    %3267 = vmatpush.msra.mxu0 0.0
    %v3268 = vand.u32 %v3005, 4294901760
    %v3269 = vsub.f32 %v3005, %v3268
    %v3270 = vand.u32 %v3269, 4294901760
    %v3271 = vsub.f32 %v3269, %v3270
    %v3272 = vand.u32 %v3271, 4294901760
    %3273 = vmatpush.msra.mxu0 %v3272
    %v3274 = vand.u32 %v3001, 4294901760
    %v3275 = vsub.f32 %v3001, %v3274
    %v3276 = vand.u32 %v3275, 4294901760
    %v3277 = vsub.f32 %v3275, %v3276
    %v3278 = vand.u32 %v3277, 4294901760
    %3279 = vmatpush.msra.mxu0 %v3278
    %v3280 = vand.u32 %v2288, 4294901760
    %3281 = vmatmul.f32.gmra.mxu0 %v3280
    %v3282 = vpop.f32.mrf.mxu0
    %v3283 = vadd.f32 %v3228, %v3282
    %v3284 = vand.u32 %v2291, 4294901760
    %3285 = vmatmul.f32.gmra.mxu0 %v3284
    %v3286 = vpop.f32.mrf.mxu0
    %v3287 = vadd.f32 %v3236, %v3286
    %v3288 = vand.u32 %v2294, 4294901760
    %3289 = vmatmul.f32.gmra.mxu0 %v3288
    %v3290 = vpop.f32.mrf.mxu0
    %v3291 = vadd.f32 %v3244, %v3290
    %v3292 = vand.u32 %v2297, 4294901760
    %3293 = vmatmul.f32.gmra.mxu0 %v3292
    %v3294 = vpop.f32.mrf.mxu0
    %v3295 = vadd.f32 %v3252, %v3294
    %3296 = vdwg.mxu0
    %3297 = vmatpush.msra.mxu0 0.0
    %3298 = vmatpush.msra.mxu0 0.0
    %3299 = vmatpush.msra.mxu0 0.0
    %3300 = vmatpush.msra.mxu0 0.0
    %3301 = vmatpush.msra.mxu0 0.0
    %3302 = vmatpush.msra.mxu0 0.0
    %3303 = vmatpush.msra.mxu0 0.0
    %3304 = vmatpush.msra.mxu0 0.0
    %3305 = vmatpush.msra.mxu0 0.0
    %3306 = vmatpush.msra.mxu0 0.0
    %3307 = vmatpush.msra.mxu0 0.0
    %3308 = vmatpush.msra.mxu0 0.0
    %3309 = vmatpush.msra.mxu0 0.0
    %3310 = vmatpush.msra.mxu0 0.0
    %v3311 = vand.u32 %v3005, 4294901760
    %v3312 = vsub.f32 %v3005, %v3311
    %3313 = vmatpush.msra.mxu0 %v3312
    %v3314 = vand.u32 %v3001, 4294901760
    %v3315 = vsub.f32 %v3001, %v3314
    %3316 = vmatpush.msra.mxu0 %v3315
    %v3317 = vand.u32 %v2288, 4294901760
    %v3318 = vsub.f32 %v2288, %v3317
    %3319 = vmatmul.f32.gmra.mxu0 %v3318
    %v3320 = vpop.f32.mrf.mxu0
    %v3321 = vadd.f32 %v3283, %v3320
    %v3322 = vand.u32 %v2291, 4294901760
    %v3323 = vsub.f32 %v2291, %v3322
    %3324 = vmatmul.f32.gmra.mxu0 %v3323
    %v3325 = vpop.f32.mrf.mxu0
    %v3326 = vadd.f32 %v3287, %v3325
    %v3327 = vand.u32 %v2294, 4294901760
    %v3328 = vsub.f32 %v2294, %v3327
    %3329 = vmatmul.f32.gmra.mxu0 %v3328
    %v3330 = vpop.f32.mrf.mxu0
    %v3331 = vadd.f32 %v3291, %v3330
    %v3332 = vand.u32 %v2297, 4294901760
    %v3333 = vsub.f32 %v2297, %v3332
    %3334 = vmatmul.f32.gmra.mxu0 %v3333
    %v3335 = vpop.f32.mrf.mxu0
    %v3336 = vadd.f32 %v3295, %v3335
    %3337 = vdwg.mxu0
    %3338 = vmatpush.msra.mxu0 0.0
    %3339 = vmatpush.msra.mxu0 0.0
    %3340 = vmatpush.msra.mxu0 0.0
    %3341 = vmatpush.msra.mxu0 0.0
    %3342 = vmatpush.msra.mxu0 0.0
    %3343 = vmatpush.msra.mxu0 0.0
    %3344 = vmatpush.msra.mxu0 0.0
    %3345 = vmatpush.msra.mxu0 0.0
    %3346 = vmatpush.msra.mxu0 0.0
    %3347 = vmatpush.msra.mxu0 0.0
    %3348 = vmatpush.msra.mxu0 0.0
    %3349 = vmatpush.msra.mxu0 0.0
    %3350 = vmatpush.msra.mxu0 0.0
    %3351 = vmatpush.msra.mxu0 0.0
    %v3352 = vand.u32 %v3005, 4294901760
    %3353 = vmatpush.msra.mxu0 %v3352
    %v3354 = vand.u32 %v3001, 4294901760
    %3355 = vmatpush.msra.mxu0 %v3354
    %v3356 = vand.u32 %v2288, 4294901760
    %v3357 = vsub.f32 %v2288, %v3356
    %v3358 = vand.u32 %v3357, 4294901760
    %3359 = vmatmul.f32.gmra.mxu0 %v3358
    %v3360 = vpop.f32.mrf.mxu0
    %v3361 = vadd.f32 %v3321, %v3360
    %v3362 = vand.u32 %v2291, 4294901760
    %v3363 = vsub.f32 %v2291, %v3362
    %v3364 = vand.u32 %v3363, 4294901760
    %3365 = vmatmul.f32.gmra.mxu0 %v3364
    %v3366 = vpop.f32.mrf.mxu0
    %v3367 = vadd.f32 %v3326, %v3366
    %v3368 = vand.u32 %v2294, 4294901760
    %v3369 = vsub.f32 %v2294, %v3368
    %v3370 = vand.u32 %v3369, 4294901760
    %3371 = vmatmul.f32.gmra.mxu0 %v3370
    %v3372 = vpop.f32.mrf.mxu0
    %v3373 = vadd.f32 %v3331, %v3372
    %v3374 = vand.u32 %v2297, 4294901760
    %v3375 = vsub.f32 %v2297, %v3374
    %v3376 = vand.u32 %v3375, 4294901760
    %3377 = vmatmul.f32.gmra.mxu0 %v3376
    %v3378 = vpop.f32.mrf.mxu0
    %v3379 = vadd.f32 %v3336, %v3378
    %3380 = vdwg.mxu0
    %3381 = vmatpush.msra.mxu0 0.0
    %3382 = vmatpush.msra.mxu0 0.0
    %3383 = vmatpush.msra.mxu0 0.0
    %3384 = vmatpush.msra.mxu0 0.0
    %3385 = vmatpush.msra.mxu0 0.0
    %3386 = vmatpush.msra.mxu0 0.0
    %3387 = vmatpush.msra.mxu0 0.0
    %3388 = vmatpush.msra.mxu0 0.0
    %3389 = vmatpush.msra.mxu0 0.0
    %3390 = vmatpush.msra.mxu0 0.0
    %3391 = vmatpush.msra.mxu0 0.0
    %3392 = vmatpush.msra.mxu0 0.0
    %3393 = vmatpush.msra.mxu0 0.0
    %3394 = vmatpush.msra.mxu0 0.0
    %v3395 = vand.u32 %v3005, 4294901760
    %v3396 = vsub.f32 %v3005, %v3395
    %v3397 = vand.u32 %v3396, 4294901760
    %3398 = vmatpush.msra.mxu0 %v3397
    %v3399 = vand.u32 %v3001, 4294901760
    %v3400 = vsub.f32 %v3001, %v3399
    %v3401 = vand.u32 %v3400, 4294901760
    %3402 = vmatpush.msra.mxu0 %v3401
    %v3403 = vand.u32 %v2288, 4294901760
    %3404 = vmatmul.f32.gmra.mxu0 %v3403
    %v3405 = vpop.f32.mrf.mxu0
    %v3406 = vadd.f32 %v3361, %v3405
    %v3407 = vand.u32 %v2291, 4294901760
    %3408 = vmatmul.f32.gmra.mxu0 %v3407
    %v3409 = vpop.f32.mrf.mxu0
    %v3410 = vadd.f32 %v3367, %v3409
    %v3411 = vand.u32 %v2294, 4294901760
    %3412 = vmatmul.f32.gmra.mxu0 %v3411
    %v3413 = vpop.f32.mrf.mxu0
    %v3414 = vadd.f32 %v3373, %v3413
    %v3415 = vand.u32 %v2297, 4294901760
    %3416 = vmatmul.f32.gmra.mxu0 %v3415
    %v3417 = vpop.f32.mrf.mxu0
    %v3418 = vadd.f32 %v3379, %v3417
    %3419 = vdwg.mxu0
    %3420 = vmatpush.msra.mxu0 0.0
    %3421 = vmatpush.msra.mxu0 0.0
    %3422 = vmatpush.msra.mxu0 0.0
    %3423 = vmatpush.msra.mxu0 0.0
    %3424 = vmatpush.msra.mxu0 0.0
    %3425 = vmatpush.msra.mxu0 0.0
    %3426 = vmatpush.msra.mxu0 0.0
    %3427 = vmatpush.msra.mxu0 0.0
    %3428 = vmatpush.msra.mxu0 0.0
    %3429 = vmatpush.msra.mxu0 0.0
    %3430 = vmatpush.msra.mxu0 0.0
    %3431 = vmatpush.msra.mxu0 0.0
    %3432 = vmatpush.msra.mxu0 0.0
    %3433 = vmatpush.msra.mxu0 0.0
    %v3434 = vand.u32 %v3005, 4294901760
    %3435 = vmatpush.msra.mxu0 %v3434
    %v3436 = vand.u32 %v3001, 4294901760
    %3437 = vmatpush.msra.mxu0 %v3436
    %v3438 = vand.u32 %v2288, 4294901760
    %3439 = vmatmul.f32.gmra.mxu0 %v3438
    %v3440 = vpop.f32.mrf.mxu0
    %v3441 = vadd.f32 %v3406, %v3440
    %v3442 = vand.u32 %v2291, 4294901760
    %3443 = vmatmul.f32.gmra.mxu0 %v3442
    %v3444 = vpop.f32.mrf.mxu0
    %v3445 = vadd.f32 %v3410, %v3444
    %v3446 = vand.u32 %v2294, 4294901760
    %3447 = vmatmul.f32.gmra.mxu0 %v3446
    %v3448 = vpop.f32.mrf.mxu0
    %v3449 = vadd.f32 %v3414, %v3448
    %v3450 = vand.u32 %v2297, 4294901760
    %3451 = vmatmul.f32.gmra.mxu0 %v3450
    %v3452 = vpop.f32.mrf.mxu0
    %v3453 = vadd.f32 %v3418, %v3452
    %3454 = vdwg.mxu0
    %3455 = vmatpush.msra.mxu0 0.0
    %3456 = vmatpush.msra.mxu0 0.0
    %3457 = vmatpush.msra.mxu0 0.0
    %3458 = vmatpush.msra.mxu0 0.0
    %3459 = vmatpush.msra.mxu0 0.0
    %3460 = vmatpush.msra.mxu0 0.0
    %3461 = vmatpush.msra.mxu0 0.0
    %3462 = vmatpush.msra.mxu0 0.0
    %3463 = vmatpush.msra.mxu0 0.0
    %3464 = vmatpush.msra.mxu0 0.0
    %3465 = vmatpush.msra.mxu0 0.0
    %3466 = vmatpush.msra.mxu0 0.0
    %3467 = vmatpush.msra.mxu0 0.0
    %3468 = vmatpush.msra.mxu0 0.0
    %v3469 = vand.u32 %v3201, 4294901760
    %3470 = vmatpush.msra.mxu0 %v3469
    %v3471 = vand.u32 %v3197, 4294901760
    %3472 = vmatpush.msra.mxu0 %v3471
    %v3473 = vand.u32 %v2288, 4294901760
    %v3474 = vsub.f32 %v2288, %v3473
    %v3475 = vand.u32 %v3474, 4294901760
    %v3476 = vsub.f32 %v3474, %v3475
    %v3477 = vand.u32 %v3476, 4294901760
    %3478 = vmatmul.f32.gmra.mxu0 %v3477
    %v3479 = vpop.f32.mrf.mxu0
    %v3480 = vadd.f32 0.0, %v3479
    %v3481 = vand.u32 %v2291, 4294901760
    %v3482 = vsub.f32 %v2291, %v3481
    %v3483 = vand.u32 %v3482, 4294901760
    %v3484 = vsub.f32 %v3482, %v3483
    %v3485 = vand.u32 %v3484, 4294901760
    %3486 = vmatmul.f32.gmra.mxu0 %v3485
    %v3487 = vpop.f32.mrf.mxu0
    %v3488 = vadd.f32 0.0, %v3487
    %v3489 = vand.u32 %v2294, 4294901760
    %v3490 = vsub.f32 %v2294, %v3489
    %v3491 = vand.u32 %v3490, 4294901760
    %v3492 = vsub.f32 %v3490, %v3491
    %v3493 = vand.u32 %v3492, 4294901760
    %3494 = vmatmul.f32.gmra.mxu0 %v3493
    %v3495 = vpop.f32.mrf.mxu0
    %v3496 = vadd.f32 0.0, %v3495
    %v3497 = vand.u32 %v2297, 4294901760
    %v3498 = vsub.f32 %v2297, %v3497
    %v3499 = vand.u32 %v3498, 4294901760
    %v3500 = vsub.f32 %v3498, %v3499
    %v3501 = vand.u32 %v3500, 4294901760
    %3502 = vmatmul.f32.gmra.mxu0 %v3501
    %v3503 = vpop.f32.mrf.mxu0
    %v3504 = vadd.f32 0.0, %v3503
    %3505 = vdwg.mxu0
    %3506 = vmatpush.msra.mxu0 0.0
    %3507 = vmatpush.msra.mxu0 0.0
    %3508 = vmatpush.msra.mxu0 0.0
    %3509 = vmatpush.msra.mxu0 0.0
    %3510 = vmatpush.msra.mxu0 0.0
    %3511 = vmatpush.msra.mxu0 0.0
    %3512 = vmatpush.msra.mxu0 0.0
    %3513 = vmatpush.msra.mxu0 0.0
    %3514 = vmatpush.msra.mxu0 0.0
    %3515 = vmatpush.msra.mxu0 0.0
    %3516 = vmatpush.msra.mxu0 0.0
    %3517 = vmatpush.msra.mxu0 0.0
    %3518 = vmatpush.msra.mxu0 0.0
    %3519 = vmatpush.msra.mxu0 0.0
    %v3520 = vand.u32 %v3201, 4294901760
    %v3521 = vsub.f32 %v3201, %v3520
    %v3522 = vand.u32 %v3521, 4294901760
    %v3523 = vsub.f32 %v3521, %v3522
    %v3524 = vand.u32 %v3523, 4294901760
    %3525 = vmatpush.msra.mxu0 %v3524
    %v3526 = vand.u32 %v3197, 4294901760
    %v3527 = vsub.f32 %v3197, %v3526
    %v3528 = vand.u32 %v3527, 4294901760
    %v3529 = vsub.f32 %v3527, %v3528
    %v3530 = vand.u32 %v3529, 4294901760
    %3531 = vmatpush.msra.mxu0 %v3530
    %v3532 = vand.u32 %v2288, 4294901760
    %3533 = vmatmul.f32.gmra.mxu0 %v3532
    %v3534 = vpop.f32.mrf.mxu0
    %v3535 = vadd.f32 %v3480, %v3534
    %v3536 = vand.u32 %v2291, 4294901760
    %3537 = vmatmul.f32.gmra.mxu0 %v3536
    %v3538 = vpop.f32.mrf.mxu0
    %v3539 = vadd.f32 %v3488, %v3538
    %v3540 = vand.u32 %v2294, 4294901760
    %3541 = vmatmul.f32.gmra.mxu0 %v3540
    %v3542 = vpop.f32.mrf.mxu0
    %v3543 = vadd.f32 %v3496, %v3542
    %v3544 = vand.u32 %v2297, 4294901760
    %3545 = vmatmul.f32.gmra.mxu0 %v3544
    %v3546 = vpop.f32.mrf.mxu0
    %v3547 = vadd.f32 %v3504, %v3546
    %3548 = vdwg.mxu0
    %3549 = vmatpush.msra.mxu0 0.0
    %3550 = vmatpush.msra.mxu0 0.0
    %3551 = vmatpush.msra.mxu0 0.0
    %3552 = vmatpush.msra.mxu0 0.0
    %3553 = vmatpush.msra.mxu0 0.0
    %3554 = vmatpush.msra.mxu0 0.0
    %3555 = vmatpush.msra.mxu0 0.0
    %3556 = vmatpush.msra.mxu0 0.0
    %3557 = vmatpush.msra.mxu0 0.0
    %3558 = vmatpush.msra.mxu0 0.0
    %3559 = vmatpush.msra.mxu0 0.0
    %3560 = vmatpush.msra.mxu0 0.0
    %3561 = vmatpush.msra.mxu0 0.0
    %3562 = vmatpush.msra.mxu0 0.0
    %v3563 = vand.u32 %v3201, 4294901760
    %v3564 = vsub.f32 %v3201, %v3563
    %3565 = vmatpush.msra.mxu0 %v3564
    %v3566 = vand.u32 %v3197, 4294901760
    %v3567 = vsub.f32 %v3197, %v3566
    %3568 = vmatpush.msra.mxu0 %v3567
    %v3569 = vand.u32 %v2288, 4294901760
    %v3570 = vsub.f32 %v2288, %v3569
    %3571 = vmatmul.f32.gmra.mxu0 %v3570
    %v3572 = vpop.f32.mrf.mxu0
    %v3573 = vadd.f32 %v3535, %v3572
    %v3574 = vand.u32 %v2291, 4294901760
    %v3575 = vsub.f32 %v2291, %v3574
    %3576 = vmatmul.f32.gmra.mxu0 %v3575
    %v3577 = vpop.f32.mrf.mxu0
    %v3578 = vadd.f32 %v3539, %v3577
    %v3579 = vand.u32 %v2294, 4294901760
    %v3580 = vsub.f32 %v2294, %v3579
    %3581 = vmatmul.f32.gmra.mxu0 %v3580
    %v3582 = vpop.f32.mrf.mxu0
    %v3583 = vadd.f32 %v3543, %v3582
    %v3584 = vand.u32 %v2297, 4294901760
    %v3585 = vsub.f32 %v2297, %v3584
    %3586 = vmatmul.f32.gmra.mxu0 %v3585
    %v3587 = vpop.f32.mrf.mxu0
    %v3588 = vadd.f32 %v3547, %v3587
    %3589 = vdwg.mxu0
    %3590 = vmatpush.msra.mxu0 0.0
    %3591 = vmatpush.msra.mxu0 0.0
    %3592 = vmatpush.msra.mxu0 0.0
    %3593 = vmatpush.msra.mxu0 0.0
    %3594 = vmatpush.msra.mxu0 0.0
    %3595 = vmatpush.msra.mxu0 0.0
    %3596 = vmatpush.msra.mxu0 0.0
    %3597 = vmatpush.msra.mxu0 0.0
    %3598 = vmatpush.msra.mxu0 0.0
    %3599 = vmatpush.msra.mxu0 0.0
    %3600 = vmatpush.msra.mxu0 0.0
    %3601 = vmatpush.msra.mxu0 0.0
    %3602 = vmatpush.msra.mxu0 0.0
    %3603 = vmatpush.msra.mxu0 0.0
    %v3604 = vand.u32 %v3201, 4294901760
    %3605 = vmatpush.msra.mxu0 %v3604
    %v3606 = vand.u32 %v3197, 4294901760
    %3607 = vmatpush.msra.mxu0 %v3606
    %v3608 = vand.u32 %v2288, 4294901760
    %v3609 = vsub.f32 %v2288, %v3608
    %v3610 = vand.u32 %v3609, 4294901760
    %3611 = vmatmul.f32.gmra.mxu0 %v3610
    %v3612 = vpop.f32.mrf.mxu0
    %v3613 = vadd.f32 %v3573, %v3612
    %v3614 = vand.u32 %v2291, 4294901760
    %v3615 = vsub.f32 %v2291, %v3614
    %v3616 = vand.u32 %v3615, 4294901760
    %3617 = vmatmul.f32.gmra.mxu0 %v3616
    %v3618 = vpop.f32.mrf.mxu0
    %v3619 = vadd.f32 %v3578, %v3618
    %v3620 = vand.u32 %v2294, 4294901760
    %v3621 = vsub.f32 %v2294, %v3620
    %v3622 = vand.u32 %v3621, 4294901760
    %3623 = vmatmul.f32.gmra.mxu0 %v3622
    %v3624 = vpop.f32.mrf.mxu0
    %v3625 = vadd.f32 %v3583, %v3624
    %v3626 = vand.u32 %v2297, 4294901760
    %v3627 = vsub.f32 %v2297, %v3626
    %v3628 = vand.u32 %v3627, 4294901760
    %3629 = vmatmul.f32.gmra.mxu0 %v3628
    %v3630 = vpop.f32.mrf.mxu0
    %v3631 = vadd.f32 %v3588, %v3630
    %3632 = vdwg.mxu0
    %3633 = vmatpush.msra.mxu0 0.0
    %3634 = vmatpush.msra.mxu0 0.0
    %3635 = vmatpush.msra.mxu0 0.0
    %3636 = vmatpush.msra.mxu0 0.0
    %3637 = vmatpush.msra.mxu0 0.0
    %3638 = vmatpush.msra.mxu0 0.0
    %3639 = vmatpush.msra.mxu0 0.0
    %3640 = vmatpush.msra.mxu0 0.0
    %3641 = vmatpush.msra.mxu0 0.0
    %3642 = vmatpush.msra.mxu0 0.0
    %3643 = vmatpush.msra.mxu0 0.0
    %3644 = vmatpush.msra.mxu0 0.0
    %3645 = vmatpush.msra.mxu0 0.0
    %3646 = vmatpush.msra.mxu0 0.0
    %v3647 = vand.u32 %v3201, 4294901760
    %v3648 = vsub.f32 %v3201, %v3647
    %v3649 = vand.u32 %v3648, 4294901760
    %3650 = vmatpush.msra.mxu0 %v3649
    %v3651 = vand.u32 %v3197, 4294901760
    %v3652 = vsub.f32 %v3197, %v3651
    %v3653 = vand.u32 %v3652, 4294901760
    %3654 = vmatpush.msra.mxu0 %v3653
    %v3655 = vand.u32 %v2288, 4294901760
    %3656 = vmatmul.f32.gmra.mxu0 %v3655
    %v3657 = vpop.f32.mrf.mxu0
    %v3658 = vadd.f32 %v3613, %v3657
    %v3659 = vand.u32 %v2291, 4294901760
    %3660 = vmatmul.f32.gmra.mxu0 %v3659
    %v3661 = vpop.f32.mrf.mxu0
    %v3662 = vadd.f32 %v3619, %v3661
    %v3663 = vand.u32 %v2294, 4294901760
    %3664 = vmatmul.f32.gmra.mxu0 %v3663
    %v3665 = vpop.f32.mrf.mxu0
    %v3666 = vadd.f32 %v3625, %v3665
    %v3667 = vand.u32 %v2297, 4294901760
    %3668 = vmatmul.f32.gmra.mxu0 %v3667
    %v3669 = vpop.f32.mrf.mxu0
    %v3670 = vadd.f32 %v3631, %v3669
    %3671 = vdwg.mxu0
    %3672 = vmatpush.msra.mxu0 0.0
    %3673 = vmatpush.msra.mxu0 0.0
    %3674 = vmatpush.msra.mxu0 0.0
    %3675 = vmatpush.msra.mxu0 0.0
    %3676 = vmatpush.msra.mxu0 0.0
    %3677 = vmatpush.msra.mxu0 0.0
    %3678 = vmatpush.msra.mxu0 0.0
    %3679 = vmatpush.msra.mxu0 0.0
    %3680 = vmatpush.msra.mxu0 0.0
    %3681 = vmatpush.msra.mxu0 0.0
    %3682 = vmatpush.msra.mxu0 0.0
    %3683 = vmatpush.msra.mxu0 0.0
    %3684 = vmatpush.msra.mxu0 0.0
    %3685 = vmatpush.msra.mxu0 0.0
    %v3686 = vand.u32 %v3201, 4294901760
    %3687 = vmatpush.msra.mxu0 %v3686
    %v3688 = vand.u32 %v3197, 4294901760
    %3689 = vmatpush.msra.mxu0 %v3688
    %v3690 = vand.u32 %v2288, 4294901760
    %3691 = vmatmul.f32.gmra.mxu0 %v3690
    %v3692 = vpop.f32.mrf.mxu0
    %v3693 = vadd.f32 %v3658, %v3692
    %v3694 = vand.u32 %v2291, 4294901760
    %3695 = vmatmul.f32.gmra.mxu0 %v3694
    %v3696 = vpop.f32.mrf.mxu0
    %v3697 = vadd.f32 %v3662, %v3696
    %v3698 = vand.u32 %v2294, 4294901760
    %3699 = vmatmul.f32.gmra.mxu0 %v3698
    %v3700 = vpop.f32.mrf.mxu0
    %v3701 = vadd.f32 %v3666, %v3700
    %v3702 = vand.u32 %v2297, 4294901760
    %3703 = vmatmul.f32.gmra.mxu0 %v3702
    %v3704 = vpop.f32.mrf.mxu0
    %v3705 = vadd.f32 %v3670, %v3704
    %3706 = vdwg.mxu0
    %v3707 = vadd.f32 %v2803, %v3441
    %v3708 = vadd.f32 %v2804, %v3445
    %v3709 = vadd.f32 %v2805, %v3449
    %v3710 = vadd.f32 %v2806, %v3453
    %v3711 = vadd.f32 %v2807, %v3693
    %v3712 = vadd.f32 %v2808, %v3697
    %v3713 = vadd.f32 %v2809, %v3701
    %v3714 = vadd.f32 %v2810, %v3705
    %vm3715 = vcmask 261120
    %3716 = vst.msk [vmem:[#allocation5] sm:$0xff] %vm3715, %v3707
    %3717 = vst.msk [vmem:[#allocation5 + $0x8] sm:$0xff] %vm3715, %v3708
    %3718 = vst.msk [vmem:[#allocation5 + $0x10] sm:$0xff] %vm3715, %v3709
    %3719 = vst.msk [vmem:[#allocation5 + $0x18] sm:$0xff] %vm3715, %v3710
    %3720 = vst.msk [vmem:[#allocation5 + $0x20] sm:$0xff] %vm3715, %v3711
    %3721 = vst.msk [vmem:[#allocation5 + $0x28] sm:$0xff] %vm3715, %v3712
    %3722 = vst.msk [vmem:[#allocation5 + $0x30] sm:$0xff] %vm3715, %v3713
    %3723 = vst.msk [vmem:[#allocation5 + $0x38] sm:$0xff] %vm3715, %v3714
    // Predicated region
    $region10: #{tpu_custom_call.1} parent=1 // pred_check
      _
    $region11: #{tpu_custom_call.1} parent=1 // pred_check_branch
      %3725 = sbr.rel (0) target = $region13
    $region12: #{tpu_custom_call.1} parent=1 // pred_region
      %3727 = vsyncadd [#allocation4], 0
      %s3728 = sshll.u32 [#allocation5], 4
      %s3729 = int_to_ptr.vmem [resolvable:$true] %s3728
      %s3730 = sshll.u32 %s1, 4
      %s3731 = int_to_ptr.hbm [resolvable:$true] %s3730
      %3736 = dma.vmem_to_hbm [thread:$0]  %s3729, 1024, %s3731, [#allocation4], 128, 128, 8
    $region13: #{tpu_custom_call.1} parent=1 // pred_fallthru
      _
    // Predicated region
    $region14: #{tpu_custom_call.1} parent=1 // pred_check
      _
    $region15: #{tpu_custom_call.1} parent=1 // pred_check_branch
      %3738 = sbr.rel (0) target = $region17
    $region16: #{tpu_custom_call.1} parent=1 // pred_region
      %3740 = dma.done [#allocation4], 1024
    $region17: #{tpu_custom_call.1} parent=1 // pred_fallthru
      _
    %3741 = vsyncpa [#allocation3], 1
    %3742 = vsyncpa [#allocation4], 1

</llo_original>
